<compile_context>
chip_gen: v7x
topology: tpu7x:2x2x1
jax: 0.10.0
libtpu: 0.0.40
codegen_flags: <defaults>
</compile_context>

<pallas_src>
import jax
import jax.numpy as jnp
from jax import lax
from jax.experimental import pallas as pl
from jax.experimental.pallas import tpu as pltpu

MESSAGE_LENGTH = len('HelloWorld')   # 10
IN_DIM = 3 + MESSAGE_LENGTH          # 13
H1, H2, H3 = 512, 1024, 2048
OUT_DIM = 3
BN_EPS = 1e-5


def _bn_relu(z, g, be):
    """BatchNorm1d (training mode: batch mean, biased var) + ReLU, folded.

    `centered` is computed once and reused for the variance; the affine part
    is a single multiply-add on the (B, F) tensor.  rsqrt -> EUP.
    """
    mu = jnp.mean(z, axis=0, keepdims=True)
    centered = z - mu
    var = jnp.mean(centered * centered, axis=0, keepdims=True)
    scale = g * lax.rsqrt(var + BN_EPS)
    return jnp.maximum(centered * scale + be, 0.0)


def _dequant_bf16(q_i8):
    """int8 -> f32 -> bf16 widen (portable across v5e/v6e/v7x MXUs)."""
    return q_i8.astype(jnp.float32).astype(jnp.bfloat16)


def _generator_kernel(x_ref,
                      w1_ref, g1_ref, be1_ref,
                      g2_ref, be2_ref, s2_ref,
                      g3_ref, be3_ref, s3_ref,
                      w4t_ref, b4_ref,
                      w2_hbm, w3_hbm,
                      o_ref,
                      w2_vmem, w3_vmem, dma_sem):
    # Kick off both quantized-weight DMAs immediately so they overlap the
    # fc1 / fc2 compute and BN reductions below.
    cp2 = pltpu.make_async_copy(w2_hbm, w2_vmem, dma_sem.at[0])
    cp3 = pltpu.make_async_copy(w3_hbm, w3_vmem, dma_sem.at[1])
    cp2.start()
    cp3.start()

    # fc1 (f32, tiny weight).  Linear biases of layers 1-3 are omitted: they
    # are exactly cancelled by the following BatchNorm mean subtraction.
    h = x_ref[...].astype(jnp.float32)
    z1 = jnp.dot(h, w1_ref[...], preferred_element_type=jnp.float32)
    h = _bn_relu(z1, g1_ref[...], be1_ref[...])

    # fc2: int8 weight (dequantized on the VPU), bf16 matmul, f32 accumulate.
    # Per-output-channel dequant scale is applied to z BEFORE the BN stats.
    cp2.wait()
    z2 = jnp.dot(h.astype(jnp.bfloat16), _dequant_bf16(w2_vmem[...]),
                 preferred_element_type=jnp.float32) * s2_ref[...]
    h = _bn_relu(z2, g2_ref[...], be2_ref[...])

    # fc3: same int8 path; the 2 MB w3 DMA has been in flight since entry.
    cp3.wait()
    z3 = jnp.dot(h.astype(jnp.bfloat16), _dequant_bf16(w3_vmem[...]),
                 preferred_element_type=jnp.float32) * s3_ref[...]
    h = _bn_relu(z3, g3_ref[...], be3_ref[...])

    # fc4: weight stored transposed (OUT_DIM, H3) -> lane-dense contraction
    # over the 2048 axis of both operands.
    z4 = jnp.einsum('bk,nk->bn', h.astype(jnp.bfloat16), w4t_ref[...],
                    preferred_element_type=jnp.float32) + b4_ref[...]
    o_ref[...] = jax.nn.sigmoid(z4).astype(o_ref.dtype)


def generator_forward(x, params):
    """x: (B, 13) float32, B >= 2. params: dict of weights / BN params."""
    B = x.shape[0]
    args = (
        x,
        params['w1'], params['g1'], params['be1'],
        params['g2'], params['be2'], params['s2'],
        params['g3'], params['be3'], params['s3'],
        params['w4t'], params['b4'],
        params['w2_q'], params['w3_q'],          # stay in HBM, manual DMA
    )
    vmem = pl.BlockSpec(memory_space=pltpu.MemorySpace.VMEM)
    hbm = pl.BlockSpec(memory_space=pl.ANY)
    return pl.pallas_call(
        _generator_kernel,
        out_shape=jax.ShapeDtypeStruct((B, OUT_DIM), jnp.float32),
        in_specs=[vmem] * 12 + [hbm, hbm],
        out_specs=vmem,
        scratch_shapes=[
            pltpu.VMEM((H1, H2), jnp.int8),       # w2 staging buffer
            pltpu.VMEM((H2, H3), jnp.int8),       # w3 staging buffer
            pltpu.SemaphoreType.DMA((2,)),
        ],
        compiler_params=pltpu.CompilerParams(
            vmem_limit_bytes=16 * 1024 * 1024),   # ~3 MiB actual; v7x-safe
    )(*args)


def _quantize_per_col(w_f32):
    """Symmetric per-output-channel int8 quantization of a (K, N) f32 weight."""
    s = jnp.max(jnp.abs(w_f32), axis=0, keepdims=True) / 127.0     # (1, N)
    s = jnp.maximum(s, 1e-12)
    q = jnp.clip(jnp.round(w_f32 / s), -127.0, 127.0).astype(jnp.int8)
    return q, s.astype(jnp.float32)


def init_params(key):
    """Deterministic init mirroring nn.Linear default (uniform +-1/sqrt(fan_in))
    and nn.BatchNorm1d default (gamma=1, beta=0).

    fc1-fc3 biases are not created (cancelled by training-mode BN).
    w2 / w3 are int8 with per-output-channel f32 scales; w1 stays f32 (26 KB);
    fc4 weight stored transposed (OUT_DIM, H3) bf16 so its lane dim is dense.
    """
    k1, k2, k3, k4, kb4 = jax.random.split(key, 5)

    def w(key, fan_in, fan_out):
        bound = fan_in ** -0.5
        return jax.random.uniform(key, (fan_in, fan_out), jnp.float32,
                                  -bound, bound)

    w1 = w(k1, IN_DIM, H1)                               # (13, 512)   f32
    w2_q, s2 = _quantize_per_col(w(k2, H1, H2))          # (512, 1024) int8
    w3_q, s3 = _quantize_per_col(w(k3, H2, H3))          # (1024,2048) int8
    w4t = w(k4, H3, OUT_DIM).astype(jnp.bfloat16).T      # (3, 2048)   bf16
    bound4 = H3 ** -0.5
    b4 = jax.random.uniform(kb4, (1, OUT_DIM), jnp.float32, -bound4, bound4)

    return {
        'w1': w1,
        'g1': jnp.ones((1, H1), jnp.float32), 'be1': jnp.zeros((1, H1), jnp.float32),
        'w2_q': w2_q, 's2': s2,
        'g2': jnp.ones((1, H2), jnp.float32), 'be2': jnp.zeros((1, H2), jnp.float32),
        'w3_q': w3_q, 's3': s3,
        'g3': jnp.ones((1, H3), jnp.float32), 'be3': jnp.zeros((1, H3), jnp.float32),
        'w4t': w4t, 'b4': b4,
    }


def generator_forward_ref(x, p):
    """Pure-JAX reference computing the identical math path (same dtypes)."""
    def bn_relu(z, g, be):
        mu = jnp.mean(z, axis=0, keepdims=True)
        c = z - mu
        var = jnp.mean(c * c, axis=0, keepdims=True)
        return jnp.maximum(c * (g * lax.rsqrt(var + BN_EPS)) + be, 0.0)

    w2 = p['w2_q'].astype(jnp.float32).astype(jnp.bfloat16)
    w3 = p['w3_q'].astype(jnp.float32).astype(jnp.bfloat16)

    z1 = jnp.dot(x, p['w1'], preferred_element_type=jnp.float32)
    h = bn_relu(z1, p['g1'], p['be1'])
    z2 = jnp.dot(h.astype(jnp.bfloat16), w2,
                 preferred_element_type=jnp.float32) * p['s2']
    h = bn_relu(z2, p['g2'], p['be2'])
    z3 = jnp.dot(h.astype(jnp.bfloat16), w3,
                 preferred_element_type=jnp.float32) * p['s3']
    h = bn_relu(z3, p['g3'], p['be3'])
    z4 = jnp.einsum('bk,nk->bn', h.astype(jnp.bfloat16), p['w4t'],
                    preferred_element_type=jnp.float32) + p['b4']
    return jax.nn.sigmoid(z4)


if __name__ == "__main__":
    key = jax.random.PRNGKey(0)
    kp, kx = jax.random.split(key)
    params = init_params(kp)

    B = 8  # small, sublane-aligned batch (BN training mode needs B >= 2)
    x = jax.random.normal(kx, (B, IN_DIM), dtype=jnp.float32)

    out = generator_forward(x, params)
    out = jax.block_until_ready(out)

    ref = generator_forward_ref(x, params)
    assert out.shape == (B, OUT_DIM)
    assert jnp.allclose(out, ref, atol=1e-3, rtol=1e-3), "mismatch vs reference"

    print("KERNEL_OK")
</pallas_src>

<mosaic_0001>
module attributes {stable_mosaic.version = 11 : i64} {
  func.func @_generator_kernel(%arg0: memref<8x13xf32, #tpu.memory_space<vmem>>, %arg1: memref<13x512xf32, #tpu.memory_space<vmem>>, %arg2: memref<1x512xf32, #tpu.memory_space<vmem>>, %arg3: memref<1x512xf32, #tpu.memory_space<vmem>>, %arg4: memref<1x1024xf32, #tpu.memory_space<vmem>>, %arg5: memref<1x1024xf32, #tpu.memory_space<vmem>>, %arg6: memref<1x1024xf32, #tpu.memory_space<vmem>>, %arg7: memref<1x2048xf32, #tpu.memory_space<vmem>>, %arg8: memref<1x2048xf32, #tpu.memory_space<vmem>>, %arg9: memref<1x2048xf32, #tpu.memory_space<vmem>>, %arg10: memref<3x2048xbf16, #tpu.memory_space<vmem>>, %arg11: memref<1x3xf32, #tpu.memory_space<vmem>>, %arg12: memref<512x1024xi8, #tpu.memory_space<any>>, %arg13: memref<1024x2048xi8, #tpu.memory_space<any>>, %arg14: memref<8x3xf32, #tpu.memory_space<vmem>>, %arg15: memref<512x1024xi8, #tpu.memory_space<vmem>>, %arg16: memref<1024x2048xi8, #tpu.memory_space<vmem>>, %arg17: memref<2x!tpu.dma_semaphore, #tpu.memory_space<semaphore_mem>>) attributes {dimension_semantics = [], scalar_prefetch = 0 : i64, scratch_operands = 3 : i64, tpu.core_type = #tpu.core_type<tc>} {
    %c0_i32 = arith.constant 0 : i32
    %0 = tpu.memref_slice %arg17[%c0_i32] : memref<2x!tpu.dma_semaphore, #tpu.memory_space<semaphore_mem>> -> memref<1x!tpu.dma_semaphore, #tpu.memory_space<semaphore_mem>>
    %1 = tpu.memref_squeeze %0 : memref<1x!tpu.dma_semaphore, #tpu.memory_space<semaphore_mem>> -> memref<!tpu.dma_semaphore, #tpu.memory_space<semaphore_mem>>
    tpu.enqueue_dma source(%arg12 : memref<512x1024xi8, #tpu.memory_space<any>>) target(%arg15 : memref<512x1024xi8, #tpu.memory_space<vmem>>) target_semaphore(%1 : memref<!tpu.dma_semaphore, #tpu.memory_space<semaphore_mem>>)
    %c1_i32 = arith.constant 1 : i32
    %2 = tpu.memref_slice %arg17[%c1_i32] : memref<2x!tpu.dma_semaphore, #tpu.memory_space<semaphore_mem>> -> memref<1x!tpu.dma_semaphore, #tpu.memory_space<semaphore_mem>>
    %3 = tpu.memref_squeeze %2 : memref<1x!tpu.dma_semaphore, #tpu.memory_space<semaphore_mem>> -> memref<!tpu.dma_semaphore, #tpu.memory_space<semaphore_mem>>
    tpu.enqueue_dma source(%arg13 : memref<1024x2048xi8, #tpu.memory_space<any>>) target(%arg16 : memref<1024x2048xi8, #tpu.memory_space<vmem>>) target_semaphore(%3 : memref<!tpu.dma_semaphore, #tpu.memory_space<semaphore_mem>>)
    %c0 = arith.constant 0 : index
    %c0_0 = arith.constant 0 : index
    %4 = vector.load %arg0[%c0, %c0_0] : memref<8x13xf32, #tpu.memory_space<vmem>>, vector<8x13xf32>
    %c0_1 = arith.constant 0 : index
    %c0_2 = arith.constant 0 : index
    %5 = vector.load %arg1[%c0_1, %c0_2] : memref<13x512xf32, #tpu.memory_space<vmem>>, vector<13x512xf32>
    %cst = arith.constant dense<0.000000e+00> : vector<8x512xf32>
    %6 = tpu.matmul %4, %5, %cst {dimension_numbers = #tpu.dot_dimension_numbers<[1], [0], [0], [1], [0, 0, 1, 1], [], []>} : vector<8x13xf32>, vector<13x512xf32>, vector<8x512xf32> -> vector<8x512xf32>
    %c0_3 = arith.constant 0 : index
    %c0_4 = arith.constant 0 : index
    %7 = vector.load %arg2[%c0_3, %c0_4] : memref<1x512xf32, #tpu.memory_space<vmem>>, vector<1x512xf32>
    %c0_5 = arith.constant 0 : index
    %c0_6 = arith.constant 0 : index
    %8 = vector.load %arg3[%c0_5, %c0_6] : memref<1x512xf32, #tpu.memory_space<vmem>>, vector<1x512xf32>
    %cst_7 = arith.constant dense<0.000000e+00> : vector<512xf32>
    %9 = vector.multi_reduction <add>, %6, %cst_7 [0] : vector<8x512xf32> to vector<512xf32>
    %10 = vector.shape_cast %9 : vector<512xf32> to vector<1x512xf32>
    %cst_8 = arith.constant 8.000000e+00 : f32
    %11 = vector.broadcast %cst_8 : f32 to vector<1x512xf32>
    %12 = arith.divf %10, %11 : vector<1x512xf32>
    %13 = vector.broadcast %12 : vector<1x512xf32> to vector<8x512xf32>
    %14 = arith.subf %6, %13 : vector<8x512xf32>
    %15 = arith.mulf %14, %14 : vector<8x512xf32>
    %cst_9 = arith.constant dense<0.000000e+00> : vector<512xf32>
    %16 = vector.multi_reduction <add>, %15, %cst_9 [0] : vector<8x512xf32> to vector<512xf32>
    %17 = vector.shape_cast %16 : vector<512xf32> to vector<1x512xf32>
    %cst_10 = arith.constant 8.000000e+00 : f32
    %18 = vector.broadcast %cst_10 : f32 to vector<1x512xf32>
    %19 = arith.divf %17, %18 : vector<1x512xf32>
    %cst_11 = arith.constant 9.99999974E-6 : f32
    %20 = vector.broadcast %cst_11 : f32 to vector<1x512xf32>
    %21 = arith.addf %19, %20 : vector<1x512xf32>
    %22 = math.rsqrt %21 : vector<1x512xf32>
    %23 = arith.mulf %7, %22 : vector<1x512xf32>
    %24 = vector.broadcast %23 : vector<1x512xf32> to vector<8x512xf32>
    %25 = arith.mulf %14, %24 : vector<8x512xf32>
    %26 = vector.broadcast %8 : vector<1x512xf32> to vector<8x512xf32>
    %27 = arith.addf %25, %26 : vector<8x512xf32>
    %cst_12 = arith.constant 0.000000e+00 : f32
    %28 = vector.broadcast %cst_12 : f32 to vector<8x512xf32>
    %29 = arith.maximumf %27, %28 : vector<8x512xf32>
    %c0_i32_13 = arith.constant 0 : i32
    %30 = tpu.memref_slice %arg17[%c0_i32_13] : memref<2x!tpu.dma_semaphore, #tpu.memory_space<semaphore_mem>> -> memref<1x!tpu.dma_semaphore, #tpu.memory_space<semaphore_mem>>
    %31 = tpu.memref_squeeze %30 : memref<1x!tpu.dma_semaphore, #tpu.memory_space<semaphore_mem>> -> memref<!tpu.dma_semaphore, #tpu.memory_space<semaphore_mem>>
    tpu.wait_dma2 semaphore(%31 : memref<!tpu.dma_semaphore, #tpu.memory_space<semaphore_mem>>) src(%arg12 : memref<512x1024xi8, #tpu.memory_space<any>>) dst(%arg15 : memref<512x1024xi8, #tpu.memory_space<vmem>>)
    %32 = arith.truncf %29 : vector<8x512xf32> to vector<8x512xbf16>
    %c0_14 = arith.constant 0 : index
    %c0_15 = arith.constant 0 : index
    %33 = vector.load %arg15[%c0_14, %c0_15] : memref<512x1024xi8, #tpu.memory_space<vmem>>, vector<512x1024xi8>
    %34 = arith.sitofp %33 : vector<512x1024xi8> to vector<512x1024xf32>
    %35 = arith.truncf %34 : vector<512x1024xf32> to vector<512x1024xbf16>
    %cst_16 = arith.constant dense<0.000000e+00> : vector<8x1024xf32>
    %36 = tpu.matmul %32, %35, %cst_16 {dimension_numbers = #tpu.dot_dimension_numbers<[1], [0], [0], [1], [0, 0, 1, 1], [], []>} : vector<8x512xbf16>, vector<512x1024xbf16>, vector<8x1024xf32> -> vector<8x1024xf32>
    %c0_17 = arith.constant 0 : index
    %c0_18 = arith.constant 0 : index
    %37 = vector.load %arg6[%c0_17, %c0_18] : memref<1x1024xf32, #tpu.memory_space<vmem>>, vector<1x1024xf32>
    %38 = vector.broadcast %37 : vector<1x1024xf32> to vector<8x1024xf32>
    %39 = arith.mulf %36, %38 : vector<8x1024xf32>
    %c0_19 = arith.constant 0 : index
    %c0_20 = arith.constant 0 : index
    %40 = vector.load %arg4[%c0_19, %c0_20] : memref<1x1024xf32, #tpu.memory_space<vmem>>, vector<1x1024xf32>
    %c0_21 = arith.constant 0 : index
    %c0_22 = arith.constant 0 : index
    %41 = vector.load %arg5[%c0_21, %c0_22] : memref<1x1024xf32, #tpu.memory_space<vmem>>, vector<1x1024xf32>
    %cst_23 = arith.constant dense<0.000000e+00> : vector<1024xf32>
    %42 = vector.multi_reduction <add>, %39, %cst_23 [0] : vector<8x1024xf32> to vector<1024xf32>
    %43 = vector.shape_cast %42 : vector<1024xf32> to vector<1x1024xf32>
    %cst_24 = arith.constant 8.000000e+00 : f32
    %44 = vector.broadcast %cst_24 : f32 to vector<1x1024xf32>
    %45 = arith.divf %43, %44 : vector<1x1024xf32>
    %46 = vector.broadcast %45 : vector<1x1024xf32> to vector<8x1024xf32>
    %47 = arith.subf %39, %46 : vector<8x1024xf32>
    %48 = arith.mulf %47, %47 : vector<8x1024xf32>
    %cst_25 = arith.constant dense<0.000000e+00> : vector<1024xf32>
    %49 = vector.multi_reduction <add>, %48, %cst_25 [0] : vector<8x1024xf32> to vector<1024xf32>
    %50 = vector.shape_cast %49 : vector<1024xf32> to vector<1x1024xf32>
    %cst_26 = arith.constant 8.000000e+00 : f32
    %51 = vector.broadcast %cst_26 : f32 to vector<1x1024xf32>
    %52 = arith.divf %50, %51 : vector<1x1024xf32>
    %cst_27 = arith.constant 9.99999974E-6 : f32
    %53 = vector.broadcast %cst_27 : f32 to vector<1x1024xf32>
    %54 = arith.addf %52, %53 : vector<1x1024xf32>
    %55 = math.rsqrt %54 : vector<1x1024xf32>
    %56 = arith.mulf %40, %55 : vector<1x1024xf32>
    %57 = vector.broadcast %56 : vector<1x1024xf32> to vector<8x1024xf32>
    %58 = arith.mulf %47, %57 : vector<8x1024xf32>
    %59 = vector.broadcast %41 : vector<1x1024xf32> to vector<8x1024xf32>
    %60 = arith.addf %58, %59 : vector<8x1024xf32>
    %cst_28 = arith.constant 0.000000e+00 : f32
    %61 = vector.broadcast %cst_28 : f32 to vector<8x1024xf32>
    %62 = arith.maximumf %60, %61 : vector<8x1024xf32>
    %c1_i32_29 = arith.constant 1 : i32
    %63 = tpu.memref_slice %arg17[%c1_i32_29] : memref<2x!tpu.dma_semaphore, #tpu.memory_space<semaphore_mem>> -> memref<1x!tpu.dma_semaphore, #tpu.memory_space<semaphore_mem>>
    %64 = tpu.memref_squeeze %63 : memref<1x!tpu.dma_semaphore, #tpu.memory_space<semaphore_mem>> -> memref<!tpu.dma_semaphore, #tpu.memory_space<semaphore_mem>>
    tpu.wait_dma2 semaphore(%64 : memref<!tpu.dma_semaphore, #tpu.memory_space<semaphore_mem>>) src(%arg13 : memref<1024x2048xi8, #tpu.memory_space<any>>) dst(%arg16 : memref<1024x2048xi8, #tpu.memory_space<vmem>>)
    %65 = arith.truncf %62 : vector<8x1024xf32> to vector<8x1024xbf16>
    %c0_30 = arith.constant 0 : index
    %c0_31 = arith.constant 0 : index
    %66 = vector.load %arg16[%c0_30, %c0_31] : memref<1024x2048xi8, #tpu.memory_space<vmem>>, vector<1024x2048xi8>
    %67 = arith.sitofp %66 : vector<1024x2048xi8> to vector<1024x2048xf32>
    %68 = arith.truncf %67 : vector<1024x2048xf32> to vector<1024x2048xbf16>
    %cst_32 = arith.constant dense<0.000000e+00> : vector<8x2048xf32>
    %69 = tpu.matmul %65, %68, %cst_32 {dimension_numbers = #tpu.dot_dimension_numbers<[1], [0], [0], [1], [0, 0, 1, 1], [], []>} : vector<8x1024xbf16>, vector<1024x2048xbf16>, vector<8x2048xf32> -> vector<8x2048xf32>
    %c0_33 = arith.constant 0 : index
    %c0_34 = arith.constant 0 : index
    %70 = vector.load %arg9[%c0_33, %c0_34] : memref<1x2048xf32, #tpu.memory_space<vmem>>, vector<1x2048xf32>
    %71 = vector.broadcast %70 : vector<1x2048xf32> to vector<8x2048xf32>
    %72 = arith.mulf %69, %71 : vector<8x2048xf32>
    %c0_35 = arith.constant 0 : index
    %c0_36 = arith.constant 0 : index
    %73 = vector.load %arg7[%c0_35, %c0_36] : memref<1x2048xf32, #tpu.memory_space<vmem>>, vector<1x2048xf32>
    %c0_37 = arith.constant 0 : index
    %c0_38 = arith.constant 0 : index
    %74 = vector.load %arg8[%c0_37, %c0_38] : memref<1x2048xf32, #tpu.memory_space<vmem>>, vector<1x2048xf32>
    %cst_39 = arith.constant dense<0.000000e+00> : vector<2048xf32>
    %75 = vector.multi_reduction <add>, %72, %cst_39 [0] : vector<8x2048xf32> to vector<2048xf32>
    %76 = vector.shape_cast %75 : vector<2048xf32> to vector<1x2048xf32>
    %cst_40 = arith.constant 8.000000e+00 : f32
    %77 = vector.broadcast %cst_40 : f32 to vector<1x2048xf32>
    %78 = arith.divf %76, %77 : vector<1x2048xf32>
    %79 = vector.broadcast %78 : vector<1x2048xf32> to vector<8x2048xf32>
    %80 = arith.subf %72, %79 : vector<8x2048xf32>
    %81 = arith.mulf %80, %80 : vector<8x2048xf32>
    %cst_41 = arith.constant dense<0.000000e+00> : vector<2048xf32>
    %82 = vector.multi_reduction <add>, %81, %cst_41 [0] : vector<8x2048xf32> to vector<2048xf32>
    %83 = vector.shape_cast %82 : vector<2048xf32> to vector<1x2048xf32>
    %cst_42 = arith.constant 8.000000e+00 : f32
    %84 = vector.broadcast %cst_42 : f32 to vector<1x2048xf32>
    %85 = arith.divf %83, %84 : vector<1x2048xf32>
    %cst_43 = arith.constant 9.99999974E-6 : f32
    %86 = vector.broadcast %cst_43 : f32 to vector<1x2048xf32>
    %87 = arith.addf %85, %86 : vector<1x2048xf32>
    %88 = math.rsqrt %87 : vector<1x2048xf32>
    %89 = arith.mulf %73, %88 : vector<1x2048xf32>
    %90 = vector.broadcast %89 : vector<1x2048xf32> to vector<8x2048xf32>
    %91 = arith.mulf %80, %90 : vector<8x2048xf32>
    %92 = vector.broadcast %74 : vector<1x2048xf32> to vector<8x2048xf32>
    %93 = arith.addf %91, %92 : vector<8x2048xf32>
    %cst_44 = arith.constant 0.000000e+00 : f32
    %94 = vector.broadcast %cst_44 : f32 to vector<8x2048xf32>
    %95 = arith.maximumf %93, %94 : vector<8x2048xf32>
    %96 = arith.truncf %95 : vector<8x2048xf32> to vector<8x2048xbf16>
    %c0_45 = arith.constant 0 : index
    %c0_46 = arith.constant 0 : index
    %97 = vector.load %arg10[%c0_45, %c0_46] : memref<3x2048xbf16, #tpu.memory_space<vmem>>, vector<3x2048xbf16>
    "tpu.trace_start"() <{level = 10 : i32, message = "bk,nk->bn"}> : () -> ()
    %cst_47 = arith.constant dense<0.000000e+00> : vector<8x3xf32>
    %98 = tpu.matmul %96, %97, %cst_47 {dimension_numbers = #tpu.dot_dimension_numbers<[1], [1], [0], [0], [0, 0, 1, 0], [], []>} : vector<8x2048xbf16>, vector<3x2048xbf16>, vector<8x3xf32> -> vector<8x3xf32>
    "tpu.trace_stop"() : () -> ()
    %c0_48 = arith.constant 0 : index
    %c0_49 = arith.constant 0 : index
    %99 = vector.load %arg11[%c0_48, %c0_49] : memref<1x3xf32, #tpu.memory_space<vmem>>, vector<1x3xf32>
    %100 = vector.broadcast %99 : vector<1x3xf32> to vector<8x3xf32>
    %101 = arith.addf %98, %100 : vector<8x3xf32>
    %102 = arith.negf %101 : vector<8x3xf32>
    %103 = math.exp %102 : vector<8x3xf32>
    %cst_50 = arith.constant 1.000000e+00 : f32
    %104 = vector.broadcast %cst_50 : f32 to vector<8x3xf32>
    %105 = arith.addf %104, %103 : vector<8x3xf32>
    %106 = arith.divf %104, %105 : vector<8x3xf32>
    %c0_51 = arith.constant 0 : index
    %c0_52 = arith.constant 0 : index
    %107 = vector.load %arg14[%c0_51, %c0_52] : memref<8x3xf32, #tpu.memory_space<vmem>>, vector<8x3xf32>
    tpu.vector_store %arg14[%c0_51, %c0_52], %106 {strides = array<i32>} : memref<8x3xf32, #tpu.memory_space<vmem>>, vector<8x3xf32>,
    return
  }
}

</mosaic_0001>

<llo_original>
// kernel: tpu_custom_call.1
$region0: #{tpu_custom_call.1}
  #allocation0 [shape = 'u32[]', space=smem, size = 0x4, offset = 0x4, fixed_abs, tag = 'smem constant byte address 0x4 - core index']
  #allocation1 [shape = 'u32[144,128]{1,0:T(1,128)}', space=vmem, size = 0x12000, scoped, tag = 'internal scratch']
  #allocation2 [shape = 's8[512,1024]{1,0:T(32,128)(4,1)}', space=vmem, size = 0x80000, scoped, tag = 'scratch operand']
  #allocation3 [shape = 's8[1024,2048]{1,0:T(32,128)(4,1)}', space=vmem, size = 0x200000, scoped, tag = 'scratch operand']
  #allocation4 [shape = 's32[2]{0}', space=sflag, size = 0x8, scoped, tag = 'scratch operand']
  #allocation24 [shape = 's32[]', space=sflag, size = 0x4, offset = 0, fixed_abs, tag = 'sflag constant byte address 0x0 - dummy sync flag']
  #allocation25 [shape = 's32[]', space=sflag, size = 0x4, offset = 0, fixed_abs, tag = 'sflag constant byte address 0x0 - dummy sync flag']
  #allocation26 [shape = 'u32[]', space=smem, size = 0x4, offset = 0x44, fixed_abs, tag = 'smem constant byte address 0x44 - assertion arg 0']
  #allocation27 [shape = 'u32[]', space=smem, size = 0x4, offset = 0x48, fixed_abs, tag = 'smem constant byte address 0x48 - assertion arg 1']
  #allocation28 [shape = 's32[]', space=sflag, size = 0x4, offset = 0, fixed_abs, tag = 'sflag constant byte address 0x0 - dummy sync flag']
  #allocation29 [shape = 's32[]', space=sflag, size = 0x4, offset = 0, fixed_abs, tag = 'sflag constant byte address 0x0 - dummy sync flag']
  %s0 = inlined_call_operand.hbm [shape: f32[8,13], index: 0, kind: input, shape index: {}]
  %s1 = inlined_call_operand.hbm [shape: f32[13,512], index: 1, kind: input, shape index: {}]
  %s2 = inlined_call_operand.hbm [shape: f32[1,512], index: 2, kind: input, shape index: {}]
  %s3 = inlined_call_operand.hbm [shape: f32[1,512], index: 3, kind: input, shape index: {}]
  %s4 = inlined_call_operand.hbm [shape: f32[1,1024], index: 4, kind: input, shape index: {}]
  %s5 = inlined_call_operand.hbm [shape: f32[1,1024], index: 5, kind: input, shape index: {}]
  %s6 = inlined_call_operand.hbm [shape: f32[1,1024], index: 6, kind: input, shape index: {}]
  %s7 = inlined_call_operand.hbm [shape: f32[1,2048], index: 7, kind: input, shape index: {}]
  %s8 = inlined_call_operand.hbm [shape: f32[1,2048], index: 8, kind: input, shape index: {}]
  %s9 = inlined_call_operand.hbm [shape: f32[1,2048], index: 9, kind: input, shape index: {}]
  %s10 = inlined_call_operand.hbm [shape: bf16[3,2048], index: 10, kind: input, shape index: {}]
  %s11 = inlined_call_operand.hbm [shape: f32[1,3], index: 11, kind: input, shape index: {}]
  %s12 = inlined_call_operand.hbm [shape: s8[512,1024], index: 12, kind: input, shape index: {}]
  %s13 = inlined_call_operand.hbm [shape: s8[1024,2048], index: 13, kind: input, shape index: {}]
  %s14 = inlined_call_operand.vmem [shape: f32[8,3], index: 14, kind: output, shape index: {}]
  %s15 = sld [smem:[#allocation0]]
  $region114: #{tpu_custom_call.1} parent=0
    _
  %s17 = ssub.s32 1, %s15
  %s18 = scalar_select 0, %s17, %s15
  $region1: #{tpu_custom_call.1} parent=0
    #allocation5 [shape = 'u8[4096]{0}', space=vmem, size = 0x1000, scoped, tag = 'input window, operand 0, single buffered']
    #allocation6 [shape = 's32[1]{0}', space=sflag, size = 0x4, scoped, tag = 'scoped memory for tpu_custom_call.1']
    #allocation7 [shape = 'u8[32768]{0}', space=vmem, size = 0x8000, scoped, tag = 'input window, operand 1, single buffered']
    #allocation8 [shape = 's32[1]{0}', space=sflag, size = 0x4, scoped, tag = 'scoped memory for tpu_custom_call.1']
    #allocation9 [shape = 'u8[2048]{0}', space=vmem, size = 0x800, scoped, tag = 'input window, operand 2, single buffered']
    #allocation10 [shape = 'u8[2048]{0}', space=vmem, size = 0x800, scoped, tag = 'input window, operand 3, single buffered']
    #allocation11 [shape = 's32[1]{0}', space=sflag, size = 0x4, scoped, tag = 'scoped memory for tpu_custom_call.1']
    #allocation12 [shape = 'u8[4096]{0}', space=vmem, size = 0x1000, scoped, tag = 'input window, operand 4, single buffered']
    #allocation13 [shape = 'u8[4096]{0}', space=vmem, size = 0x1000, scoped, tag = 'input window, operand 5, single buffered']
    #allocation14 [shape = 's32[1]{0}', space=sflag, size = 0x4, scoped, tag = 'scoped memory for tpu_custom_call.1']
    #allocation15 [shape = 'u8[4096]{0}', space=vmem, size = 0x1000, scoped, tag = 'input window, operand 6, single buffered']
    #allocation16 [shape = 'u8[8192]{0}', space=vmem, size = 0x2000, scoped, tag = 'input window, operand 7, single buffered']
    #allocation17 [shape = 's32[1]{0}', space=sflag, size = 0x4, scoped, tag = 'scoped memory for tpu_custom_call.1']
    #allocation18 [shape = 'u8[8192]{0}', space=vmem, size = 0x2000, scoped, tag = 'input window, operand 8, single buffered']
    #allocation19 [shape = 'u8[8192]{0}', space=vmem, size = 0x2000, scoped, tag = 'input window, operand 9, single buffered']
    #allocation20 [shape = 's32[1]{0}', space=sflag, size = 0x4, scoped, tag = 'scoped memory for tpu_custom_call.1']
    #allocation21 [shape = 'u8[16384]{0}', space=vmem, size = 0x4000, scoped, tag = 'input window, operand 10, single buffered']
    #allocation22 [shape = 'u8[512]{0}', space=vmem, size = 0x400, scoped, tag = 'input window, operand 11, single buffered']
    #allocation23 [shape = 's32[1]{0}', space=sflag, size = 0x4, scoped, tag = 'scoped memory for tpu_custom_call.1']
    %19 = vsyncpa [#allocation6], 0
    %20 = vsyncpa [#allocation8], 0
    %21 = vsyncpa [#allocation11], 0
    %22 = vsyncpa [#allocation14], 0
    %23 = vsyncpa [#allocation17], 0
    %24 = vsyncpa [#allocation20], 0
    %25 = vsyncpa [#allocation23], 0
    // Predicated region
    $region2: #{tpu_custom_call.1} parent=1 // pred_check
      _
    $region3: #{tpu_custom_call.1} parent=1 // pred_check_branch
      %27 = sbr.rel (0) target = $region5
    $region4: #{tpu_custom_call.1} parent=1 // pred_region
      %s29 = ssub.s32 128, 128
      %30 = vsyncadd [#allocation6], %s29
      %s32 = sshll.u32 [#allocation5], 4
      %s33 = int_to_ptr.vmem [resolvable:$true] %s32
      %35 = dma.hbm_to_vmem [thread:$0]  %s0, 128, %s33, [#allocation6]
    $region5: #{tpu_custom_call.1} parent=1 // pred_fallthru
      _
    // Predicated region
    $region6: #{tpu_custom_call.1} parent=1 // pred_check
      _
    $region7: #{tpu_custom_call.1} parent=1 // pred_check_branch
      %37 = sbr.rel (0) target = $region9
    $region8: #{tpu_custom_call.1} parent=1 // pred_region
      %s39 = ssub.s32 1024, 1024
      %40 = vsyncadd [#allocation8], %s39
      %s41 = sshll.u32 [#allocation7], 4
      %s42 = int_to_ptr.vmem [resolvable:$true] %s41
      %47 = dma.hbm_to_vmem [thread:$0]  %s1, 1024, %s42, [#allocation8], 512, 512, 32
    $region9: #{tpu_custom_call.1} parent=1 // pred_fallthru
      _
    // Predicated region
    $region10: #{tpu_custom_call.1} parent=1 // pred_check
      _
    $region11: #{tpu_custom_call.1} parent=1 // pred_check_branch
      %49 = sbr.rel (0) target = $region13
    $region12: #{tpu_custom_call.1} parent=1 // pred_region
      %s51 = ssub.s32 64, 64
      %52 = vsyncadd [#allocation8], %s51
      %s54 = sshll.u32 [#allocation9], 4
      %s55 = int_to_ptr.vmem [resolvable:$true] %s54
      %57 = dma.hbm_to_vmem [thread:$0]  %s2, 64, %s55, [#allocation8]
    $region13: #{tpu_custom_call.1} parent=1 // pred_fallthru
      _
    // Predicated region
    $region14: #{tpu_custom_call.1} parent=1 // pred_check
      _
    $region15: #{tpu_custom_call.1} parent=1 // pred_check_branch
      %59 = sbr.rel (0) target = $region17
    $region16: #{tpu_custom_call.1} parent=1 // pred_region
      %s61 = ssub.s32 64, 64
      %62 = vsyncadd [#allocation11], %s61
      %s64 = sshll.u32 [#allocation10], 4
      %s65 = int_to_ptr.vmem [resolvable:$true] %s64
      %67 = dma.hbm_to_vmem [thread:$0]  %s3, 64, %s65, [#allocation11]
    $region17: #{tpu_custom_call.1} parent=1 // pred_fallthru
      _
    // Predicated region
    $region18: #{tpu_custom_call.1} parent=1 // pred_check
      _
    $region19: #{tpu_custom_call.1} parent=1 // pred_check_branch
      %69 = sbr.rel (0) target = $region21
    $region20: #{tpu_custom_call.1} parent=1 // pred_region
      %s71 = ssub.s32 128, 128
      %72 = vsyncadd [#allocation11], %s71
      %s74 = sshll.u32 [#allocation12], 4
      %s75 = int_to_ptr.vmem [resolvable:$true] %s74
      %77 = dma.hbm_to_vmem [thread:$0]  %s4, 128, %s75, [#allocation11]
    $region21: #{tpu_custom_call.1} parent=1 // pred_fallthru
      _
    // Predicated region
    $region22: #{tpu_custom_call.1} parent=1 // pred_check
      _
    $region23: #{tpu_custom_call.1} parent=1 // pred_check_branch
      %79 = sbr.rel (0) target = $region25
    $region24: #{tpu_custom_call.1} parent=1 // pred_region
      %s81 = ssub.s32 128, 128
      %82 = vsyncadd [#allocation14], %s81
      %s84 = sshll.u32 [#allocation13], 4
      %s85 = int_to_ptr.vmem [resolvable:$true] %s84
      %87 = dma.hbm_to_vmem [thread:$0]  %s5, 128, %s85, [#allocation14]
    $region25: #{tpu_custom_call.1} parent=1 // pred_fallthru
      _
    // Predicated region
    $region26: #{tpu_custom_call.1} parent=1 // pred_check
      _
    $region27: #{tpu_custom_call.1} parent=1 // pred_check_branch
      %89 = sbr.rel (0) target = $region29
    $region28: #{tpu_custom_call.1} parent=1 // pred_region
      %s91 = ssub.s32 128, 128
      %92 = vsyncadd [#allocation14], %s91
      %s94 = sshll.u32 [#allocation15], 4
      %s95 = int_to_ptr.vmem [resolvable:$true] %s94
      %97 = dma.hbm_to_vmem [thread:$0]  %s6, 128, %s95, [#allocation14]
    $region29: #{tpu_custom_call.1} parent=1 // pred_fallthru
      _
    // Predicated region
    $region30: #{tpu_custom_call.1} parent=1 // pred_check
      _
    $region31: #{tpu_custom_call.1} parent=1 // pred_check_branch
      %99 = sbr.rel (0) target = $region33
    $region32: #{tpu_custom_call.1} parent=1 // pred_region
      %s101 = ssub.s32 256, 256
      %102 = vsyncadd [#allocation17], %s101
      %s104 = sshll.u32 [#allocation16], 4
      %s105 = int_to_ptr.vmem [resolvable:$true] %s104
      %107 = dma.hbm_to_vmem [thread:$0]  %s7, 256, %s105, [#allocation17]
    $region33: #{tpu_custom_call.1} parent=1 // pred_fallthru
      _
    // Predicated region
    $region34: #{tpu_custom_call.1} parent=1 // pred_check
      _
    $region35: #{tpu_custom_call.1} parent=1 // pred_check_branch
      %109 = sbr.rel (0) target = $region37
    $region36: #{tpu_custom_call.1} parent=1 // pred_region
      %s111 = ssub.s32 256, 256
      %112 = vsyncadd [#allocation17], %s111
      %s114 = sshll.u32 [#allocation18], 4
      %s115 = int_to_ptr.vmem [resolvable:$true] %s114
      %117 = dma.hbm_to_vmem [thread:$0]  %s8, 256, %s115, [#allocation17]
    $region37: #{tpu_custom_call.1} parent=1 // pred_fallthru
      _
    // Predicated region
    $region38: #{tpu_custom_call.1} parent=1 // pred_check
      _
    $region39: #{tpu_custom_call.1} parent=1 // pred_check_branch
      %119 = sbr.rel (0) target = $region41
    $region40: #{tpu_custom_call.1} parent=1 // pred_region
      %s121 = ssub.s32 256, 256
      %122 = vsyncadd [#allocation20], %s121
      %s124 = sshll.u32 [#allocation19], 4
      %s125 = int_to_ptr.vmem [resolvable:$true] %s124
      %127 = dma.hbm_to_vmem [thread:$0]  %s9, 256, %s125, [#allocation20]
    $region41: #{tpu_custom_call.1} parent=1 // pred_fallthru
      _
    // Predicated region
    $region42: #{tpu_custom_call.1} parent=1 // pred_check
      _
    $region43: #{tpu_custom_call.1} parent=1 // pred_check_branch
      %129 = sbr.rel (0) target = $region45
    $region44: #{tpu_custom_call.1} parent=1 // pred_region
      %s131 = ssub.s32 512, 512
      %132 = vsyncadd [#allocation20], %s131
      %s134 = sshll.u32 [#allocation21], 4
      %s135 = int_to_ptr.vmem [resolvable:$true] %s134
      %137 = dma.hbm_to_vmem [thread:$0]  %s10, 512, %s135, [#allocation20]
    $region45: #{tpu_custom_call.1} parent=1 // pred_fallthru
      _
    // Predicated region
    $region46: #{tpu_custom_call.1} parent=1 // pred_check
      _
    $region47: #{tpu_custom_call.1} parent=1 // pred_check_branch
      %139 = sbr.rel (0) target = $region49
    $region48: #{tpu_custom_call.1} parent=1 // pred_region
      %s141 = ssub.s32 16, 16
      %142 = vsyncadd [#allocation23], %s141
      %s144 = sshll.u32 [#allocation22], 4
      %s145 = int_to_ptr.vmem [resolvable:$true] %s144
      %147 = dma.hbm_to_vmem [thread:$0]  %s11, 16, %s145, [#allocation23]
    $region49: #{tpu_custom_call.1} parent=1 // pred_fallthru
      _
    // Predicated region
    $region50: #{tpu_custom_call.1} parent=1 // pred_check
      _
    $region51: #{tpu_custom_call.1} parent=1 // pred_check_branch
      %149 = sbr.rel (0) target = $region53
    $region52: #{tpu_custom_call.1} parent=1 // pred_region
      %150 = dma.done [#allocation6], 128
    $region53: #{tpu_custom_call.1} parent=1 // pred_fallthru
      _
    // Predicated region
    $region54: #{tpu_custom_call.1} parent=1 // pred_check
      _
    $region55: #{tpu_custom_call.1} parent=1 // pred_check_branch
      %152 = sbr.rel (0) target = $region57
    $region56: #{tpu_custom_call.1} parent=1 // pred_region
      %153 = dma.done [#allocation8], 1024
    $region57: #{tpu_custom_call.1} parent=1 // pred_fallthru
      _
    // Predicated region
    $region58: #{tpu_custom_call.1} parent=1 // pred_check
      _
    $region59: #{tpu_custom_call.1} parent=1 // pred_check_branch
      %155 = sbr.rel (0) target = $region61
    $region60: #{tpu_custom_call.1} parent=1 // pred_region
      %156 = dma.done [#allocation8], 64
    $region61: #{tpu_custom_call.1} parent=1 // pred_fallthru
      _
    // Predicated region
    $region62: #{tpu_custom_call.1} parent=1 // pred_check
      _
    $region63: #{tpu_custom_call.1} parent=1 // pred_check_branch
      %158 = sbr.rel (0) target = $region65
    $region64: #{tpu_custom_call.1} parent=1 // pred_region
      %159 = dma.done [#allocation11], 64
    $region65: #{tpu_custom_call.1} parent=1 // pred_fallthru
      _
    // Predicated region
    $region66: #{tpu_custom_call.1} parent=1 // pred_check
      _
    $region67: #{tpu_custom_call.1} parent=1 // pred_check_branch
      %161 = sbr.rel (0) target = $region69
    $region68: #{tpu_custom_call.1} parent=1 // pred_region
      %162 = dma.done [#allocation11], 128
    $region69: #{tpu_custom_call.1} parent=1 // pred_fallthru
      _
    // Predicated region
    $region70: #{tpu_custom_call.1} parent=1 // pred_check
      _
    $region71: #{tpu_custom_call.1} parent=1 // pred_check_branch
      %164 = sbr.rel (0) target = $region73
    $region72: #{tpu_custom_call.1} parent=1 // pred_region
      %165 = dma.done [#allocation14], 128
    $region73: #{tpu_custom_call.1} parent=1 // pred_fallthru
      _
    // Predicated region
    $region74: #{tpu_custom_call.1} parent=1 // pred_check
      _
    $region75: #{tpu_custom_call.1} parent=1 // pred_check_branch
      %167 = sbr.rel (0) target = $region77
    $region76: #{tpu_custom_call.1} parent=1 // pred_region
      %168 = dma.done [#allocation14], 128
    $region77: #{tpu_custom_call.1} parent=1 // pred_fallthru
      _
    // Predicated region
    $region78: #{tpu_custom_call.1} parent=1 // pred_check
      _
    $region79: #{tpu_custom_call.1} parent=1 // pred_check_branch
      %170 = sbr.rel (0) target = $region81
    $region80: #{tpu_custom_call.1} parent=1 // pred_region
      %171 = dma.done [#allocation17], 256
    $region81: #{tpu_custom_call.1} parent=1 // pred_fallthru
      _
    // Predicated region
    $region82: #{tpu_custom_call.1} parent=1 // pred_check
      _
    $region83: #{tpu_custom_call.1} parent=1 // pred_check_branch
      %173 = sbr.rel (0) target = $region85
    $region84: #{tpu_custom_call.1} parent=1 // pred_region
      %174 = dma.done [#allocation17], 256
    $region85: #{tpu_custom_call.1} parent=1 // pred_fallthru
      _
    // Predicated region
    $region86: #{tpu_custom_call.1} parent=1 // pred_check
      _
    $region87: #{tpu_custom_call.1} parent=1 // pred_check_branch
      %176 = sbr.rel (0) target = $region89
    $region88: #{tpu_custom_call.1} parent=1 // pred_region
      %177 = dma.done [#allocation20], 256
    $region89: #{tpu_custom_call.1} parent=1 // pred_fallthru
      _
    // Predicated region
    $region90: #{tpu_custom_call.1} parent=1 // pred_check
      _
    $region91: #{tpu_custom_call.1} parent=1 // pred_check_branch
      %179 = sbr.rel (0) target = $region93
    $region92: #{tpu_custom_call.1} parent=1 // pred_region
      %180 = dma.done [#allocation20], 512
    $region93: #{tpu_custom_call.1} parent=1 // pred_fallthru
      _
    // Predicated region
    $region94: #{tpu_custom_call.1} parent=1 // pred_check
      _
    $region95: #{tpu_custom_call.1} parent=1 // pred_check_branch
      %182 = sbr.rel (0) target = $region97
    $region96: #{tpu_custom_call.1} parent=1 // pred_region
      %183 = dma.done [#allocation23], 16
    $region97: #{tpu_custom_call.1} parent=1 // pred_fallthru
      _
    // Predicated region
    $region98: #{tpu_custom_call.1} parent=1 // pred_check
      _
    $region99: #{tpu_custom_call.1} parent=1 // pred_check_branch
      %186 = sbr.rel target = $region101
    $region100: #{tpu_custom_call.1} parent=1 // pred_region
      %187 = sst [smem:[#allocation26]] [#allocation25]
      %188 = sst [smem:[#allocation27]] [#allocation24]
    $region101: #{tpu_custom_call.1} parent=1 // pred_fallthru
      _
    %190 = shalt.err (0)
    %s192 = sshll.u32 [#allocation2], 4
    %s193 = int_to_ptr.vmem [resolvable:$true] %s192
    %195 = dma.hbm_to_vmem [thread:$0]  %s12, 16384, %s193, [#allocation4]
    %s196 = scalar_lea.sflag [#allocation4], 1
    // Predicated region
    $region102: #{tpu_custom_call.1} parent=1 // pred_check
      _
    $region103: #{tpu_custom_call.1} parent=1 // pred_check_branch
      %198 = sbr.rel target = $region105
    $region104: #{tpu_custom_call.1} parent=1 // pred_region
      %199 = sst [smem:[#allocation26]] [#allocation29]
      %200 = sst [smem:[#allocation27]] [#allocation28]
    $region105: #{tpu_custom_call.1} parent=1 // pred_fallthru
      _
    %202 = shalt.err (0)
    %s204 = sshll.u32 [#allocation3], 4
    %s205 = int_to_ptr.vmem [resolvable:$true] %s204
    %207 = dma.hbm_to_vmem [thread:$0]  %s13, 65536, %s205, %s196
    %v208 = vld [vmem:[#allocation5] sm:$0xff]
    %v209 = vld [vmem:[#allocation7] sm:$0xff]
    %v210 = vld [vmem:[#allocation7 + $0x8] sm:$0xff]
    %v211 = vld [vmem:[#allocation7 + $0x10] sm:$0xff]
    %v212 = vld [vmem:[#allocation7 + $0x18] sm:$0xff]
    %v213 = vld [vmem:[#allocation7 + $0x20] sm:$0x1f]
    %v214 = vld [vmem:[#allocation7 + $0x28] sm:$0x1f]
    %v215 = vld [vmem:[#allocation7 + $0x30] sm:$0x1f]
    %v216 = vld [vmem:[#allocation7 + $0x38] sm:$0x1f]
    %vm217 = vcmask 105472
    %v219 = vsel %vm217, %v208, 0
    %vm221 = vcmask 1044480
    %v223 = vsel %vm221, %v213, 0
    %v226 = vsel %vm221, %v214, 0
    %v229 = vsel %vm221, %v215, 0
    %v232 = vsel %vm221, %v216, 0
    %234 = vmatprep.subr.mxu0 %v210
    %235 = vmatpush1.msra.mxu0 %v209
    %236 = vmatprep.subr.mxu0 %v226
    %237 = vmatpush1.msra.mxu0 %v223
    %238 = vmatprep.subr.mxu0 0.0
    %239 = vmatpush1.msra.mxu0 0.0
    %240 = vmatprep.subr.mxu0 0.0
    %241 = vmatpush1.msra.mxu0 0.0
    %242 = vmatprep.subr.mxu0 0.0
    %243 = vmatpush1.msra.mxu0 0.0
    %244 = vmatprep.subr.mxu0 0.0
    %245 = vmatpush1.msra.mxu0 0.0
    %246 = vmatprep.subr.mxu0 0.0
    %247 = vmatpush1.msra.mxu0 0.0
    %248 = vmatprep.subr.mxu0 0.0
    %249 = vmatpush1.msra.mxu0 0.0
    %250 = vmatprep.subr.mxu0 0.0
    %251 = vmatpush1.msra.mxu0 0.0
    %252 = vmatprep.subr.mxu0 0.0
    %253 = vmatpush1.msra.mxu0 0.0
    %254 = vmatprep.subr.mxu0 0.0
    %255 = vmatpush1.msra.mxu0 0.0
    %256 = vmatprep.subr.mxu0 0.0
    %257 = vmatpush1.msra.mxu0 0.0
    %258 = vmatprep.subr.mxu0 0.0
    %259 = vmatpush1.msra.mxu0 0.0
    %260 = vmatprep.subr.mxu0 0.0
    %261 = vmatpush1.msra.mxu0 0.0
    %262 = vmatprep.subr.mxu0 0.0
    %263 = vmatpush1.msra.mxu0 0.0
    %264 = vmatprep.subr.mxu0 0.0
    %265 = vmatpush1.msra.mxu0 0.0
    %266 = vmatprep.subr.mxu0 0.0
    %267 = vmatpush1.msra.mxu0 0.0
    %268 = vmatprep.subr.mxu0 0.0
    %269 = vmatpush1.msra.mxu0 0.0
    %270 = vmatprep.subr.mxu0 0.0
    %271 = vmatpush1.msra.mxu0 0.0
    %272 = vmatprep.subr.mxu0 0.0
    %273 = vmatpush1.msra.mxu0 0.0
    %274 = vmatprep.subr.mxu0 0.0
    %275 = vmatpush1.msra.mxu0 0.0
    %276 = vmatprep.subr.mxu0 0.0
    %277 = vmatpush1.msra.mxu0 0.0
    %278 = vmatprep.subr.mxu0 0.0
    %279 = vmatpush1.msra.mxu0 0.0
    %280 = vmatprep.subr.mxu0 0.0
    %281 = vmatpush1.msra.mxu0 0.0
    %282 = vmatprep.subr.mxu0 0.0
    %283 = vmatpush1.msra.mxu0 0.0
    %284 = vmatprep.subr.mxu0 0.0
    %285 = vmatpush1.msra.mxu0 0.0
    %286 = vmatprep.subr.mxu0 0.0
    %287 = vmatpush1.msra.mxu0 0.0
    %288 = vmatprep.subr.mxu0 0.0
    %289 = vmatpush1.msra.mxu0 0.0
    %290 = vmatprep.subr.mxu0 0.0
    %291 = vmatpush1.msra.mxu0 0.0
    %292 = vmatprep.subr.mxu0 0.0
    %293 = vmatpush1.msra.mxu0 0.0
    %294 = vmatprep.subr.mxu0 0.0
    %295 = vmatpush1.msra.mxu0 0.0
    %296 = vmatprep.subr.mxu0 0.0
    %297 = vmatpush1.msra.mxu0 0.0
    %298 = vmatprep.mubr.f32.mxu0 0.0
    %299 = vmatmul.mubr.f32.gmra.mrb[0].mxu0 %v219
    %v300 = vpop.f32.mrb[0].mxu0
    %v301 = vadd.f32 0.0, %v300
    %v302 = vpop.f32.mrb[0].mxu0
    %v303 = vadd.f32 0.0, %v302
    %304 = vdwg.mxu0
    %305 = vmatprep.subr.mxu0 %v212
    %306 = vmatpush1.msra.mxu0 %v211
    %307 = vmatprep.subr.mxu0 %v232
    %308 = vmatpush1.msra.mxu0 %v229
    %309 = vmatprep.subr.mxu0 0.0
    %310 = vmatpush1.msra.mxu0 0.0
    %311 = vmatprep.subr.mxu0 0.0
    %312 = vmatpush1.msra.mxu0 0.0
    %313 = vmatprep.subr.mxu0 0.0
    %314 = vmatpush1.msra.mxu0 0.0
    %315 = vmatprep.subr.mxu0 0.0
    %316 = vmatpush1.msra.mxu0 0.0
    %317 = vmatprep.subr.mxu0 0.0
    %318 = vmatpush1.msra.mxu0 0.0
    %319 = vmatprep.subr.mxu0 0.0
    %320 = vmatpush1.msra.mxu0 0.0
    %321 = vmatprep.subr.mxu0 0.0
    %322 = vmatpush1.msra.mxu0 0.0
    %323 = vmatprep.subr.mxu0 0.0
    %324 = vmatpush1.msra.mxu0 0.0
    %325 = vmatprep.subr.mxu0 0.0
    %326 = vmatpush1.msra.mxu0 0.0
    %327 = vmatprep.subr.mxu0 0.0
    %328 = vmatpush1.msra.mxu0 0.0
    %329 = vmatprep.subr.mxu0 0.0
    %330 = vmatpush1.msra.mxu0 0.0
    %331 = vmatprep.subr.mxu0 0.0
    %332 = vmatpush1.msra.mxu0 0.0
    %333 = vmatprep.subr.mxu0 0.0
    %334 = vmatpush1.msra.mxu0 0.0
    %335 = vmatprep.subr.mxu0 0.0
    %336 = vmatpush1.msra.mxu0 0.0
    %337 = vmatprep.subr.mxu0 0.0
    %338 = vmatpush1.msra.mxu0 0.0
    %339 = vmatprep.subr.mxu0 0.0
    %340 = vmatpush1.msra.mxu0 0.0
    %341 = vmatprep.subr.mxu0 0.0
    %342 = vmatpush1.msra.mxu0 0.0
    %343 = vmatprep.subr.mxu0 0.0
    %344 = vmatpush1.msra.mxu0 0.0
    %345 = vmatprep.subr.mxu0 0.0
    %346 = vmatpush1.msra.mxu0 0.0
    %347 = vmatprep.subr.mxu0 0.0
    %348 = vmatpush1.msra.mxu0 0.0
    %349 = vmatprep.subr.mxu0 0.0
    %350 = vmatpush1.msra.mxu0 0.0
    %351 = vmatprep.subr.mxu0 0.0
    %352 = vmatpush1.msra.mxu0 0.0
    %353 = vmatprep.subr.mxu0 0.0
    %354 = vmatpush1.msra.mxu0 0.0
    %355 = vmatprep.subr.mxu0 0.0
    %356 = vmatpush1.msra.mxu0 0.0
    %357 = vmatprep.subr.mxu0 0.0
    %358 = vmatpush1.msra.mxu0 0.0
    %359 = vmatprep.subr.mxu0 0.0
    %360 = vmatpush1.msra.mxu0 0.0
    %361 = vmatprep.subr.mxu0 0.0
    %362 = vmatpush1.msra.mxu0 0.0
    %363 = vmatprep.subr.mxu0 0.0
    %364 = vmatpush1.msra.mxu0 0.0
    %365 = vmatprep.subr.mxu0 0.0
    %366 = vmatpush1.msra.mxu0 0.0
    %367 = vmatprep.subr.mxu0 0.0
    %368 = vmatpush1.msra.mxu0 0.0
    %369 = vmatprep.mubr.f32.mxu0 0.0
    %370 = vmatmul.mubr.f32.gmra.mrb[0].mxu0 %v219
    %v371 = vpop.f32.mrb[0].mxu0
    %v372 = vadd.f32 0.0, %v371
    %v373 = vpop.f32.mrb[0].mxu0
    %v374 = vadd.f32 0.0, %v373
    %375 = vdwg.mxu0
    %v376 = vld [vmem:[#allocation9] sm:$0xf]
    %v377 = vld [vmem:[#allocation10] sm:$0xf]
    %v378 = vrot.slane %v301, 4
    %v379 = vadd.f32 %v301, %v378
    %v380 = vrot.slane %v379, 2
    %v381 = vadd.f32 %v379, %v380
    %v382 = vrot.slane %v381, 1
    %v383 = vadd.f32 %v381, %v382
    %v384 = vrot.slane %v303, 4
    %v385 = vadd.f32 %v303, %v384
    %v386 = vrot.slane %v385, 2
    %v387 = vadd.f32 %v385, %v386
    %v388 = vrot.slane %v387, 1
    %v389 = vadd.f32 %v387, %v388
    %v390 = vrot.slane %v372, 4
    %v391 = vadd.f32 %v372, %v390
    %v392 = vrot.slane %v391, 2
    %v393 = vadd.f32 %v391, %v392
    %v394 = vrot.slane %v393, 1
    %v395 = vadd.f32 %v393, %v394
    %v396 = vrot.slane %v374, 4
    %v397 = vadd.f32 %v374, %v396
    %v398 = vrot.slane %v397, 2
    %v399 = vadd.f32 %v397, %v398
    %v400 = vrot.slane %v399, 1
    %v401 = vadd.f32 %v399, %v400
    %v402 = vrcp.pop 8.0
    %v403 = vmul.f32 %v383, %v402
    %v404 = vmul.f32 %v389, %v402
    %v405 = vmul.f32 %v395, %v402
    %v406 = vmul.f32 %v401, %v402
    %v407 = vsub.f32 %v301, %v403
    %v408 = vsub.f32 %v303, %v404
    %v409 = vsub.f32 %v372, %v405
    %v410 = vsub.f32 %v374, %v406
    %v411 = vmul.f32 %v407, %v407
    %v412 = vmul.f32 %v408, %v408
    %v413 = vmul.f32 %v409, %v409
    %v414 = vmul.f32 %v410, %v410
    %v415 = vrot.slane %v411, 4
    %v416 = vadd.f32 %v411, %v415
    %v417 = vrot.slane %v416, 2
    %v418 = vadd.f32 %v416, %v417
    %v419 = vrot.slane %v418, 1
    %v420 = vadd.f32 %v418, %v419
    %v421 = vrot.slane %v412, 4
    %v422 = vadd.f32 %v412, %v421
    %v423 = vrot.slane %v422, 2
    %v424 = vadd.f32 %v422, %v423
    %v425 = vrot.slane %v424, 1
    %v426 = vadd.f32 %v424, %v425
    %v427 = vrot.slane %v413, 4
    %v428 = vadd.f32 %v413, %v427
    %v429 = vrot.slane %v428, 2
    %v430 = vadd.f32 %v428, %v429
    %v431 = vrot.slane %v430, 1
    %v432 = vadd.f32 %v430, %v431
    %v433 = vrot.slane %v414, 4
    %v434 = vadd.f32 %v414, %v433
    %v435 = vrot.slane %v434, 2
    %v436 = vadd.f32 %v434, %v435
    %v437 = vrot.slane %v436, 1
    %v438 = vadd.f32 %v436, %v437
    %v439 = vmul.f32 %v420, %v402
    %v440 = vmul.f32 %v426, %v402
    %v441 = vmul.f32 %v432, %v402
    %v442 = vmul.f32 %v438, %v402
    %v443 = vadd.f32 %v439, 1e-05
    %v444 = vadd.f32 %v440, 1e-05
    %v445 = vadd.f32 %v441, 1e-05
    %v446 = vadd.f32 %v442, 1e-05
    %v447 = vrsqrt.pop %v443
    %v448 = vrsqrt.pop %v444
    %v449 = vrsqrt.pop %v445
    %v450 = vrsqrt.pop %v446
    %v455 = vcombine.low %v447, %v448
    %v456 = vcombine.low %v449, %v450
    %v458 = vunpack.c.l.s4 1966171168
    %v459 = vunpack.c.0.s8 %v458
    %v460 = vlaneseq
    %v461 = vshrl.u32 %v460, 7
    %v462 = vsub.s32 %v459, %v461
    %v463 = vrot.slane %v455, %v462
    %v465 = vunpack.c.l.s4 1966171168
    %v466 = vunpack.c.0.s8 %v465
    %v467 = vlaneseq
    %v468 = vshrl.u32 %v467, 7
    %v469 = vsub.s32 %v466, %v468
    %v470 = vrot.slane %v456, %v469
    %v471 = vcombine.low %v463, %v470
    %v473 = vunpack.c.l.s4 1966171168
    %v474 = vunpack.c.0.s8 %v473
    %v475 = vlaneseq
    %v476 = vshrl.u32 %v475, 7
    %v477 = vsub.s32 %v474, %v476
    %v478 = vrot.slane %v471, %v477
    %v480 = vmul.f32 %v376, %v478
    %v482 = vlaneseq
    %v483 = vshrl.u32 %v482, 7
    %v484 = vsub.s32 0, %v483
    %v485 = vrot.slane %v480, %v484
    %v486 = vlaneseq
    %v487 = vshrl.u32 %v486, 7
    %v488 = vsub.s32 1, %v487
    %v489 = vrot.slane %v480, %v488
    %v490 = vlaneseq
    %v491 = vshrl.u32 %v490, 7
    %v492 = vsub.s32 2, %v491
    %v493 = vrot.slane %v480, %v492
    %v494 = vlaneseq
    %v495 = vshrl.u32 %v494, 7
    %v496 = vsub.s32 3, %v495
    %v497 = vrot.slane %v480, %v496
    %v502 = vmul.f32 %v407, %v485
    %v503 = vmul.f32 %v408, %v489
    %v504 = vmul.f32 %v409, %v493
    %v505 = vmul.f32 %v410, %v497
    %v507 = vlaneseq
    %v508 = vshrl.u32 %v507, 7
    %v509 = vsub.s32 0, %v508
    %v510 = vrot.slane %v377, %v509
    %v511 = vlaneseq
    %v512 = vshrl.u32 %v511, 7
    %v513 = vsub.s32 1, %v512
    %v514 = vrot.slane %v377, %v513
    %v515 = vlaneseq
    %v516 = vshrl.u32 %v515, 7
    %v517 = vsub.s32 2, %v516
    %v518 = vrot.slane %v377, %v517
    %v519 = vlaneseq
    %v520 = vshrl.u32 %v519, 7
    %v521 = vsub.s32 3, %v520
    %v522 = vrot.slane %v377, %v521
    %v527 = vadd.f32 %v502, %v510
    %v528 = vadd.f32 %v503, %v514
    %v529 = vadd.f32 %v504, %v518
    %v530 = vadd.f32 %v505, %v522
    %v531 = vmax.f32 %v527, 0.0
    %v532 = vmax.f32 %v528, 0.0
    %v533 = vmax.f32 %v529, 0.0
    %v534 = vmax.f32 %v530, 0.0
    %s535 = smul.u32 2, 64
    %s536 = smul.u32 %s535, 8
    %s537 = sshll.u32 %s536, 4
    %538 = dma.done [#allocation4], %s537
    %v539 = vpack.c.bf16 %v531, %v531
    %v540 = vpack.c.bf16 %v532, %v532
    %v541 = vpack.c.bf16 %v533, %v533
    %v542 = vpack.c.bf16 %v534, %v534
    %v543 = vld [vmem:[#allocation2] sm:$0xff]
    %v544 = vld [vmem:[#allocation2 + $0x8] sm:$0xff]
    %v545 = vld [vmem:[#allocation2 + $0x10] sm:$0xff]
    %v546 = vld [vmem:[#allocation2 + $0x18] sm:$0xff]
    %v547 = vld [vmem:[#allocation2 + $0x20] sm:$0xff]
    %v548 = vld [vmem:[#allocation2 + $0x28] sm:$0xff]
    %v549 = vld [vmem:[#allocation2 + $0x30] sm:$0xff]
    %v550 = vld [vmem:[#allocation2 + $0x38] sm:$0xff]
    %v551 = vld [vmem:[#allocation2 + $0x40] sm:$0xff]
    %v552 = vld [vmem:[#allocation2 + $0x48] sm:$0xff]
    %v553 = vld [vmem:[#allocation2 + $0x50] sm:$0xff]
    %v554 = vld [vmem:[#allocation2 + $0x58] sm:$0xff]
    %v555 = vld [vmem:[#allocation2 + $0x60] sm:$0xff]
    %v556 = vld [vmem:[#allocation2 + $0x68] sm:$0xff]
    %v557 = vld [vmem:[#allocation2 + $0x70] sm:$0xff]
    %v558 = vld [vmem:[#allocation2 + $0x78] sm:$0xff]
    %v559 = vld [vmem:[#allocation2 + $0x80] sm:$0xff]
    %v560 = vld [vmem:[#allocation2 + $0x88] sm:$0xff]
    %v561 = vld [vmem:[#allocation2 + $0x90] sm:$0xff]
    %v562 = vld [vmem:[#allocation2 + $0x98] sm:$0xff]
    %v563 = vld [vmem:[#allocation2 + $0xa0] sm:$0xff]
    %v564 = vld [vmem:[#allocation2 + $0xa8] sm:$0xff]
    %v565 = vld [vmem:[#allocation2 + $0xb0] sm:$0xff]
    %v566 = vld [vmem:[#allocation2 + $0xb8] sm:$0xff]
    %v567 = vld [vmem:[#allocation2 + $0xc0] sm:$0xff]
    %v568 = vld [vmem:[#allocation2 + $0xc8] sm:$0xff]
    %v569 = vld [vmem:[#allocation2 + $0xd0] sm:$0xff]
    %v570 = vld [vmem:[#allocation2 + $0xd8] sm:$0xff]
    %v571 = vld [vmem:[#allocation2 + $0xe0] sm:$0xff]
    %v572 = vld [vmem:[#allocation2 + $0xe8] sm:$0xff]
    %v573 = vld [vmem:[#allocation2 + $0xf0] sm:$0xff]
    %v574 = vld [vmem:[#allocation2 + $0xf8] sm:$0xff]
    %v575 = vld [vmem:[#allocation2 + $0x100] sm:$0xff]
    %v576 = vld [vmem:[#allocation2 + $0x108] sm:$0xff]
    %v577 = vld [vmem:[#allocation2 + $0x110] sm:$0xff]
    %v578 = vld [vmem:[#allocation2 + $0x118] sm:$0xff]
    %v579 = vld [vmem:[#allocation2 + $0x120] sm:$0xff]
    %v580 = vld [vmem:[#allocation2 + $0x128] sm:$0xff]
    %v581 = vld [vmem:[#allocation2 + $0x130] sm:$0xff]
    %v582 = vld [vmem:[#allocation2 + $0x138] sm:$0xff]
    %v583 = vld [vmem:[#allocation2 + $0x140] sm:$0xff]
    %v584 = vld [vmem:[#allocation2 + $0x148] sm:$0xff]
    %v585 = vld [vmem:[#allocation2 + $0x150] sm:$0xff]
    %v586 = vld [vmem:[#allocation2 + $0x158] sm:$0xff]
    %v587 = vld [vmem:[#allocation2 + $0x160] sm:$0xff]
    %v588 = vld [vmem:[#allocation2 + $0x168] sm:$0xff]
    %v589 = vld [vmem:[#allocation2 + $0x170] sm:$0xff]
    %v590 = vld [vmem:[#allocation2 + $0x178] sm:$0xff]
    %v591 = vld [vmem:[#allocation2 + $0x180] sm:$0xff]
    %v592 = vld [vmem:[#allocation2 + $0x188] sm:$0xff]
    %v593 = vld [vmem:[#allocation2 + $0x190] sm:$0xff]
    %v594 = vld [vmem:[#allocation2 + $0x198] sm:$0xff]
    %v595 = vld [vmem:[#allocation2 + $0x1a0] sm:$0xff]
    %v596 = vld [vmem:[#allocation2 + $0x1a8] sm:$0xff]
    %v597 = vld [vmem:[#allocation2 + $0x1b0] sm:$0xff]
    %v598 = vld [vmem:[#allocation2 + $0x1b8] sm:$0xff]
    %v599 = vld [vmem:[#allocation2 + $0x1c0] sm:$0xff]
    %v600 = vld [vmem:[#allocation2 + $0x1c8] sm:$0xff]
    %v601 = vld [vmem:[#allocation2 + $0x1d0] sm:$0xff]
    %v602 = vld [vmem:[#allocation2 + $0x1d8] sm:$0xff]
    %v603 = vld [vmem:[#allocation2 + $0x1e0] sm:$0xff]
    %v604 = vld [vmem:[#allocation2 + $0x1e8] sm:$0xff]
    %v605 = vld [vmem:[#allocation2 + $0x1f0] sm:$0xff]
    %v606 = vld [vmem:[#allocation2 + $0x1f8] sm:$0xff]
    %v607 = vld [vmem:[#allocation2 + $0x200] sm:$0xff]
    %v608 = vld [vmem:[#allocation2 + $0x208] sm:$0xff]
    %v609 = vld [vmem:[#allocation2 + $0x210] sm:$0xff]
    %v610 = vld [vmem:[#allocation2 + $0x218] sm:$0xff]
    %v611 = vld [vmem:[#allocation2 + $0x220] sm:$0xff]
    %v612 = vld [vmem:[#allocation2 + $0x228] sm:$0xff]
    %v613 = vld [vmem:[#allocation2 + $0x230] sm:$0xff]
    %v614 = vld [vmem:[#allocation2 + $0x238] sm:$0xff]
    %v615 = vld [vmem:[#allocation2 + $0x240] sm:$0xff]
    %v616 = vld [vmem:[#allocation2 + $0x248] sm:$0xff]
    %v617 = vld [vmem:[#allocation2 + $0x250] sm:$0xff]
    %v618 = vld [vmem:[#allocation2 + $0x258] sm:$0xff]
    %v619 = vld [vmem:[#allocation2 + $0x260] sm:$0xff]
    %v620 = vld [vmem:[#allocation2 + $0x268] sm:$0xff]
    %v621 = vld [vmem:[#allocation2 + $0x270] sm:$0xff]
    %v622 = vld [vmem:[#allocation2 + $0x278] sm:$0xff]
    %v623 = vld [vmem:[#allocation2 + $0x280] sm:$0xff]
    %v624 = vld [vmem:[#allocation2 + $0x288] sm:$0xff]
    %v625 = vld [vmem:[#allocation2 + $0x290] sm:$0xff]
    %v626 = vld [vmem:[#allocation2 + $0x298] sm:$0xff]
    %v627 = vld [vmem:[#allocation2 + $0x2a0] sm:$0xff]
    %v628 = vld [vmem:[#allocation2 + $0x2a8] sm:$0xff]
    %v629 = vld [vmem:[#allocation2 + $0x2b0] sm:$0xff]
    %v630 = vld [vmem:[#allocation2 + $0x2b8] sm:$0xff]
    %v631 = vld [vmem:[#allocation2 + $0x2c0] sm:$0xff]
    %v632 = vld [vmem:[#allocation2 + $0x2c8] sm:$0xff]
    %v633 = vld [vmem:[#allocation2 + $0x2d0] sm:$0xff]
    %v634 = vld [vmem:[#allocation2 + $0x2d8] sm:$0xff]
    %v635 = vld [vmem:[#allocation2 + $0x2e0] sm:$0xff]
    %v636 = vld [vmem:[#allocation2 + $0x2e8] sm:$0xff]
    %v637 = vld [vmem:[#allocation2 + $0x2f0] sm:$0xff]
    %v638 = vld [vmem:[#allocation2 + $0x2f8] sm:$0xff]
    %v639 = vld [vmem:[#allocation2 + $0x300] sm:$0xff]
    %v640 = vld [vmem:[#allocation2 + $0x308] sm:$0xff]
    %v641 = vld [vmem:[#allocation2 + $0x310] sm:$0xff]
    %v642 = vld [vmem:[#allocation2 + $0x318] sm:$0xff]
    %v643 = vld [vmem:[#allocation2 + $0x320] sm:$0xff]
    %v644 = vld [vmem:[#allocation2 + $0x328] sm:$0xff]
    %v645 = vld [vmem:[#allocation2 + $0x330] sm:$0xff]
    %v646 = vld [vmem:[#allocation2 + $0x338] sm:$0xff]
    %v647 = vld [vmem:[#allocation2 + $0x340] sm:$0xff]
    %v648 = vld [vmem:[#allocation2 + $0x348] sm:$0xff]
    %v649 = vld [vmem:[#allocation2 + $0x350] sm:$0xff]
    %v650 = vld [vmem:[#allocation2 + $0x358] sm:$0xff]
    %v651 = vld [vmem:[#allocation2 + $0x360] sm:$0xff]
    %v652 = vld [vmem:[#allocation2 + $0x368] sm:$0xff]
    %v653 = vld [vmem:[#allocation2 + $0x370] sm:$0xff]
    %v654 = vld [vmem:[#allocation2 + $0x378] sm:$0xff]
    %v655 = vld [vmem:[#allocation2 + $0x380] sm:$0xff]
    %v656 = vld [vmem:[#allocation2 + $0x388] sm:$0xff]
    %v657 = vld [vmem:[#allocation2 + $0x390] sm:$0xff]
    %v658 = vld [vmem:[#allocation2 + $0x398] sm:$0xff]
    %v659 = vld [vmem:[#allocation2 + $0x3a0] sm:$0xff]
    %v660 = vld [vmem:[#allocation2 + $0x3a8] sm:$0xff]
    %v661 = vld [vmem:[#allocation2 + $0x3b0] sm:$0xff]
    %v662 = vld [vmem:[#allocation2 + $0x3b8] sm:$0xff]
    %v663 = vld [vmem:[#allocation2 + $0x3c0] sm:$0xff]
    %v664 = vld [vmem:[#allocation2 + $0x3c8] sm:$0xff]
    %v665 = vld [vmem:[#allocation2 + $0x3d0] sm:$0xff]
    %v666 = vld [vmem:[#allocation2 + $0x3d8] sm:$0xff]
    %v667 = vld [vmem:[#allocation2 + $0x3e0] sm:$0xff]
    %v668 = vld [vmem:[#allocation2 + $0x3e8] sm:$0xff]
    %v669 = vld [vmem:[#allocation2 + $0x3f0] sm:$0xff]
    %v670 = vld [vmem:[#allocation2 + $0x3f8] sm:$0xff]
    %v671 = vunpack.c.l.s8.bf16 %v543
    %v672 = vunpack.c.l.s8.bf16 %v544
    %v673 = vunpack.c.l.s8.bf16 %v545
    %v674 = vunpack.c.l.s8.bf16 %v546
    %v675 = vunpack.c.l.s8.bf16 %v547
    %v676 = vunpack.c.l.s8.bf16 %v548
    %v677 = vunpack.c.l.s8.bf16 %v549
    %v678 = vunpack.c.l.s8.bf16 %v550
    %v679 = vunpack.c.h.s8.bf16 %v543
    %v680 = vunpack.c.h.s8.bf16 %v544
    %v681 = vunpack.c.h.s8.bf16 %v545
    %v682 = vunpack.c.h.s8.bf16 %v546
    %v683 = vunpack.c.h.s8.bf16 %v547
    %v684 = vunpack.c.h.s8.bf16 %v548
    %v685 = vunpack.c.h.s8.bf16 %v549
    %v686 = vunpack.c.h.s8.bf16 %v550
    %v687 = vunpack.c.l.s8.bf16 %v551
    %v688 = vunpack.c.l.s8.bf16 %v552
    %v689 = vunpack.c.l.s8.bf16 %v553
    %v690 = vunpack.c.l.s8.bf16 %v554
    %v691 = vunpack.c.l.s8.bf16 %v555
    %v692 = vunpack.c.l.s8.bf16 %v556
    %v693 = vunpack.c.l.s8.bf16 %v557
    %v694 = vunpack.c.l.s8.bf16 %v558
    %v695 = vunpack.c.h.s8.bf16 %v551
    %v696 = vunpack.c.h.s8.bf16 %v552
    %v697 = vunpack.c.h.s8.bf16 %v553
    %v698 = vunpack.c.h.s8.bf16 %v554
    %v699 = vunpack.c.h.s8.bf16 %v555
    %v700 = vunpack.c.h.s8.bf16 %v556
    %v701 = vunpack.c.h.s8.bf16 %v557
    %v702 = vunpack.c.h.s8.bf16 %v558
    %v703 = vunpack.c.l.s8.bf16 %v559
    %v704 = vunpack.c.l.s8.bf16 %v560
    %v705 = vunpack.c.l.s8.bf16 %v561
    %v706 = vunpack.c.l.s8.bf16 %v562
    %v707 = vunpack.c.l.s8.bf16 %v563
    %v708 = vunpack.c.l.s8.bf16 %v564
    %v709 = vunpack.c.l.s8.bf16 %v565
    %v710 = vunpack.c.l.s8.bf16 %v566
    %v711 = vunpack.c.h.s8.bf16 %v559
    %v712 = vunpack.c.h.s8.bf16 %v560
    %v713 = vunpack.c.h.s8.bf16 %v561
    %v714 = vunpack.c.h.s8.bf16 %v562
    %v715 = vunpack.c.h.s8.bf16 %v563
    %v716 = vunpack.c.h.s8.bf16 %v564
    %v717 = vunpack.c.h.s8.bf16 %v565
    %v718 = vunpack.c.h.s8.bf16 %v566
    %v719 = vunpack.c.l.s8.bf16 %v567
    %v720 = vunpack.c.l.s8.bf16 %v568
    %v721 = vunpack.c.l.s8.bf16 %v569
    %v722 = vunpack.c.l.s8.bf16 %v570
    %v723 = vunpack.c.l.s8.bf16 %v571
    %v724 = vunpack.c.l.s8.bf16 %v572
    %v725 = vunpack.c.l.s8.bf16 %v573
    %v726 = vunpack.c.l.s8.bf16 %v574
    %v727 = vunpack.c.h.s8.bf16 %v567
    %v728 = vunpack.c.h.s8.bf16 %v568
    %v729 = vunpack.c.h.s8.bf16 %v569
    %v730 = vunpack.c.h.s8.bf16 %v570
    %v731 = vunpack.c.h.s8.bf16 %v571
    %v732 = vunpack.c.h.s8.bf16 %v572
    %v733 = vunpack.c.h.s8.bf16 %v573
    %v734 = vunpack.c.h.s8.bf16 %v574
    %v735 = vunpack.c.l.s8.bf16 %v575
    %v736 = vunpack.c.l.s8.bf16 %v576
    %v737 = vunpack.c.l.s8.bf16 %v577
    %v738 = vunpack.c.l.s8.bf16 %v578
    %v739 = vunpack.c.l.s8.bf16 %v579
    %v740 = vunpack.c.l.s8.bf16 %v580
    %v741 = vunpack.c.l.s8.bf16 %v581
    %v742 = vunpack.c.l.s8.bf16 %v582
    %v743 = vunpack.c.h.s8.bf16 %v575
    %v744 = vunpack.c.h.s8.bf16 %v576
    %v745 = vunpack.c.h.s8.bf16 %v577
    %v746 = vunpack.c.h.s8.bf16 %v578
    %v747 = vunpack.c.h.s8.bf16 %v579
    %v748 = vunpack.c.h.s8.bf16 %v580
    %v749 = vunpack.c.h.s8.bf16 %v581
    %v750 = vunpack.c.h.s8.bf16 %v582
    %v751 = vunpack.c.l.s8.bf16 %v583
    %v752 = vunpack.c.l.s8.bf16 %v584
    %v753 = vunpack.c.l.s8.bf16 %v585
    %v754 = vunpack.c.l.s8.bf16 %v586
    %v755 = vunpack.c.l.s8.bf16 %v587
    %v756 = vunpack.c.l.s8.bf16 %v588
    %v757 = vunpack.c.l.s8.bf16 %v589
    %v758 = vunpack.c.l.s8.bf16 %v590
    %v759 = vunpack.c.h.s8.bf16 %v583
    %v760 = vunpack.c.h.s8.bf16 %v584
    %v761 = vunpack.c.h.s8.bf16 %v585
    %v762 = vunpack.c.h.s8.bf16 %v586
    %v763 = vunpack.c.h.s8.bf16 %v587
    %v764 = vunpack.c.h.s8.bf16 %v588
    %v765 = vunpack.c.h.s8.bf16 %v589
    %v766 = vunpack.c.h.s8.bf16 %v590
    %v767 = vunpack.c.l.s8.bf16 %v591
    %v768 = vunpack.c.l.s8.bf16 %v592
    %v769 = vunpack.c.l.s8.bf16 %v593
    %v770 = vunpack.c.l.s8.bf16 %v594
    %v771 = vunpack.c.l.s8.bf16 %v595
    %v772 = vunpack.c.l.s8.bf16 %v596
    %v773 = vunpack.c.l.s8.bf16 %v597
    %v774 = vunpack.c.l.s8.bf16 %v598
    %v775 = vunpack.c.h.s8.bf16 %v591
    %v776 = vunpack.c.h.s8.bf16 %v592
    %v777 = vunpack.c.h.s8.bf16 %v593
    %v778 = vunpack.c.h.s8.bf16 %v594
    %v779 = vunpack.c.h.s8.bf16 %v595
    %v780 = vunpack.c.h.s8.bf16 %v596
    %v781 = vunpack.c.h.s8.bf16 %v597
    %v782 = vunpack.c.h.s8.bf16 %v598
    %v783 = vunpack.c.l.s8.bf16 %v599
    %v784 = vunpack.c.l.s8.bf16 %v600
    %v785 = vunpack.c.l.s8.bf16 %v601
    %v786 = vunpack.c.l.s8.bf16 %v602
    %v787 = vunpack.c.l.s8.bf16 %v603
    %v788 = vunpack.c.l.s8.bf16 %v604
    %v789 = vunpack.c.l.s8.bf16 %v605
    %v790 = vunpack.c.l.s8.bf16 %v606
    %v791 = vunpack.c.h.s8.bf16 %v599
    %v792 = vunpack.c.h.s8.bf16 %v600
    %v793 = vunpack.c.h.s8.bf16 %v601
    %v794 = vunpack.c.h.s8.bf16 %v602
    %v795 = vunpack.c.h.s8.bf16 %v603
    %v796 = vunpack.c.h.s8.bf16 %v604
    %v797 = vunpack.c.h.s8.bf16 %v605
    %v798 = vunpack.c.h.s8.bf16 %v606
    %v799 = vunpack.c.l.s8.bf16 %v607
    %v800 = vunpack.c.l.s8.bf16 %v608
    %v801 = vunpack.c.l.s8.bf16 %v609
    %v802 = vunpack.c.l.s8.bf16 %v610
    %v803 = vunpack.c.l.s8.bf16 %v611
    %v804 = vunpack.c.l.s8.bf16 %v612
    %v805 = vunpack.c.l.s8.bf16 %v613
    %v806 = vunpack.c.l.s8.bf16 %v614
    %v807 = vunpack.c.h.s8.bf16 %v607
    %v808 = vunpack.c.h.s8.bf16 %v608
    %v809 = vunpack.c.h.s8.bf16 %v609
    %v810 = vunpack.c.h.s8.bf16 %v610
    %v811 = vunpack.c.h.s8.bf16 %v611
    %v812 = vunpack.c.h.s8.bf16 %v612
    %v813 = vunpack.c.h.s8.bf16 %v613
    %v814 = vunpack.c.h.s8.bf16 %v614
    %v815 = vunpack.c.l.s8.bf16 %v615
    %v816 = vunpack.c.l.s8.bf16 %v616
    %v817 = vunpack.c.l.s8.bf16 %v617
    %v818 = vunpack.c.l.s8.bf16 %v618
    %v819 = vunpack.c.l.s8.bf16 %v619
    %v820 = vunpack.c.l.s8.bf16 %v620
    %v821 = vunpack.c.l.s8.bf16 %v621
    %v822 = vunpack.c.l.s8.bf16 %v622
    %v823 = vunpack.c.h.s8.bf16 %v615
    %v824 = vunpack.c.h.s8.bf16 %v616
    %v825 = vunpack.c.h.s8.bf16 %v617
    %v826 = vunpack.c.h.s8.bf16 %v618
    %v827 = vunpack.c.h.s8.bf16 %v619
    %v828 = vunpack.c.h.s8.bf16 %v620
    %v829 = vunpack.c.h.s8.bf16 %v621
    %v830 = vunpack.c.h.s8.bf16 %v622
    %v831 = vunpack.c.l.s8.bf16 %v623
    %v832 = vunpack.c.l.s8.bf16 %v624
    %v833 = vunpack.c.l.s8.bf16 %v625
    %v834 = vunpack.c.l.s8.bf16 %v626
    %v835 = vunpack.c.l.s8.bf16 %v627
    %v836 = vunpack.c.l.s8.bf16 %v628
    %v837 = vunpack.c.l.s8.bf16 %v629
    %v838 = vunpack.c.l.s8.bf16 %v630
    %v839 = vunpack.c.h.s8.bf16 %v623
    %v840 = vunpack.c.h.s8.bf16 %v624
    %v841 = vunpack.c.h.s8.bf16 %v625
    %v842 = vunpack.c.h.s8.bf16 %v626
    %v843 = vunpack.c.h.s8.bf16 %v627
    %v844 = vunpack.c.h.s8.bf16 %v628
    %v845 = vunpack.c.h.s8.bf16 %v629
    %v846 = vunpack.c.h.s8.bf16 %v630
    %v847 = vunpack.c.l.s8.bf16 %v631
    %v848 = vunpack.c.l.s8.bf16 %v632
    %v849 = vunpack.c.l.s8.bf16 %v633
    %v850 = vunpack.c.l.s8.bf16 %v634
    %v851 = vunpack.c.l.s8.bf16 %v635
    %v852 = vunpack.c.l.s8.bf16 %v636
    %v853 = vunpack.c.l.s8.bf16 %v637
    %v854 = vunpack.c.l.s8.bf16 %v638
    %v855 = vunpack.c.h.s8.bf16 %v631
    %v856 = vunpack.c.h.s8.bf16 %v632
    %v857 = vunpack.c.h.s8.bf16 %v633
    %v858 = vunpack.c.h.s8.bf16 %v634
    %v859 = vunpack.c.h.s8.bf16 %v635
    %v860 = vunpack.c.h.s8.bf16 %v636
    %v861 = vunpack.c.h.s8.bf16 %v637
    %v862 = vunpack.c.h.s8.bf16 %v638
    %v863 = vunpack.c.l.s8.bf16 %v639
    %v864 = vunpack.c.l.s8.bf16 %v640
    %v865 = vunpack.c.l.s8.bf16 %v641
    %v866 = vunpack.c.l.s8.bf16 %v642
    %v867 = vunpack.c.l.s8.bf16 %v643
    %v868 = vunpack.c.l.s8.bf16 %v644
    %v869 = vunpack.c.l.s8.bf16 %v645
    %v870 = vunpack.c.l.s8.bf16 %v646
    %v871 = vunpack.c.h.s8.bf16 %v639
    %v872 = vunpack.c.h.s8.bf16 %v640
    %v873 = vunpack.c.h.s8.bf16 %v641
    %v874 = vunpack.c.h.s8.bf16 %v642
    %v875 = vunpack.c.h.s8.bf16 %v643
    %v876 = vunpack.c.h.s8.bf16 %v644
    %v877 = vunpack.c.h.s8.bf16 %v645
    %v878 = vunpack.c.h.s8.bf16 %v646
    %v879 = vunpack.c.l.s8.bf16 %v647
    %v880 = vunpack.c.l.s8.bf16 %v648
    %v881 = vunpack.c.l.s8.bf16 %v649
    %v882 = vunpack.c.l.s8.bf16 %v650
    %v883 = vunpack.c.l.s8.bf16 %v651
    %v884 = vunpack.c.l.s8.bf16 %v652
    %v885 = vunpack.c.l.s8.bf16 %v653
    %v886 = vunpack.c.l.s8.bf16 %v654
    %v887 = vunpack.c.h.s8.bf16 %v647
    %v888 = vunpack.c.h.s8.bf16 %v648
    %v889 = vunpack.c.h.s8.bf16 %v649
    %v890 = vunpack.c.h.s8.bf16 %v650
    %v891 = vunpack.c.h.s8.bf16 %v651
    %v892 = vunpack.c.h.s8.bf16 %v652
    %v893 = vunpack.c.h.s8.bf16 %v653
    %v894 = vunpack.c.h.s8.bf16 %v654
    %v895 = vunpack.c.l.s8.bf16 %v655
    %v896 = vunpack.c.l.s8.bf16 %v656
    %v897 = vunpack.c.l.s8.bf16 %v657
    %v898 = vunpack.c.l.s8.bf16 %v658
    %v899 = vunpack.c.l.s8.bf16 %v659
    %v900 = vunpack.c.l.s8.bf16 %v660
    %v901 = vunpack.c.l.s8.bf16 %v661
    %v902 = vunpack.c.l.s8.bf16 %v662
    %v903 = vunpack.c.h.s8.bf16 %v655
    %v904 = vunpack.c.h.s8.bf16 %v656
    %v905 = vunpack.c.h.s8.bf16 %v657
    %v906 = vunpack.c.h.s8.bf16 %v658
    %v907 = vunpack.c.h.s8.bf16 %v659
    %v908 = vunpack.c.h.s8.bf16 %v660
    %v909 = vunpack.c.h.s8.bf16 %v661
    %v910 = vunpack.c.h.s8.bf16 %v662
    %v911 = vunpack.c.l.s8.bf16 %v663
    %v912 = vunpack.c.l.s8.bf16 %v664
    %v913 = vunpack.c.l.s8.bf16 %v665
    %v914 = vunpack.c.l.s8.bf16 %v666
    %v915 = vunpack.c.l.s8.bf16 %v667
    %v916 = vunpack.c.l.s8.bf16 %v668
    %v917 = vunpack.c.l.s8.bf16 %v669
    %v918 = vunpack.c.l.s8.bf16 %v670
    %v919 = vunpack.c.h.s8.bf16 %v663
    %v920 = vunpack.c.h.s8.bf16 %v664
    %v921 = vunpack.c.h.s8.bf16 %v665
    %v922 = vunpack.c.h.s8.bf16 %v666
    %v923 = vunpack.c.h.s8.bf16 %v667
    %v924 = vunpack.c.h.s8.bf16 %v668
    %v925 = vunpack.c.h.s8.bf16 %v669
    %v926 = vunpack.c.h.s8.bf16 %v670
    %927 = vmatprep.subr.bf16.mxu0 %v672
    %928 = vmatpush1.bf16.msra.mxu0 %v671
    %929 = vmatprep.subr.bf16.mxu0 %v680
    %930 = vmatpush1.bf16.msra.mxu0 %v679
    %931 = vmatprep.subr.bf16.mxu0 %v688
    %932 = vmatpush1.bf16.msra.mxu0 %v687
    %933 = vmatprep.subr.bf16.mxu0 %v696
    %934 = vmatpush1.bf16.msra.mxu0 %v695
    %935 = vmatprep.subr.bf16.mxu0 %v704
    %936 = vmatpush1.bf16.msra.mxu0 %v703
    %937 = vmatprep.subr.bf16.mxu0 %v712
    %938 = vmatpush1.bf16.msra.mxu0 %v711
    %939 = vmatprep.subr.bf16.mxu0 %v720
    %940 = vmatpush1.bf16.msra.mxu0 %v719
    %941 = vmatprep.subr.bf16.mxu0 %v728
    %942 = vmatpush1.bf16.msra.mxu0 %v727
    %943 = vmatprep.subr.bf16.mxu0 %v736
    %944 = vmatpush1.bf16.msra.mxu0 %v735
    %945 = vmatprep.subr.bf16.mxu0 %v744
    %946 = vmatpush1.bf16.msra.mxu0 %v743
    %947 = vmatprep.subr.bf16.mxu0 %v752
    %948 = vmatpush1.bf16.msra.mxu0 %v751
    %949 = vmatprep.subr.bf16.mxu0 %v760
    %950 = vmatpush1.bf16.msra.mxu0 %v759
    %951 = vmatprep.subr.bf16.mxu0 %v768
    %952 = vmatpush1.bf16.msra.mxu0 %v767
    %953 = vmatprep.subr.bf16.mxu0 %v776
    %954 = vmatpush1.bf16.msra.mxu0 %v775
    %955 = vmatprep.subr.bf16.mxu0 %v784
    %956 = vmatpush1.bf16.msra.mxu0 %v783
    %957 = vmatprep.subr.bf16.mxu0 %v792
    %958 = vmatpush1.bf16.msra.mxu0 %v791
    %959 = vmatprep.mubr.bf16.mxu0 %v540
    %960 = vmatmul.mubr.bf16.gmra.mrb[0].mxu0 %v539
    %v961 = vpop.f32.mrb[0].mxu0
    %v962 = vadd.f32 0.0, %v961
    %v963 = vpop.f32.mrb[0].mxu0
    %v964 = vadd.f32 0.0, %v963
    %v965 = vpop.f32.mrb[0].mxu0
    %v966 = vpop.f32.mrb[0].mxu0
    %967 = vdwg.mxu0
    %968 = vmatprep.subr.bf16.mxu0 %v800
    %969 = vmatpush1.bf16.msra.mxu0 %v799
    %970 = vmatprep.subr.bf16.mxu0 %v808
    %971 = vmatpush1.bf16.msra.mxu0 %v807
    %972 = vmatprep.subr.bf16.mxu0 %v816
    %973 = vmatpush1.bf16.msra.mxu0 %v815
    %974 = vmatprep.subr.bf16.mxu0 %v824
    %975 = vmatpush1.bf16.msra.mxu0 %v823
    %976 = vmatprep.subr.bf16.mxu0 %v832
    %977 = vmatpush1.bf16.msra.mxu0 %v831
    %978 = vmatprep.subr.bf16.mxu0 %v840
    %979 = vmatpush1.bf16.msra.mxu0 %v839
    %980 = vmatprep.subr.bf16.mxu0 %v848
    %981 = vmatpush1.bf16.msra.mxu0 %v847
    %982 = vmatprep.subr.bf16.mxu0 %v856
    %983 = vmatpush1.bf16.msra.mxu0 %v855
    %984 = vmatprep.subr.bf16.mxu0 %v864
    %985 = vmatpush1.bf16.msra.mxu0 %v863
    %986 = vmatprep.subr.bf16.mxu0 %v872
    %987 = vmatpush1.bf16.msra.mxu0 %v871
    %988 = vmatprep.subr.bf16.mxu0 %v880
    %989 = vmatpush1.bf16.msra.mxu0 %v879
    %990 = vmatprep.subr.bf16.mxu0 %v888
    %991 = vmatpush1.bf16.msra.mxu0 %v887
    %992 = vmatprep.subr.bf16.mxu0 %v896
    %993 = vmatpush1.bf16.msra.mxu0 %v895
    %994 = vmatprep.subr.bf16.mxu0 %v904
    %995 = vmatpush1.bf16.msra.mxu0 %v903
    %996 = vmatprep.subr.bf16.mxu0 %v912
    %997 = vmatpush1.bf16.msra.mxu0 %v911
    %998 = vmatprep.subr.bf16.mxu0 %v920
    %999 = vmatpush1.bf16.msra.mxu0 %v919
    %1000 = vmatprep.mubr.bf16.mxu0 %v542
    %1001 = vmatmul.mubr.bf16.gmra.mrb[0].mxu0 %v541
    %v1002 = vpop.f32.mrb[0].mxu0
    %v1003 = vadd.f32 %v962, %v1002
    %v1004 = vpop.f32.mrb[0].mxu0
    %v1005 = vadd.f32 %v964, %v1004
    %v1006 = vpop.f32.mrb[0].mxu0
    %v1007 = vpop.f32.mrb[0].mxu0
    %1008 = vdwg.mxu0
    %1009 = vmatprep.subr.bf16.mxu0 %v674
    %1010 = vmatpush1.bf16.msra.mxu0 %v673
    %1011 = vmatprep.subr.bf16.mxu0 %v682
    %1012 = vmatpush1.bf16.msra.mxu0 %v681
    %1013 = vmatprep.subr.bf16.mxu0 %v690
    %1014 = vmatpush1.bf16.msra.mxu0 %v689
    %1015 = vmatprep.subr.bf16.mxu0 %v698
    %1016 = vmatpush1.bf16.msra.mxu0 %v697
    %1017 = vmatprep.subr.bf16.mxu0 %v706
    %1018 = vmatpush1.bf16.msra.mxu0 %v705
    %1019 = vmatprep.subr.bf16.mxu0 %v714
    %1020 = vmatpush1.bf16.msra.mxu0 %v713
    %1021 = vmatprep.subr.bf16.mxu0 %v722
    %1022 = vmatpush1.bf16.msra.mxu0 %v721
    %1023 = vmatprep.subr.bf16.mxu0 %v730
    %1024 = vmatpush1.bf16.msra.mxu0 %v729
    %1025 = vmatprep.subr.bf16.mxu0 %v738
    %1026 = vmatpush1.bf16.msra.mxu0 %v737
    %1027 = vmatprep.subr.bf16.mxu0 %v746
    %1028 = vmatpush1.bf16.msra.mxu0 %v745
    %1029 = vmatprep.subr.bf16.mxu0 %v754
    %1030 = vmatpush1.bf16.msra.mxu0 %v753
    %1031 = vmatprep.subr.bf16.mxu0 %v762
    %1032 = vmatpush1.bf16.msra.mxu0 %v761
    %1033 = vmatprep.subr.bf16.mxu0 %v770
    %1034 = vmatpush1.bf16.msra.mxu0 %v769
    %1035 = vmatprep.subr.bf16.mxu0 %v778
    %1036 = vmatpush1.bf16.msra.mxu0 %v777
    %1037 = vmatprep.subr.bf16.mxu0 %v786
    %1038 = vmatpush1.bf16.msra.mxu0 %v785
    %1039 = vmatprep.subr.bf16.mxu0 %v794
    %1040 = vmatpush1.bf16.msra.mxu0 %v793
    %1041 = vmatprep.mubr.bf16.mxu0 %v540
    %1042 = vmatmul.mubr.bf16.gmra.mrb[0].mxu0 %v539
    %v1043 = vpop.f32.mrb[0].mxu0
    %v1044 = vadd.f32 0.0, %v1043
    %v1045 = vpop.f32.mrb[0].mxu0
    %v1046 = vadd.f32 0.0, %v1045
    %v1047 = vpop.f32.mrb[0].mxu0
    %v1048 = vpop.f32.mrb[0].mxu0
    %1049 = vdwg.mxu0
    %1050 = vmatprep.subr.bf16.mxu0 %v802
    %1051 = vmatpush1.bf16.msra.mxu0 %v801
    %1052 = vmatprep.subr.bf16.mxu0 %v810
    %1053 = vmatpush1.bf16.msra.mxu0 %v809
    %1054 = vmatprep.subr.bf16.mxu0 %v818
    %1055 = vmatpush1.bf16.msra.mxu0 %v817
    %1056 = vmatprep.subr.bf16.mxu0 %v826
    %1057 = vmatpush1.bf16.msra.mxu0 %v825
    %1058 = vmatprep.subr.bf16.mxu0 %v834
    %1059 = vmatpush1.bf16.msra.mxu0 %v833
    %1060 = vmatprep.subr.bf16.mxu0 %v842
    %1061 = vmatpush1.bf16.msra.mxu0 %v841
    %1062 = vmatprep.subr.bf16.mxu0 %v850
    %1063 = vmatpush1.bf16.msra.mxu0 %v849
    %1064 = vmatprep.subr.bf16.mxu0 %v858
    %1065 = vmatpush1.bf16.msra.mxu0 %v857
    %1066 = vmatprep.subr.bf16.mxu0 %v866
    %1067 = vmatpush1.bf16.msra.mxu0 %v865
    %1068 = vmatprep.subr.bf16.mxu0 %v874
    %1069 = vmatpush1.bf16.msra.mxu0 %v873
    %1070 = vmatprep.subr.bf16.mxu0 %v882
    %1071 = vmatpush1.bf16.msra.mxu0 %v881
    %1072 = vmatprep.subr.bf16.mxu0 %v890
    %1073 = vmatpush1.bf16.msra.mxu0 %v889
    %1074 = vmatprep.subr.bf16.mxu0 %v898
    %1075 = vmatpush1.bf16.msra.mxu0 %v897
    %1076 = vmatprep.subr.bf16.mxu0 %v906
    %1077 = vmatpush1.bf16.msra.mxu0 %v905
    %1078 = vmatprep.subr.bf16.mxu0 %v914
    %1079 = vmatpush1.bf16.msra.mxu0 %v913
    %1080 = vmatprep.subr.bf16.mxu0 %v922
    %1081 = vmatpush1.bf16.msra.mxu0 %v921
    %1082 = vmatprep.mubr.bf16.mxu0 %v542
    %1083 = vmatmul.mubr.bf16.gmra.mrb[0].mxu0 %v541
    %v1084 = vpop.f32.mrb[0].mxu0
    %v1085 = vadd.f32 %v1044, %v1084
    %v1086 = vpop.f32.mrb[0].mxu0
    %v1087 = vadd.f32 %v1046, %v1086
    %v1088 = vpop.f32.mrb[0].mxu0
    %v1089 = vpop.f32.mrb[0].mxu0
    %1090 = vdwg.mxu0
    %1091 = vmatprep.subr.bf16.mxu0 %v676
    %1092 = vmatpush1.bf16.msra.mxu0 %v675
    %1093 = vmatprep.subr.bf16.mxu0 %v684
    %1094 = vmatpush1.bf16.msra.mxu0 %v683
    %1095 = vmatprep.subr.bf16.mxu0 %v692
    %1096 = vmatpush1.bf16.msra.mxu0 %v691
    %1097 = vmatprep.subr.bf16.mxu0 %v700
    %1098 = vmatpush1.bf16.msra.mxu0 %v699
    %1099 = vmatprep.subr.bf16.mxu0 %v708
    %1100 = vmatpush1.bf16.msra.mxu0 %v707
    %1101 = vmatprep.subr.bf16.mxu0 %v716
    %1102 = vmatpush1.bf16.msra.mxu0 %v715
    %1103 = vmatprep.subr.bf16.mxu0 %v724
    %1104 = vmatpush1.bf16.msra.mxu0 %v723
    %1105 = vmatprep.subr.bf16.mxu0 %v732
    %1106 = vmatpush1.bf16.msra.mxu0 %v731
    %1107 = vmatprep.subr.bf16.mxu0 %v740
    %1108 = vmatpush1.bf16.msra.mxu0 %v739
    %1109 = vmatprep.subr.bf16.mxu0 %v748
    %1110 = vmatpush1.bf16.msra.mxu0 %v747
    %1111 = vmatprep.subr.bf16.mxu0 %v756
    %1112 = vmatpush1.bf16.msra.mxu0 %v755
    %1113 = vmatprep.subr.bf16.mxu0 %v764
    %1114 = vmatpush1.bf16.msra.mxu0 %v763
    %1115 = vmatprep.subr.bf16.mxu0 %v772
    %1116 = vmatpush1.bf16.msra.mxu0 %v771
    %1117 = vmatprep.subr.bf16.mxu0 %v780
    %1118 = vmatpush1.bf16.msra.mxu0 %v779
    %1119 = vmatprep.subr.bf16.mxu0 %v788
    %1120 = vmatpush1.bf16.msra.mxu0 %v787
    %1121 = vmatprep.subr.bf16.mxu0 %v796
    %1122 = vmatpush1.bf16.msra.mxu0 %v795
    %1123 = vmatprep.mubr.bf16.mxu0 %v540
    %1124 = vmatmul.mubr.bf16.gmra.mrb[0].mxu0 %v539
    %v1125 = vpop.f32.mrb[0].mxu0
    %v1126 = vadd.f32 0.0, %v1125
    %v1127 = vpop.f32.mrb[0].mxu0
    %v1128 = vadd.f32 0.0, %v1127
    %v1129 = vpop.f32.mrb[0].mxu0
    %v1130 = vpop.f32.mrb[0].mxu0
    %1131 = vdwg.mxu0
    %1132 = vmatprep.subr.bf16.mxu0 %v804
    %1133 = vmatpush1.bf16.msra.mxu0 %v803
    %1134 = vmatprep.subr.bf16.mxu0 %v812
    %1135 = vmatpush1.bf16.msra.mxu0 %v811
    %1136 = vmatprep.subr.bf16.mxu0 %v820
    %1137 = vmatpush1.bf16.msra.mxu0 %v819
    %1138 = vmatprep.subr.bf16.mxu0 %v828
    %1139 = vmatpush1.bf16.msra.mxu0 %v827
    %1140 = vmatprep.subr.bf16.mxu0 %v836
    %1141 = vmatpush1.bf16.msra.mxu0 %v835
    %1142 = vmatprep.subr.bf16.mxu0 %v844
    %1143 = vmatpush1.bf16.msra.mxu0 %v843
    %1144 = vmatprep.subr.bf16.mxu0 %v852
    %1145 = vmatpush1.bf16.msra.mxu0 %v851
    %1146 = vmatprep.subr.bf16.mxu0 %v860
    %1147 = vmatpush1.bf16.msra.mxu0 %v859
    %1148 = vmatprep.subr.bf16.mxu0 %v868
    %1149 = vmatpush1.bf16.msra.mxu0 %v867
    %1150 = vmatprep.subr.bf16.mxu0 %v876
    %1151 = vmatpush1.bf16.msra.mxu0 %v875
    %1152 = vmatprep.subr.bf16.mxu0 %v884
    %1153 = vmatpush1.bf16.msra.mxu0 %v883
    %1154 = vmatprep.subr.bf16.mxu0 %v892
    %1155 = vmatpush1.bf16.msra.mxu0 %v891
    %1156 = vmatprep.subr.bf16.mxu0 %v900
    %1157 = vmatpush1.bf16.msra.mxu0 %v899
    %1158 = vmatprep.subr.bf16.mxu0 %v908
    %1159 = vmatpush1.bf16.msra.mxu0 %v907
    %1160 = vmatprep.subr.bf16.mxu0 %v916
    %1161 = vmatpush1.bf16.msra.mxu0 %v915
    %1162 = vmatprep.subr.bf16.mxu0 %v924
    %1163 = vmatpush1.bf16.msra.mxu0 %v923
    %1164 = vmatprep.mubr.bf16.mxu0 %v542
    %1165 = vmatmul.mubr.bf16.gmra.mrb[0].mxu0 %v541
    %v1166 = vpop.f32.mrb[0].mxu0
    %v1167 = vadd.f32 %v1126, %v1166
    %v1168 = vpop.f32.mrb[0].mxu0
    %v1169 = vadd.f32 %v1128, %v1168
    %v1170 = vpop.f32.mrb[0].mxu0
    %v1171 = vpop.f32.mrb[0].mxu0
    %1172 = vdwg.mxu0
    %1173 = vmatprep.subr.bf16.mxu0 %v678
    %1174 = vmatpush1.bf16.msra.mxu0 %v677
    %1175 = vmatprep.subr.bf16.mxu0 %v686
    %1176 = vmatpush1.bf16.msra.mxu0 %v685
    %1177 = vmatprep.subr.bf16.mxu0 %v694
    %1178 = vmatpush1.bf16.msra.mxu0 %v693
    %1179 = vmatprep.subr.bf16.mxu0 %v702
    %1180 = vmatpush1.bf16.msra.mxu0 %v701
    %1181 = vmatprep.subr.bf16.mxu0 %v710
    %1182 = vmatpush1.bf16.msra.mxu0 %v709
    %1183 = vmatprep.subr.bf16.mxu0 %v718
    %1184 = vmatpush1.bf16.msra.mxu0 %v717
    %1185 = vmatprep.subr.bf16.mxu0 %v726
    %1186 = vmatpush1.bf16.msra.mxu0 %v725
    %1187 = vmatprep.subr.bf16.mxu0 %v734
    %1188 = vmatpush1.bf16.msra.mxu0 %v733
    %1189 = vmatprep.subr.bf16.mxu0 %v742
    %1190 = vmatpush1.bf16.msra.mxu0 %v741
    %1191 = vmatprep.subr.bf16.mxu0 %v750
    %1192 = vmatpush1.bf16.msra.mxu0 %v749
    %1193 = vmatprep.subr.bf16.mxu0 %v758
    %1194 = vmatpush1.bf16.msra.mxu0 %v757
    %1195 = vmatprep.subr.bf16.mxu0 %v766
    %1196 = vmatpush1.bf16.msra.mxu0 %v765
    %1197 = vmatprep.subr.bf16.mxu0 %v774
    %1198 = vmatpush1.bf16.msra.mxu0 %v773
    %1199 = vmatprep.subr.bf16.mxu0 %v782
    %1200 = vmatpush1.bf16.msra.mxu0 %v781
    %1201 = vmatprep.subr.bf16.mxu0 %v790
    %1202 = vmatpush1.bf16.msra.mxu0 %v789
    %1203 = vmatprep.subr.bf16.mxu0 %v798
    %1204 = vmatpush1.bf16.msra.mxu0 %v797
    %1205 = vmatprep.mubr.bf16.mxu0 %v540
    %1206 = vmatmul.mubr.bf16.gmra.mrb[0].mxu0 %v539
    %v1207 = vpop.f32.mrb[0].mxu0
    %v1208 = vadd.f32 0.0, %v1207
    %v1209 = vpop.f32.mrb[0].mxu0
    %v1210 = vadd.f32 0.0, %v1209
    %v1211 = vpop.f32.mrb[0].mxu0
    %v1212 = vpop.f32.mrb[0].mxu0
    %1213 = vdwg.mxu0
    %1214 = vmatprep.subr.bf16.mxu0 %v806
    %1215 = vmatpush1.bf16.msra.mxu0 %v805
    %1216 = vmatprep.subr.bf16.mxu0 %v814
    %1217 = vmatpush1.bf16.msra.mxu0 %v813
    %1218 = vmatprep.subr.bf16.mxu0 %v822
    %1219 = vmatpush1.bf16.msra.mxu0 %v821
    %1220 = vmatprep.subr.bf16.mxu0 %v830
    %1221 = vmatpush1.bf16.msra.mxu0 %v829
    %1222 = vmatprep.subr.bf16.mxu0 %v838
    %1223 = vmatpush1.bf16.msra.mxu0 %v837
    %1224 = vmatprep.subr.bf16.mxu0 %v846
    %1225 = vmatpush1.bf16.msra.mxu0 %v845
    %1226 = vmatprep.subr.bf16.mxu0 %v854
    %1227 = vmatpush1.bf16.msra.mxu0 %v853
    %1228 = vmatprep.subr.bf16.mxu0 %v862
    %1229 = vmatpush1.bf16.msra.mxu0 %v861
    %1230 = vmatprep.subr.bf16.mxu0 %v870
    %1231 = vmatpush1.bf16.msra.mxu0 %v869
    %1232 = vmatprep.subr.bf16.mxu0 %v878
    %1233 = vmatpush1.bf16.msra.mxu0 %v877
    %1234 = vmatprep.subr.bf16.mxu0 %v886
    %1235 = vmatpush1.bf16.msra.mxu0 %v885
    %1236 = vmatprep.subr.bf16.mxu0 %v894
    %1237 = vmatpush1.bf16.msra.mxu0 %v893
    %1238 = vmatprep.subr.bf16.mxu0 %v902
    %1239 = vmatpush1.bf16.msra.mxu0 %v901
    %1240 = vmatprep.subr.bf16.mxu0 %v910
    %1241 = vmatpush1.bf16.msra.mxu0 %v909
    %1242 = vmatprep.subr.bf16.mxu0 %v918
    %1243 = vmatpush1.bf16.msra.mxu0 %v917
    %1244 = vmatprep.subr.bf16.mxu0 %v926
    %1245 = vmatpush1.bf16.msra.mxu0 %v925
    %1246 = vmatprep.mubr.bf16.mxu0 %v542
    %1247 = vmatmul.mubr.bf16.gmra.mrb[0].mxu0 %v541
    %v1248 = vpop.f32.mrb[0].mxu0
    %v1249 = vadd.f32 %v1208, %v1248
    %v1250 = vpop.f32.mrb[0].mxu0
    %v1251 = vadd.f32 %v1210, %v1250
    %v1252 = vpop.f32.mrb[0].mxu0
    %v1253 = vpop.f32.mrb[0].mxu0
    %1254 = vdwg.mxu0
    %v1255 = vld [vmem:[#allocation15] sm:$0xff]
    %v1257 = vlaneseq
    %v1258 = vshrl.u32 %v1257, 7
    %v1259 = vsub.s32 0, %v1258
    %v1260 = vrot.slane %v1255, %v1259
    %v1261 = vlaneseq
    %v1262 = vshrl.u32 %v1261, 7
    %v1263 = vsub.s32 1, %v1262
    %v1264 = vrot.slane %v1255, %v1263
    %v1265 = vlaneseq
    %v1266 = vshrl.u32 %v1265, 7
    %v1267 = vsub.s32 2, %v1266
    %v1268 = vrot.slane %v1255, %v1267
    %v1269 = vlaneseq
    %v1270 = vshrl.u32 %v1269, 7
    %v1271 = vsub.s32 3, %v1270
    %v1272 = vrot.slane %v1255, %v1271
    %v1273 = vlaneseq
    %v1274 = vshrl.u32 %v1273, 7
    %v1275 = vsub.s32 4, %v1274
    %v1276 = vrot.slane %v1255, %v1275
    %v1277 = vlaneseq
    %v1278 = vshrl.u32 %v1277, 7
    %v1279 = vsub.s32 5, %v1278
    %v1280 = vrot.slane %v1255, %v1279
    %v1281 = vlaneseq
    %v1282 = vshrl.u32 %v1281, 7
    %v1283 = vsub.s32 6, %v1282
    %v1284 = vrot.slane %v1255, %v1283
    %v1285 = vlaneseq
    %v1286 = vshrl.u32 %v1285, 7
    %v1287 = vsub.s32 7, %v1286
    %v1288 = vrot.slane %v1255, %v1287
    %v1297 = vmul.f32 %v1003, %v1260
    %v1298 = vmul.f32 %v1005, %v1264
    %v1299 = vmul.f32 %v1085, %v1268
    %v1300 = vmul.f32 %v1087, %v1272
    %v1301 = vmul.f32 %v1167, %v1276
    %v1302 = vmul.f32 %v1169, %v1280
    %v1303 = vmul.f32 %v1249, %v1284
    %v1304 = vmul.f32 %v1251, %v1288
    %v1305 = vld [vmem:[#allocation12] sm:$0xff]
    %v1306 = vld [vmem:[#allocation13] sm:$0xff]
    %v1307 = vrot.slane %v1297, 4
    %v1308 = vadd.f32 %v1297, %v1307
    %v1309 = vrot.slane %v1308, 2
    %v1310 = vadd.f32 %v1308, %v1309
    %v1311 = vrot.slane %v1310, 1
    %v1312 = vadd.f32 %v1310, %v1311
    %v1313 = vrot.slane %v1298, 4
    %v1314 = vadd.f32 %v1298, %v1313
    %v1315 = vrot.slane %v1314, 2
    %v1316 = vadd.f32 %v1314, %v1315
    %v1317 = vrot.slane %v1316, 1
    %v1318 = vadd.f32 %v1316, %v1317
    %v1319 = vrot.slane %v1299, 4
    %v1320 = vadd.f32 %v1299, %v1319
    %v1321 = vrot.slane %v1320, 2
    %v1322 = vadd.f32 %v1320, %v1321
    %v1323 = vrot.slane %v1322, 1
    %v1324 = vadd.f32 %v1322, %v1323
    %v1325 = vrot.slane %v1300, 4
    %v1326 = vadd.f32 %v1300, %v1325
    %v1327 = vrot.slane %v1326, 2
    %v1328 = vadd.f32 %v1326, %v1327
    %v1329 = vrot.slane %v1328, 1
    %v1330 = vadd.f32 %v1328, %v1329
    %v1331 = vrot.slane %v1301, 4
    %v1332 = vadd.f32 %v1301, %v1331
    %v1333 = vrot.slane %v1332, 2
    %v1334 = vadd.f32 %v1332, %v1333
    %v1335 = vrot.slane %v1334, 1
    %v1336 = vadd.f32 %v1334, %v1335
    %v1337 = vrot.slane %v1302, 4
    %v1338 = vadd.f32 %v1302, %v1337
    %v1339 = vrot.slane %v1338, 2
    %v1340 = vadd.f32 %v1338, %v1339
    %v1341 = vrot.slane %v1340, 1
    %v1342 = vadd.f32 %v1340, %v1341
    %v1343 = vrot.slane %v1303, 4
    %v1344 = vadd.f32 %v1303, %v1343
    %v1345 = vrot.slane %v1344, 2
    %v1346 = vadd.f32 %v1344, %v1345
    %v1347 = vrot.slane %v1346, 1
    %v1348 = vadd.f32 %v1346, %v1347
    %v1349 = vrot.slane %v1304, 4
    %v1350 = vadd.f32 %v1304, %v1349
    %v1351 = vrot.slane %v1350, 2
    %v1352 = vadd.f32 %v1350, %v1351
    %v1353 = vrot.slane %v1352, 1
    %v1354 = vadd.f32 %v1352, %v1353
    %v1355 = vmul.f32 %v1312, %v402
    %v1356 = vmul.f32 %v1318, %v402
    %v1357 = vmul.f32 %v1324, %v402
    %v1358 = vmul.f32 %v1330, %v402
    %v1359 = vmul.f32 %v1336, %v402
    %v1360 = vmul.f32 %v1342, %v402
    %v1361 = vmul.f32 %v1348, %v402
    %v1362 = vmul.f32 %v1354, %v402
    %v1363 = vsub.f32 %v1297, %v1355
    %v1364 = vsub.f32 %v1298, %v1356
    %v1365 = vsub.f32 %v1299, %v1357
    %v1366 = vsub.f32 %v1300, %v1358
    %v1367 = vsub.f32 %v1301, %v1359
    %v1368 = vsub.f32 %v1302, %v1360
    %v1369 = vsub.f32 %v1303, %v1361
    %v1370 = vsub.f32 %v1304, %v1362
    %v1371 = vmul.f32 %v1363, %v1363
    %v1372 = vmul.f32 %v1364, %v1364
    %v1373 = vmul.f32 %v1365, %v1365
    %v1374 = vmul.f32 %v1366, %v1366
    %v1375 = vmul.f32 %v1367, %v1367
    %v1376 = vmul.f32 %v1368, %v1368
    %v1377 = vmul.f32 %v1369, %v1369
    %v1378 = vmul.f32 %v1370, %v1370
    %v1379 = vrot.slane %v1371, 4
    %v1380 = vadd.f32 %v1371, %v1379
    %v1381 = vrot.slane %v1380, 2
    %v1382 = vadd.f32 %v1380, %v1381
    %v1383 = vrot.slane %v1382, 1
    %v1384 = vadd.f32 %v1382, %v1383
    %v1385 = vrot.slane %v1372, 4
    %v1386 = vadd.f32 %v1372, %v1385
    %v1387 = vrot.slane %v1386, 2
    %v1388 = vadd.f32 %v1386, %v1387
    %v1389 = vrot.slane %v1388, 1
    %v1390 = vadd.f32 %v1388, %v1389
    %v1391 = vrot.slane %v1373, 4
    %v1392 = vadd.f32 %v1373, %v1391
    %v1393 = vrot.slane %v1392, 2
    %v1394 = vadd.f32 %v1392, %v1393
    %v1395 = vrot.slane %v1394, 1
    %v1396 = vadd.f32 %v1394, %v1395
    %v1397 = vrot.slane %v1374, 4
    %v1398 = vadd.f32 %v1374, %v1397
    %v1399 = vrot.slane %v1398, 2
    %v1400 = vadd.f32 %v1398, %v1399
    %v1401 = vrot.slane %v1400, 1
    %v1402 = vadd.f32 %v1400, %v1401
    %v1403 = vrot.slane %v1375, 4
    %v1404 = vadd.f32 %v1375, %v1403
    %v1405 = vrot.slane %v1404, 2
    %v1406 = vadd.f32 %v1404, %v1405
    %v1407 = vrot.slane %v1406, 1
    %v1408 = vadd.f32 %v1406, %v1407
    %v1409 = vrot.slane %v1376, 4
    %v1410 = vadd.f32 %v1376, %v1409
    %v1411 = vrot.slane %v1410, 2
    %v1412 = vadd.f32 %v1410, %v1411
    %v1413 = vrot.slane %v1412, 1
    %v1414 = vadd.f32 %v1412, %v1413
    %v1415 = vrot.slane %v1377, 4
    %v1416 = vadd.f32 %v1377, %v1415
    %v1417 = vrot.slane %v1416, 2
    %v1418 = vadd.f32 %v1416, %v1417
    %v1419 = vrot.slane %v1418, 1
    %v1420 = vadd.f32 %v1418, %v1419
    %v1421 = vrot.slane %v1378, 4
    %v1422 = vadd.f32 %v1378, %v1421
    %v1423 = vrot.slane %v1422, 2
    %v1424 = vadd.f32 %v1422, %v1423
    %v1425 = vrot.slane %v1424, 1
    %v1426 = vadd.f32 %v1424, %v1425
    %v1427 = vmul.f32 %v1384, %v402
    %v1428 = vmul.f32 %v1390, %v402
    %v1429 = vmul.f32 %v1396, %v402
    %v1430 = vmul.f32 %v1402, %v402
    %v1431 = vmul.f32 %v1408, %v402
    %v1432 = vmul.f32 %v1414, %v402
    %v1433 = vmul.f32 %v1420, %v402
    %v1434 = vmul.f32 %v1426, %v402
    %v1435 = vadd.f32 %v1427, 1e-05
    %v1436 = vadd.f32 %v1428, 1e-05
    %v1437 = vadd.f32 %v1429, 1e-05
    %v1438 = vadd.f32 %v1430, 1e-05
    %v1439 = vadd.f32 %v1431, 1e-05
    %v1440 = vadd.f32 %v1432, 1e-05
    %v1441 = vadd.f32 %v1433, 1e-05
    %v1442 = vadd.f32 %v1434, 1e-05
    %v1443 = vrsqrt.pop %v1435
    %v1444 = vrsqrt.pop %v1436
    %v1445 = vrsqrt.pop %v1437
    %v1446 = vrsqrt.pop %v1438
    %v1447 = vrsqrt.pop %v1439
    %v1448 = vrsqrt.pop %v1440
    %v1449 = vrsqrt.pop %v1441
    %v1450 = vrsqrt.pop %v1442
    %v1459 = vcombine.low %v1443, %v1444
    %v1460 = vcombine.low %v1445, %v1446
    %v1461 = vcombine.low %v1447, %v1448
    %v1462 = vcombine.low %v1449, %v1450
    %v1464 = vunpack.c.l.s4 1966171168
    %v1465 = vunpack.c.0.s8 %v1464
    %v1466 = vlaneseq
    %v1467 = vshrl.u32 %v1466, 7
    %v1468 = vsub.s32 %v1465, %v1467
    %v1469 = vrot.slane %v1459, %v1468
    %v1471 = vunpack.c.l.s4 1966171168
    %v1472 = vunpack.c.0.s8 %v1471
    %v1473 = vlaneseq
    %v1474 = vshrl.u32 %v1473, 7
    %v1475 = vsub.s32 %v1472, %v1474
    %v1476 = vrot.slane %v1460, %v1475
    %v1478 = vunpack.c.l.s4 1966171168
    %v1479 = vunpack.c.0.s8 %v1478
    %v1480 = vlaneseq
    %v1481 = vshrl.u32 %v1480, 7
    %v1482 = vsub.s32 %v1479, %v1481
    %v1483 = vrot.slane %v1461, %v1482
    %v1485 = vunpack.c.l.s4 1966171168
    %v1486 = vunpack.c.0.s8 %v1485
    %v1487 = vlaneseq
    %v1488 = vshrl.u32 %v1487, 7
    %v1489 = vsub.s32 %v1486, %v1488
    %v1490 = vrot.slane %v1462, %v1489
    %v1491 = vcombine.low %v1469, %v1476
    %v1492 = vcombine.low %v1483, %v1490
    %v1494 = vunpack.c.l.s4 1966171168
    %v1495 = vunpack.c.0.s8 %v1494
    %v1496 = vlaneseq
    %v1497 = vshrl.u32 %v1496, 7
    %v1498 = vsub.s32 %v1495, %v1497
    %v1499 = vrot.slane %v1491, %v1498
    %v1501 = vunpack.c.l.s4 1966171168
    %v1502 = vunpack.c.0.s8 %v1501
    %v1503 = vlaneseq
    %v1504 = vshrl.u32 %v1503, 7
    %v1505 = vsub.s32 %v1502, %v1504
    %v1506 = vrot.slane %v1492, %v1505
    %v1507 = vcombine.low %v1499, %v1506
    %v1509 = vmul.f32 %v1305, %v1507
    %v1511 = vlaneseq
    %v1512 = vshrl.u32 %v1511, 7
    %v1513 = vsub.s32 0, %v1512
    %v1514 = vrot.slane %v1509, %v1513
    %v1515 = vlaneseq
    %v1516 = vshrl.u32 %v1515, 7
    %v1517 = vsub.s32 1, %v1516
    %v1518 = vrot.slane %v1509, %v1517
    %v1519 = vlaneseq
    %v1520 = vshrl.u32 %v1519, 7
    %v1521 = vsub.s32 2, %v1520
    %v1522 = vrot.slane %v1509, %v1521
    %v1523 = vlaneseq
    %v1524 = vshrl.u32 %v1523, 7
    %v1525 = vsub.s32 3, %v1524
    %v1526 = vrot.slane %v1509, %v1525
    %v1527 = vlaneseq
    %v1528 = vshrl.u32 %v1527, 7
    %v1529 = vsub.s32 4, %v1528
    %v1530 = vrot.slane %v1509, %v1529
    %v1531 = vlaneseq
    %v1532 = vshrl.u32 %v1531, 7
    %v1533 = vsub.s32 5, %v1532
    %v1534 = vrot.slane %v1509, %v1533
    %v1535 = vlaneseq
    %v1536 = vshrl.u32 %v1535, 7
    %v1537 = vsub.s32 6, %v1536
    %v1538 = vrot.slane %v1509, %v1537
    %v1539 = vlaneseq
    %v1540 = vshrl.u32 %v1539, 7
    %v1541 = vsub.s32 7, %v1540
    %v1542 = vrot.slane %v1509, %v1541
    %v1551 = vmul.f32 %v1363, %v1514
    %v1552 = vmul.f32 %v1364, %v1518
    %v1553 = vmul.f32 %v1365, %v1522
    %v1554 = vmul.f32 %v1366, %v1526
    %v1555 = vmul.f32 %v1367, %v1530
    %v1556 = vmul.f32 %v1368, %v1534
    %v1557 = vmul.f32 %v1369, %v1538
    %v1558 = vmul.f32 %v1370, %v1542
    %v1560 = vlaneseq
    %v1561 = vshrl.u32 %v1560, 7
    %v1562 = vsub.s32 0, %v1561
    %v1563 = vrot.slane %v1306, %v1562
    %v1564 = vlaneseq
    %v1565 = vshrl.u32 %v1564, 7
    %v1566 = vsub.s32 1, %v1565
    %v1567 = vrot.slane %v1306, %v1566
    %v1568 = vlaneseq
    %v1569 = vshrl.u32 %v1568, 7
    %v1570 = vsub.s32 2, %v1569
    %v1571 = vrot.slane %v1306, %v1570
    %v1572 = vlaneseq
    %v1573 = vshrl.u32 %v1572, 7
    %v1574 = vsub.s32 3, %v1573
    %v1575 = vrot.slane %v1306, %v1574
    %v1576 = vlaneseq
    %v1577 = vshrl.u32 %v1576, 7
    %v1578 = vsub.s32 4, %v1577
    %v1579 = vrot.slane %v1306, %v1578
    %v1580 = vlaneseq
    %v1581 = vshrl.u32 %v1580, 7
    %v1582 = vsub.s32 5, %v1581
    %v1583 = vrot.slane %v1306, %v1582
    %v1584 = vlaneseq
    %v1585 = vshrl.u32 %v1584, 7
    %v1586 = vsub.s32 6, %v1585
    %v1587 = vrot.slane %v1306, %v1586
    %v1588 = vlaneseq
    %v1589 = vshrl.u32 %v1588, 7
    %v1590 = vsub.s32 7, %v1589
    %v1591 = vrot.slane %v1306, %v1590
    %v1600 = vadd.f32 %v1551, %v1563
    %v1601 = vadd.f32 %v1552, %v1567
    %v1602 = vadd.f32 %v1553, %v1571
    %v1603 = vadd.f32 %v1554, %v1575
    %v1604 = vadd.f32 %v1555, %v1579
    %v1605 = vadd.f32 %v1556, %v1583
    %v1606 = vadd.f32 %v1557, %v1587
    %v1607 = vadd.f32 %v1558, %v1591
    %v1608 = vmax.f32 %v1600, 0.0
    %v1609 = vmax.f32 %v1601, 0.0
    %v1610 = vmax.f32 %v1602, 0.0
    %v1611 = vmax.f32 %v1603, 0.0
    %v1612 = vmax.f32 %v1604, 0.0
    %v1613 = vmax.f32 %v1605, 0.0
    %v1614 = vmax.f32 %v1606, 0.0
    %v1615 = vmax.f32 %v1607, 0.0
    %s1616 = smul.u32 2, 128
    %s1617 = smul.u32 %s1616, 16
    %s1618 = sshll.u32 %s1617, 4
    %1619 = dma.done %s196, %s1618
    %v1620 = vpack.c.bf16 %v1608, %v1608
    %v1621 = vpack.c.bf16 %v1609, %v1609
    %v1622 = vpack.c.bf16 %v1610, %v1610
    %v1623 = vpack.c.bf16 %v1611, %v1611
    %v1624 = vpack.c.bf16 %v1612, %v1612
    %v1625 = vpack.c.bf16 %v1613, %v1613
    %v1626 = vpack.c.bf16 %v1614, %v1614
    %v1627 = vpack.c.bf16 %v1615, %v1615
    %v1628 = vld [vmem:[#allocation3] sm:$0xff]
    %v1629 = vld [vmem:[#allocation3 + $0x8] sm:$0xff]
    %v1630 = vld [vmem:[#allocation3 + $0x10] sm:$0xff]
    %v1631 = vld [vmem:[#allocation3 + $0x18] sm:$0xff]
    %v1632 = vld [vmem:[#allocation3 + $0x20] sm:$0xff]
    %v1633 = vld [vmem:[#allocation3 + $0x28] sm:$0xff]
    %v1634 = vld [vmem:[#allocation3 + $0x30] sm:$0xff]
    %v1635 = vld [vmem:[#allocation3 + $0x38] sm:$0xff]
    %v1636 = vld [vmem:[#allocation3 + $0x40] sm:$0xff]
    %v1637 = vld [vmem:[#allocation3 + $0x48] sm:$0xff]
    %v1638 = vld [vmem:[#allocation3 + $0x50] sm:$0xff]
    %v1639 = vld [vmem:[#allocation3 + $0x58] sm:$0xff]
    %v1640 = vld [vmem:[#allocation3 + $0x60] sm:$0xff]
    %v1641 = vld [vmem:[#allocation3 + $0x68] sm:$0xff]
    %v1642 = vld [vmem:[#allocation3 + $0x70] sm:$0xff]
    %v1643 = vld [vmem:[#allocation3 + $0x78] sm:$0xff]
    %v1644 = vld [vmem:[#allocation3 + $0x80] sm:$0xff]
    %v1645 = vld [vmem:[#allocation3 + $0x88] sm:$0xff]
    %v1646 = vld [vmem:[#allocation3 + $0x90] sm:$0xff]
    %v1647 = vld [vmem:[#allocation3 + $0x98] sm:$0xff]
    %v1648 = vld [vmem:[#allocation3 + $0xa0] sm:$0xff]
    %v1649 = vld [vmem:[#allocation3 + $0xa8] sm:$0xff]
    %v1650 = vld [vmem:[#allocation3 + $0xb0] sm:$0xff]
    %v1651 = vld [vmem:[#allocation3 + $0xb8] sm:$0xff]
    %v1652 = vld [vmem:[#allocation3 + $0xc0] sm:$0xff]
    %v1653 = vld [vmem:[#allocation3 + $0xc8] sm:$0xff]
    %v1654 = vld [vmem:[#allocation3 + $0xd0] sm:$0xff]
    %v1655 = vld [vmem:[#allocation3 + $0xd8] sm:$0xff]
    %v1656 = vld [vmem:[#allocation3 + $0xe0] sm:$0xff]
    %v1657 = vld [vmem:[#allocation3 + $0xe8] sm:$0xff]
    %v1658 = vld [vmem:[#allocation3 + $0xf0] sm:$0xff]
    %v1659 = vld [vmem:[#allocation3 + $0xf8] sm:$0xff]
    %v1660 = vld [vmem:[#allocation3 + $0x100] sm:$0xff]
    %v1661 = vld [vmem:[#allocation3 + $0x108] sm:$0xff]
    %v1662 = vld [vmem:[#allocation3 + $0x110] sm:$0xff]
    %v1663 = vld [vmem:[#allocation3 + $0x118] sm:$0xff]
    %v1664 = vld [vmem:[#allocation3 + $0x120] sm:$0xff]
    %v1665 = vld [vmem:[#allocation3 + $0x128] sm:$0xff]
    %v1666 = vld [vmem:[#allocation3 + $0x130] sm:$0xff]
    %v1667 = vld [vmem:[#allocation3 + $0x138] sm:$0xff]
    %v1668 = vld [vmem:[#allocation3 + $0x140] sm:$0xff]
    %v1669 = vld [vmem:[#allocation3 + $0x148] sm:$0xff]
    %v1670 = vld [vmem:[#allocation3 + $0x150] sm:$0xff]
    %v1671 = vld [vmem:[#allocation3 + $0x158] sm:$0xff]
    %v1672 = vld [vmem:[#allocation3 + $0x160] sm:$0xff]
    %v1673 = vld [vmem:[#allocation3 + $0x168] sm:$0xff]
    %v1674 = vld [vmem:[#allocation3 + $0x170] sm:$0xff]
    %v1675 = vld [vmem:[#allocation3 + $0x178] sm:$0xff]
    %v1676 = vld [vmem:[#allocation3 + $0x180] sm:$0xff]
    %v1677 = vld [vmem:[#allocation3 + $0x188] sm:$0xff]
    %v1678 = vld [vmem:[#allocation3 + $0x190] sm:$0xff]
    %v1679 = vld [vmem:[#allocation3 + $0x198] sm:$0xff]
    %v1680 = vld [vmem:[#allocation3 + $0x1a0] sm:$0xff]
    %v1681 = vld [vmem:[#allocation3 + $0x1a8] sm:$0xff]
    %v1682 = vld [vmem:[#allocation3 + $0x1b0] sm:$0xff]
    %v1683 = vld [vmem:[#allocation3 + $0x1b8] sm:$0xff]
    %v1684 = vld [vmem:[#allocation3 + $0x1c0] sm:$0xff]
    %v1685 = vld [vmem:[#allocation3 + $0x1c8] sm:$0xff]
    %v1686 = vld [vmem:[#allocation3 + $0x1d0] sm:$0xff]
    %v1687 = vld [vmem:[#allocation3 + $0x1d8] sm:$0xff]
    %v1688 = vld [vmem:[#allocation3 + $0x1e0] sm:$0xff]
    %v1689 = vld [vmem:[#allocation3 + $0x1e8] sm:$0xff]
    %v1690 = vld [vmem:[#allocation3 + $0x1f0] sm:$0xff]
    %v1691 = vld [vmem:[#allocation3 + $0x1f8] sm:$0xff]
    %v1692 = vld [vmem:[#allocation3 + $0x200] sm:$0xff]
    %v1693 = vld [vmem:[#allocation3 + $0x208] sm:$0xff]
    %v1694 = vld [vmem:[#allocation3 + $0x210] sm:$0xff]
    %v1695 = vld [vmem:[#allocation3 + $0x218] sm:$0xff]
    %v1696 = vld [vmem:[#allocation3 + $0x220] sm:$0xff]
    %v1697 = vld [vmem:[#allocation3 + $0x228] sm:$0xff]
    %v1698 = vld [vmem:[#allocation3 + $0x230] sm:$0xff]
    %v1699 = vld [vmem:[#allocation3 + $0x238] sm:$0xff]
    %v1700 = vld [vmem:[#allocation3 + $0x240] sm:$0xff]
    %v1701 = vld [vmem:[#allocation3 + $0x248] sm:$0xff]
    %v1702 = vld [vmem:[#allocation3 + $0x250] sm:$0xff]
    %v1703 = vld [vmem:[#allocation3 + $0x258] sm:$0xff]
    %v1704 = vld [vmem:[#allocation3 + $0x260] sm:$0xff]
    %v1705 = vld [vmem:[#allocation3 + $0x268] sm:$0xff]
    %v1706 = vld [vmem:[#allocation3 + $0x270] sm:$0xff]
    %v1707 = vld [vmem:[#allocation3 + $0x278] sm:$0xff]
    %v1708 = vld [vmem:[#allocation3 + $0x280] sm:$0xff]
    %v1709 = vld [vmem:[#allocation3 + $0x288] sm:$0xff]
    %v1710 = vld [vmem:[#allocation3 + $0x290] sm:$0xff]
    %v1711 = vld [vmem:[#allocation3 + $0x298] sm:$0xff]
    %v1712 = vld [vmem:[#allocation3 + $0x2a0] sm:$0xff]
    %v1713 = vld [vmem:[#allocation3 + $0x2a8] sm:$0xff]
    %v1714 = vld [vmem:[#allocation3 + $0x2b0] sm:$0xff]
    %v1715 = vld [vmem:[#allocation3 + $0x2b8] sm:$0xff]
    %v1716 = vld [vmem:[#allocation3 + $0x2c0] sm:$0xff]
    %v1717 = vld [vmem:[#allocation3 + $0x2c8] sm:$0xff]
    %v1718 = vld [vmem:[#allocation3 + $0x2d0] sm:$0xff]
    %v1719 = vld [vmem:[#allocation3 + $0x2d8] sm:$0xff]
    %v1720 = vld [vmem:[#allocation3 + $0x2e0] sm:$0xff]
    %v1721 = vld [vmem:[#allocation3 + $0x2e8] sm:$0xff]
    %v1722 = vld [vmem:[#allocation3 + $0x2f0] sm:$0xff]
    %v1723 = vld [vmem:[#allocation3 + $0x2f8] sm:$0xff]
    %v1724 = vld [vmem:[#allocation3 + $0x300] sm:$0xff]
    %v1725 = vld [vmem:[#allocation3 + $0x308] sm:$0xff]
    %v1726 = vld [vmem:[#allocation3 + $0x310] sm:$0xff]
    %v1727 = vld [vmem:[#allocation3 + $0x318] sm:$0xff]
    %v1728 = vld [vmem:[#allocation3 + $0x320] sm:$0xff]
    %v1729 = vld [vmem:[#allocation3 + $0x328] sm:$0xff]
    %v1730 = vld [vmem:[#allocation3 + $0x330] sm:$0xff]
    %v1731 = vld [vmem:[#allocation3 + $0x338] sm:$0xff]
    %v1732 = vld [vmem:[#allocation3 + $0x340] sm:$0xff]
    %v1733 = vld [vmem:[#allocation3 + $0x348] sm:$0xff]
    %v1734 = vld [vmem:[#allocation3 + $0x350] sm:$0xff]
    %v1735 = vld [vmem:[#allocation3 + $0x358] sm:$0xff]
    %v1736 = vld [vmem:[#allocation3 + $0x360] sm:$0xff]
    %v1737 = vld [vmem:[#allocation3 + $0x368] sm:$0xff]
    %v1738 = vld [vmem:[#allocation3 + $0x370] sm:$0xff]
    %v1739 = vld [vmem:[#allocation3 + $0x378] sm:$0xff]
    %v1740 = vld [vmem:[#allocation3 + $0x380] sm:$0xff]
    %v1741 = vld [vmem:[#allocation3 + $0x388] sm:$0xff]
    %v1742 = vld [vmem:[#allocation3 + $0x390] sm:$0xff]
    %v1743 = vld [vmem:[#allocation3 + $0x398] sm:$0xff]
    %v1744 = vld [vmem:[#allocation3 + $0x3a0] sm:$0xff]
    %v1745 = vld [vmem:[#allocation3 + $0x3a8] sm:$0xff]
    %v1746 = vld [vmem:[#allocation3 + $0x3b0] sm:$0xff]
    %v1747 = vld [vmem:[#allocation3 + $0x3b8] sm:$0xff]
    %v1748 = vld [vmem:[#allocation3 + $0x3c0] sm:$0xff]
    %v1749 = vld [vmem:[#allocation3 + $0x3c8] sm:$0xff]
    %v1750 = vld [vmem:[#allocation3 + $0x3d0] sm:$0xff]
    %v1751 = vld [vmem:[#allocation3 + $0x3d8] sm:$0xff]
    %v1752 = vld [vmem:[#allocation3 + $0x3e0] sm:$0xff]
    %v1753 = vld [vmem:[#allocation3 + $0x3e8] sm:$0xff]
    %v1754 = vld [vmem:[#allocation3 + $0x3f0] sm:$0xff]
    %v1755 = vld [vmem:[#allocation3 + $0x3f8] sm:$0xff]
    %v1756 = vld [vmem:[#allocation3 + $0x400] sm:$0xff]
    %v1757 = vld [vmem:[#allocation3 + $0x408] sm:$0xff]
    %v1758 = vld [vmem:[#allocation3 + $0x410] sm:$0xff]
    %v1759 = vld [vmem:[#allocation3 + $0x418] sm:$0xff]
    %v1760 = vld [vmem:[#allocation3 + $0x420] sm:$0xff]
    %v1761 = vld [vmem:[#allocation3 + $0x428] sm:$0xff]
    %v1762 = vld [vmem:[#allocation3 + $0x430] sm:$0xff]
    %v1763 = vld [vmem:[#allocation3 + $0x438] sm:$0xff]
    %v1764 = vld [vmem:[#allocation3 + $0x440] sm:$0xff]
    %v1765 = vld [vmem:[#allocation3 + $0x448] sm:$0xff]
    %v1766 = vld [vmem:[#allocation3 + $0x450] sm:$0xff]
    %v1767 = vld [vmem:[#allocation3 + $0x458] sm:$0xff]
    %v1768 = vld [vmem:[#allocation3 + $0x460] sm:$0xff]
    %v1769 = vld [vmem:[#allocation3 + $0x468] sm:$0xff]
    %v1770 = vld [vmem:[#allocation3 + $0x470] sm:$0xff]
    %v1771 = vld [vmem:[#allocation3 + $0x478] sm:$0xff]
    %v1772 = vld [vmem:[#allocation3 + $0x480] sm:$0xff]
    %v1773 = vld [vmem:[#allocation3 + $0x488] sm:$0xff]
    %v1774 = vld [vmem:[#allocation3 + $0x490] sm:$0xff]
    %v1775 = vld [vmem:[#allocation3 + $0x498] sm:$0xff]
    %v1776 = vld [vmem:[#allocation3 + $0x4a0] sm:$0xff]
    %v1777 = vld [vmem:[#allocation3 + $0x4a8] sm:$0xff]
    %v1778 = vld [vmem:[#allocation3 + $0x4b0] sm:$0xff]
    %v1779 = vld [vmem:[#allocation3 + $0x4b8] sm:$0xff]
    %v1780 = vld [vmem:[#allocation3 + $0x4c0] sm:$0xff]
    %v1781 = vld [vmem:[#allocation3 + $0x4c8] sm:$0xff]
    %v1782 = vld [vmem:[#allocation3 + $0x4d0] sm:$0xff]
    %v1783 = vld [vmem:[#allocation3 + $0x4d8] sm:$0xff]
    %v1784 = vld [vmem:[#allocation3 + $0x4e0] sm:$0xff]
    %v1785 = vld [vmem:[#allocation3 + $0x4e8] sm:$0xff]
    %v1786 = vld [vmem:[#allocation3 + $0x4f0] sm:$0xff]
    %v1787 = vld [vmem:[#allocation3 + $0x4f8] sm:$0xff]
    %v1788 = vld [vmem:[#allocation3 + $0x500] sm:$0xff]
    %v1789 = vld [vmem:[#allocation3 + $0x508] sm:$0xff]
    %v1790 = vld [vmem:[#allocation3 + $0x510] sm:$0xff]
    %v1791 = vld [vmem:[#allocation3 + $0x518] sm:$0xff]
    %v1792 = vld [vmem:[#allocation3 + $0x520] sm:$0xff]
    %v1793 = vld [vmem:[#allocation3 + $0x528] sm:$0xff]
    %v1794 = vld [vmem:[#allocation3 + $0x530] sm:$0xff]
    %v1795 = vld [vmem:[#allocation3 + $0x538] sm:$0xff]
    %v1796 = vld [vmem:[#allocation3 + $0x540] sm:$0xff]
    %v1797 = vld [vmem:[#allocation3 + $0x548] sm:$0xff]
    %v1798 = vld [vmem:[#allocation3 + $0x550] sm:$0xff]
    %v1799 = vld [vmem:[#allocation3 + $0x558] sm:$0xff]
    %v1800 = vld [vmem:[#allocation3 + $0x560] sm:$0xff]
    %v1801 = vld [vmem:[#allocation3 + $0x568] sm:$0xff]
    %v1802 = vld [vmem:[#allocation3 + $0x570] sm:$0xff]
    %v1803 = vld [vmem:[#allocation3 + $0x578] sm:$0xff]
    %v1804 = vld [vmem:[#allocation3 + $0x580] sm:$0xff]
    %v1805 = vld [vmem:[#allocation3 + $0x588] sm:$0xff]
    %v1806 = vld [vmem:[#allocation3 + $0x590] sm:$0xff]
    %v1807 = vld [vmem:[#allocation3 + $0x598] sm:$0xff]
    %v1808 = vld [vmem:[#allocation3 + $0x5a0] sm:$0xff]
    %v1809 = vld [vmem:[#allocation3 + $0x5a8] sm:$0xff]
    %v1810 = vld [vmem:[#allocation3 + $0x5b0] sm:$0xff]
    %v1811 = vld [vmem:[#allocation3 + $0x5b8] sm:$0xff]
    %v1812 = vld [vmem:[#allocation3 + $0x5c0] sm:$0xff]
    %v1813 = vld [vmem:[#allocation3 + $0x5c8] sm:$0xff]
    %v1814 = vld [vmem:[#allocation3 + $0x5d0] sm:$0xff]
    %v1815 = vld [vmem:[#allocation3 + $0x5d8] sm:$0xff]
    %v1816 = vld [vmem:[#allocation3 + $0x5e0] sm:$0xff]
    %v1817 = vld [vmem:[#allocation3 + $0x5e8] sm:$0xff]
    %v1818 = vld [vmem:[#allocation3 + $0x5f0] sm:$0xff]
    %v1819 = vld [vmem:[#allocation3 + $0x5f8] sm:$0xff]
    %v1820 = vld [vmem:[#allocation3 + $0x600] sm:$0xff]
    %v1821 = vld [vmem:[#allocation3 + $0x608] sm:$0xff]
    %v1822 = vld [vmem:[#allocation3 + $0x610] sm:$0xff]
    %v1823 = vld [vmem:[#allocation3 + $0x618] sm:$0xff]
    %v1824 = vld [vmem:[#allocation3 + $0x620] sm:$0xff]
    %v1825 = vld [vmem:[#allocation3 + $0x628] sm:$0xff]
    %v1826 = vld [vmem:[#allocation3 + $0x630] sm:$0xff]
    %v1827 = vld [vmem:[#allocation3 + $0x638] sm:$0xff]
    %v1828 = vld [vmem:[#allocation3 + $0x640] sm:$0xff]
    %v1829 = vld [vmem:[#allocation3 + $0x648] sm:$0xff]
    %v1830 = vld [vmem:[#allocation3 + $0x650] sm:$0xff]
    %v1831 = vld [vmem:[#allocation3 + $0x658] sm:$0xff]
    %v1832 = vld [vmem:[#allocation3 + $0x660] sm:$0xff]
    %v1833 = vld [vmem:[#allocation3 + $0x668] sm:$0xff]
    %v1834 = vld [vmem:[#allocation3 + $0x670] sm:$0xff]
    %v1835 = vld [vmem:[#allocation3 + $0x678] sm:$0xff]
    %v1836 = vld [vmem:[#allocation3 + $0x680] sm:$0xff]
    %v1837 = vld [vmem:[#allocation3 + $0x688] sm:$0xff]
    %v1838 = vld [vmem:[#allocation3 + $0x690] sm:$0xff]
    %v1839 = vld [vmem:[#allocation3 + $0x698] sm:$0xff]
    %v1840 = vld [vmem:[#allocation3 + $0x6a0] sm:$0xff]
    %v1841 = vld [vmem:[#allocation3 + $0x6a8] sm:$0xff]
    %v1842 = vld [vmem:[#allocation3 + $0x6b0] sm:$0xff]
    %v1843 = vld [vmem:[#allocation3 + $0x6b8] sm:$0xff]
    %v1844 = vld [vmem:[#allocation3 + $0x6c0] sm:$0xff]
    %v1845 = vld [vmem:[#allocation3 + $0x6c8] sm:$0xff]
    %v1846 = vld [vmem:[#allocation3 + $0x6d0] sm:$0xff]
    %v1847 = vld [vmem:[#allocation3 + $0x6d8] sm:$0xff]
    %v1848 = vld [vmem:[#allocation3 + $0x6e0] sm:$0xff]
    %v1849 = vld [vmem:[#allocation3 + $0x6e8] sm:$0xff]
    %v1850 = vld [vmem:[#allocation3 + $0x6f0] sm:$0xff]
    %v1851 = vld [vmem:[#allocation3 + $0x6f8] sm:$0xff]
    %v1852 = vld [vmem:[#allocation3 + $0x700] sm:$0xff]
    %v1853 = vld [vmem:[#allocation3 + $0x708] sm:$0xff]
    %v1854 = vld [vmem:[#allocation3 + $0x710] sm:$0xff]
    %v1855 = vld [vmem:[#allocation3 + $0x718] sm:$0xff]
    %v1856 = vld [vmem:[#allocation3 + $0x720] sm:$0xff]
    %v1857 = vld [vmem:[#allocation3 + $0x728] sm:$0xff]
    %v1858 = vld [vmem:[#allocation3 + $0x730] sm:$0xff]
    %v1859 = vld [vmem:[#allocation3 + $0x738] sm:$0xff]
    %v1860 = vld [vmem:[#allocation3 + $0x740] sm:$0xff]
    %v1861 = vld [vmem:[#allocation3 + $0x748] sm:$0xff]
    %v1862 = vld [vmem:[#allocation3 + $0x750] sm:$0xff]
    %v1863 = vld [vmem:[#allocation3 + $0x758] sm:$0xff]
    %v1864 = vld [vmem:[#allocation3 + $0x760] sm:$0xff]
    %v1865 = vld [vmem:[#allocation3 + $0x768] sm:$0xff]
    %v1866 = vld [vmem:[#allocation3 + $0x770] sm:$0xff]
    %v1867 = vld [vmem:[#allocation3 + $0x778] sm:$0xff]
    %v1868 = vld [vmem:[#allocation3 + $0x780] sm:$0xff]
    %v1869 = vld [vmem:[#allocation3 + $0x788] sm:$0xff]
    %v1870 = vld [vmem:[#allocation3 + $0x790] sm:$0xff]
    %v1871 = vld [vmem:[#allocation3 + $0x798] sm:$0xff]
    %v1872 = vld [vmem:[#allocation3 + $0x7a0] sm:$0xff]
    %v1873 = vld [vmem:[#allocation3 + $0x7a8] sm:$0xff]
    %v1874 = vld [vmem:[#allocation3 + $0x7b0] sm:$0xff]
    %v1875 = vld [vmem:[#allocation3 + $0x7b8] sm:$0xff]
    %v1876 = vld [vmem:[#allocation3 + $0x7c0] sm:$0xff]
    %v1877 = vld [vmem:[#allocation3 + $0x7c8] sm:$0xff]
    %v1878 = vld [vmem:[#allocation3 + $0x7d0] sm:$0xff]
    %v1879 = vld [vmem:[#allocation3 + $0x7d8] sm:$0xff]
    %v1880 = vld [vmem:[#allocation3 + $0x7e0] sm:$0xff]
    %v1881 = vld [vmem:[#allocation3 + $0x7e8] sm:$0xff]
    %v1882 = vld [vmem:[#allocation3 + $0x7f0] sm:$0xff]
    %v1883 = vld [vmem:[#allocation3 + $0x7f8] sm:$0xff]
    %v1884 = vld [vmem:[#allocation3 + $0x800] sm:$0xff]
    %v1885 = vld [vmem:[#allocation3 + $0x808] sm:$0xff]
    %v1886 = vld [vmem:[#allocation3 + $0x810] sm:$0xff]
    %v1887 = vld [vmem:[#allocation3 + $0x818] sm:$0xff]
    %v1888 = vld [vmem:[#allocation3 + $0x820] sm:$0xff]
    %v1889 = vld [vmem:[#allocation3 + $0x828] sm:$0xff]
    %v1890 = vld [vmem:[#allocation3 + $0x830] sm:$0xff]
    %v1891 = vld [vmem:[#allocation3 + $0x838] sm:$0xff]
    %v1892 = vld [vmem:[#allocation3 + $0x840] sm:$0xff]
    %v1893 = vld [vmem:[#allocation3 + $0x848] sm:$0xff]
    %v1894 = vld [vmem:[#allocation3 + $0x850] sm:$0xff]
    %v1895 = vld [vmem:[#allocation3 + $0x858] sm:$0xff]
    %v1896 = vld [vmem:[#allocation3 + $0x860] sm:$0xff]
    %v1897 = vld [vmem:[#allocation3 + $0x868] sm:$0xff]
    %v1898 = vld [vmem:[#allocation3 + $0x870] sm:$0xff]
    %v1899 = vld [vmem:[#allocation3 + $0x878] sm:$0xff]
    %v1900 = vld [vmem:[#allocation3 + $0x880] sm:$0xff]
    %v1901 = vld [vmem:[#allocation3 + $0x888] sm:$0xff]
    %v1902 = vld [vmem:[#allocation3 + $0x890] sm:$0xff]
    %v1903 = vld [vmem:[#allocation3 + $0x898] sm:$0xff]
    %v1904 = vld [vmem:[#allocation3 + $0x8a0] sm:$0xff]
    %v1905 = vld [vmem:[#allocation3 + $0x8a8] sm:$0xff]
    %v1906 = vld [vmem:[#allocation3 + $0x8b0] sm:$0xff]
    %v1907 = vld [vmem:[#allocation3 + $0x8b8] sm:$0xff]
    %v1908 = vld [vmem:[#allocation3 + $0x8c0] sm:$0xff]
    %v1909 = vld [vmem:[#allocation3 + $0x8c8] sm:$0xff]
    %v1910 = vld [vmem:[#allocation3 + $0x8d0] sm:$0xff]
    %v1911 = vld [vmem:[#allocation3 + $0x8d8] sm:$0xff]
    %v1912 = vld [vmem:[#allocation3 + $0x8e0] sm:$0xff]
    %v1913 = vld [vmem:[#allocation3 + $0x8e8] sm:$0xff]
    %v1914 = vld [vmem:[#allocation3 + $0x8f0] sm:$0xff]
    %v1915 = vld [vmem:[#allocation3 + $0x8f8] sm:$0xff]
    %v1916 = vld [vmem:[#allocation3 + $0x900] sm:$0xff]
    %v1917 = vld [vmem:[#allocation3 + $0x908] sm:$0xff]
    %v1918 = vld [vmem:[#allocation3 + $0x910] sm:$0xff]
    %v1919 = vld [vmem:[#allocation3 + $0x918] sm:$0xff]
    %v1920 = vld [vmem:[#allocation3 + $0x920] sm:$0xff]
    %v1921 = vld [vmem:[#allocation3 + $0x928] sm:$0xff]
    %v1922 = vld [vmem:[#allocation3 + $0x930] sm:$0xff]
    %v1923 = vld [vmem:[#allocation3 + $0x938] sm:$0xff]
    %v1924 = vld [vmem:[#allocation3 + $0x940] sm:$0xff]
    %v1925 = vld [vmem:[#allocation3 + $0x948] sm:$0xff]
    %v1926 = vld [vmem:[#allocation3 + $0x950] sm:$0xff]
    %v1927 = vld [vmem:[#allocation3 + $0x958] sm:$0xff]
    %v1928 = vld [vmem:[#allocation3 + $0x960] sm:$0xff]
    %v1929 = vld [vmem:[#allocation3 + $0x968] sm:$0xff]
    %v1930 = vld [vmem:[#allocation3 + $0x970] sm:$0xff]
    %v1931 = vld [vmem:[#allocation3 + $0x978] sm:$0xff]
    %v1932 = vld [vmem:[#allocation3 + $0x980] sm:$0xff]
    %v1933 = vld [vmem:[#allocation3 + $0x988] sm:$0xff]
    %v1934 = vld [vmem:[#allocation3 + $0x990] sm:$0xff]
    %v1935 = vld [vmem:[#allocation3 + $0x998] sm:$0xff]
    %v1936 = vld [vmem:[#allocation3 + $0x9a0] sm:$0xff]
    %v1937 = vld [vmem:[#allocation3 + $0x9a8] sm:$0xff]
    %v1938 = vld [vmem:[#allocation3 + $0x9b0] sm:$0xff]
    %v1939 = vld [vmem:[#allocation3 + $0x9b8] sm:$0xff]
    %v1940 = vld [vmem:[#allocation3 + $0x9c0] sm:$0xff]
    %v1941 = vld [vmem:[#allocation3 + $0x9c8] sm:$0xff]
    %v1942 = vld [vmem:[#allocation3 + $0x9d0] sm:$0xff]
    %v1943 = vld [vmem:[#allocation3 + $0x9d8] sm:$0xff]
    %v1944 = vld [vmem:[#allocation3 + $0x9e0] sm:$0xff]
    %v1945 = vld [vmem:[#allocation3 + $0x9e8] sm:$0xff]
    %v1946 = vld [vmem:[#allocation3 + $0x9f0] sm:$0xff]
    %v1947 = vld [vmem:[#allocation3 + $0x9f8] sm:$0xff]
    %v1948 = vld [vmem:[#allocation3 + $0xa00] sm:$0xff]
    %v1949 = vld [vmem:[#allocation3 + $0xa08] sm:$0xff]
    %v1950 = vld [vmem:[#allocation3 + $0xa10] sm:$0xff]
    %v1951 = vld [vmem:[#allocation3 + $0xa18] sm:$0xff]
    %v1952 = vld [vmem:[#allocation3 + $0xa20] sm:$0xff]
    %v1953 = vld [vmem:[#allocation3 + $0xa28] sm:$0xff]
    %v1954 = vld [vmem:[#allocation3 + $0xa30] sm:$0xff]
    %v1955 = vld [vmem:[#allocation3 + $0xa38] sm:$0xff]
    %v1956 = vld [vmem:[#allocation3 + $0xa40] sm:$0xff]
    %v1957 = vld [vmem:[#allocation3 + $0xa48] sm:$0xff]
    %v1958 = vld [vmem:[#allocation3 + $0xa50] sm:$0xff]
    %v1959 = vld [vmem:[#allocation3 + $0xa58] sm:$0xff]
    %v1960 = vld [vmem:[#allocation3 + $0xa60] sm:$0xff]
    %v1961 = vld [vmem:[#allocation3 + $0xa68] sm:$0xff]
    %v1962 = vld [vmem:[#allocation3 + $0xa70] sm:$0xff]
    %v1963 = vld [vmem:[#allocation3 + $0xa78] sm:$0xff]
    %v1964 = vld [vmem:[#allocation3 + $0xa80] sm:$0xff]
    %v1965 = vld [vmem:[#allocation3 + $0xa88] sm:$0xff]
    %v1966 = vld [vmem:[#allocation3 + $0xa90] sm:$0xff]
    %v1967 = vld [vmem:[#allocation3 + $0xa98] sm:$0xff]
    %v1968 = vld [vmem:[#allocation3 + $0xaa0] sm:$0xff]
    %v1969 = vld [vmem:[#allocation3 + $0xaa8] sm:$0xff]
    %v1970 = vld [vmem:[#allocation3 + $0xab0] sm:$0xff]
    %v1971 = vld [vmem:[#allocation3 + $0xab8] sm:$0xff]
    %v1972 = vld [vmem:[#allocation3 + $0xac0] sm:$0xff]
    %v1973 = vld [vmem:[#allocation3 + $0xac8] sm:$0xff]
    %v1974 = vld [vmem:[#allocation3 + $0xad0] sm:$0xff]
    %v1975 = vld [vmem:[#allocation3 + $0xad8] sm:$0xff]
    %v1976 = vld [vmem:[#allocation3 + $0xae0] sm:$0xff]
    %v1977 = vld [vmem:[#allocation3 + $0xae8] sm:$0xff]
    %v1978 = vld [vmem:[#allocation3 + $0xaf0] sm:$0xff]
    %v1979 = vld [vmem:[#allocation3 + $0xaf8] sm:$0xff]
    %v1980 = vld [vmem:[#allocation3 + $0xb00] sm:$0xff]
    %v1981 = vld [vmem:[#allocation3 + $0xb08] sm:$0xff]
    %v1982 = vld [vmem:[#allocation3 + $0xb10] sm:$0xff]
    %v1983 = vld [vmem:[#allocation3 + $0xb18] sm:$0xff]
    %v1984 = vld [vmem:[#allocation3 + $0xb20] sm:$0xff]
    %v1985 = vld [vmem:[#allocation3 + $0xb28] sm:$0xff]
    %v1986 = vld [vmem:[#allocation3 + $0xb30] sm:$0xff]
    %v1987 = vld [vmem:[#allocation3 + $0xb38] sm:$0xff]
    %v1988 = vld [vmem:[#allocation3 + $0xb40] sm:$0xff]
    %v1989 = vld [vmem:[#allocation3 + $0xb48] sm:$0xff]
    %v1990 = vld [vmem:[#allocation3 + $0xb50] sm:$0xff]
    %v1991 = vld [vmem:[#allocation3 + $0xb58] sm:$0xff]
    %v1992 = vld [vmem:[#allocation3 + $0xb60] sm:$0xff]
    %v1993 = vld [vmem:[#allocation3 + $0xb68] sm:$0xff]
    %v1994 = vld [vmem:[#allocation3 + $0xb70] sm:$0xff]
    %v1995 = vld [vmem:[#allocation3 + $0xb78] sm:$0xff]
    %v1996 = vld [vmem:[#allocation3 + $0xb80] sm:$0xff]
    %v1997 = vld [vmem:[#allocation3 + $0xb88] sm:$0xff]
    %v1998 = vld [vmem:[#allocation3 + $0xb90] sm:$0xff]
    %v1999 = vld [vmem:[#allocation3 + $0xb98] sm:$0xff]
    %v2000 = vld [vmem:[#allocation3 + $0xba0] sm:$0xff]
    %v2001 = vld [vmem:[#allocation3 + $0xba8] sm:$0xff]
    %v2002 = vld [vmem:[#allocation3 + $0xbb0] sm:$0xff]
    %v2003 = vld [vmem:[#allocation3 + $0xbb8] sm:$0xff]
    %v2004 = vld [vmem:[#allocation3 + $0xbc0] sm:$0xff]
    %v2005 = vld [vmem:[#allocation3 + $0xbc8] sm:$0xff]
    %v2006 = vld [vmem:[#allocation3 + $0xbd0] sm:$0xff]
    %v2007 = vld [vmem:[#allocation3 + $0xbd8] sm:$0xff]
    %v2008 = vld [vmem:[#allocation3 + $0xbe0] sm:$0xff]
    %v2009 = vld [vmem:[#allocation3 + $0xbe8] sm:$0xff]
    %v2010 = vld [vmem:[#allocation3 + $0xbf0] sm:$0xff]
    %v2011 = vld [vmem:[#allocation3 + $0xbf8] sm:$0xff]
    %v2012 = vld [vmem:[#allocation3 + $0xc00] sm:$0xff]
    %v2013 = vld [vmem:[#allocation3 + $0xc08] sm:$0xff]
    %v2014 = vld [vmem:[#allocation3 + $0xc10] sm:$0xff]
    %v2015 = vld [vmem:[#allocation3 + $0xc18] sm:$0xff]
    %v2016 = vld [vmem:[#allocation3 + $0xc20] sm:$0xff]
    %v2017 = vld [vmem:[#allocation3 + $0xc28] sm:$0xff]
    %v2018 = vld [vmem:[#allocation3 + $0xc30] sm:$0xff]
    %v2019 = vld [vmem:[#allocation3 + $0xc38] sm:$0xff]
    %v2020 = vld [vmem:[#allocation3 + $0xc40] sm:$0xff]
    %v2021 = vld [vmem:[#allocation3 + $0xc48] sm:$0xff]
    %v2022 = vld [vmem:[#allocation3 + $0xc50] sm:$0xff]
    %v2023 = vld [vmem:[#allocation3 + $0xc58] sm:$0xff]
    %v2024 = vld [vmem:[#allocation3 + $0xc60] sm:$0xff]
    %v2025 = vld [vmem:[#allocation3 + $0xc68] sm:$0xff]
    %v2026 = vld [vmem:[#allocation3 + $0xc70] sm:$0xff]
    %v2027 = vld [vmem:[#allocation3 + $0xc78] sm:$0xff]
    %v2028 = vld [vmem:[#allocation3 + $0xc80] sm:$0xff]
    %v2029 = vld [vmem:[#allocation3 + $0xc88] sm:$0xff]
    %v2030 = vld [vmem:[#allocation3 + $0xc90] sm:$0xff]
    %v2031 = vld [vmem:[#allocation3 + $0xc98] sm:$0xff]
    %v2032 = vld [vmem:[#allocation3 + $0xca0] sm:$0xff]
    %v2033 = vld [vmem:[#allocation3 + $0xca8] sm:$0xff]
    %v2034 = vld [vmem:[#allocation3 + $0xcb0] sm:$0xff]
    %v2035 = vld [vmem:[#allocation3 + $0xcb8] sm:$0xff]
    %v2036 = vld [vmem:[#allocation3 + $0xcc0] sm:$0xff]
    %v2037 = vld [vmem:[#allocation3 + $0xcc8] sm:$0xff]
    %v2038 = vld [vmem:[#allocation3 + $0xcd0] sm:$0xff]
    %v2039 = vld [vmem:[#allocation3 + $0xcd8] sm:$0xff]
    %v2040 = vld [vmem:[#allocation3 + $0xce0] sm:$0xff]
    %v2041 = vld [vmem:[#allocation3 + $0xce8] sm:$0xff]
    %v2042 = vld [vmem:[#allocation3 + $0xcf0] sm:$0xff]
    %v2043 = vld [vmem:[#allocation3 + $0xcf8] sm:$0xff]
    %v2044 = vld [vmem:[#allocation3 + $0xd00] sm:$0xff]
    %v2045 = vld [vmem:[#allocation3 + $0xd08] sm:$0xff]
    %v2046 = vld [vmem:[#allocation3 + $0xd10] sm:$0xff]
    %v2047 = vld [vmem:[#allocation3 + $0xd18] sm:$0xff]
    %v2048 = vld [vmem:[#allocation3 + $0xd20] sm:$0xff]
    %v2049 = vld [vmem:[#allocation3 + $0xd28] sm:$0xff]
    %v2050 = vld [vmem:[#allocation3 + $0xd30] sm:$0xff]
    %v2051 = vld [vmem:[#allocation3 + $0xd38] sm:$0xff]
    %v2052 = vld [vmem:[#allocation3 + $0xd40] sm:$0xff]
    %v2053 = vld [vmem:[#allocation3 + $0xd48] sm:$0xff]
    %v2054 = vld [vmem:[#allocation3 + $0xd50] sm:$0xff]
    %v2055 = vld [vmem:[#allocation3 + $0xd58] sm:$0xff]
    %v2056 = vld [vmem:[#allocation3 + $0xd60] sm:$0xff]
    %v2057 = vld [vmem:[#allocation3 + $0xd68] sm:$0xff]
    %v2058 = vld [vmem:[#allocation3 + $0xd70] sm:$0xff]
    %v2059 = vld [vmem:[#allocation3 + $0xd78] sm:$0xff]
    %v2060 = vld [vmem:[#allocation3 + $0xd80] sm:$0xff]
    %v2061 = vld [vmem:[#allocation3 + $0xd88] sm:$0xff]
    %v2062 = vld [vmem:[#allocation3 + $0xd90] sm:$0xff]
    %v2063 = vld [vmem:[#allocation3 + $0xd98] sm:$0xff]
    %v2064 = vld [vmem:[#allocation3 + $0xda0] sm:$0xff]
    %v2065 = vld [vmem:[#allocation3 + $0xda8] sm:$0xff]
    %v2066 = vld [vmem:[#allocation3 + $0xdb0] sm:$0xff]
    %v2067 = vld [vmem:[#allocation3 + $0xdb8] sm:$0xff]
    %v2068 = vld [vmem:[#allocation3 + $0xdc0] sm:$0xff]
    %v2069 = vld [vmem:[#allocation3 + $0xdc8] sm:$0xff]
    %v2070 = vld [vmem:[#allocation3 + $0xdd0] sm:$0xff]
    %v2071 = vld [vmem:[#allocation3 + $0xdd8] sm:$0xff]
    %v2072 = vld [vmem:[#allocation3 + $0xde0] sm:$0xff]
    %v2073 = vld [vmem:[#allocation3 + $0xde8] sm:$0xff]
    %v2074 = vld [vmem:[#allocation3 + $0xdf0] sm:$0xff]
    %v2075 = vld [vmem:[#allocation3 + $0xdf8] sm:$0xff]
    %v2076 = vld [vmem:[#allocation3 + $0xe00] sm:$0xff]
    %v2077 = vld [vmem:[#allocation3 + $0xe08] sm:$0xff]
    %v2078 = vld [vmem:[#allocation3 + $0xe10] sm:$0xff]
    %v2079 = vld [vmem:[#allocation3 + $0xe18] sm:$0xff]
    %v2080 = vld [vmem:[#allocation3 + $0xe20] sm:$0xff]
    %v2081 = vld [vmem:[#allocation3 + $0xe28] sm:$0xff]
    %v2082 = vld [vmem:[#allocation3 + $0xe30] sm:$0xff]
    %v2083 = vld [vmem:[#allocation3 + $0xe38] sm:$0xff]
    %v2084 = vld [vmem:[#allocation3 + $0xe40] sm:$0xff]
    %v2085 = vld [vmem:[#allocation3 + $0xe48] sm:$0xff]
    %v2086 = vld [vmem:[#allocation3 + $0xe50] sm:$0xff]
    %v2087 = vld [vmem:[#allocation3 + $0xe58] sm:$0xff]
    %v2088 = vld [vmem:[#allocation3 + $0xe60] sm:$0xff]
    %v2089 = vld [vmem:[#allocation3 + $0xe68] sm:$0xff]
    %v2090 = vld [vmem:[#allocation3 + $0xe70] sm:$0xff]
    %v2091 = vld [vmem:[#allocation3 + $0xe78] sm:$0xff]
    %v2092 = vld [vmem:[#allocation3 + $0xe80] sm:$0xff]
    %v2093 = vld [vmem:[#allocation3 + $0xe88] sm:$0xff]
    %v2094 = vld [vmem:[#allocation3 + $0xe90] sm:$0xff]
    %v2095 = vld [vmem:[#allocation3 + $0xe98] sm:$0xff]
    %v2096 = vld [vmem:[#allocation3 + $0xea0] sm:$0xff]
    %v2097 = vld [vmem:[#allocation3 + $0xea8] sm:$0xff]
    %v2098 = vld [vmem:[#allocation3 + $0xeb0] sm:$0xff]
    %v2099 = vld [vmem:[#allocation3 + $0xeb8] sm:$0xff]
    %v2100 = vld [vmem:[#allocation3 + $0xec0] sm:$0xff]
    %v2101 = vld [vmem:[#allocation3 + $0xec8] sm:$0xff]
    %v2102 = vld [vmem:[#allocation3 + $0xed0] sm:$0xff]
    %v2103 = vld [vmem:[#allocation3 + $0xed8] sm:$0xff]
    %v2104 = vld [vmem:[#allocation3 + $0xee0] sm:$0xff]
    %v2105 = vld [vmem:[#allocation3 + $0xee8] sm:$0xff]
    %v2106 = vld [vmem:[#allocation3 + $0xef0] sm:$0xff]
    %v2107 = vld [vmem:[#allocation3 + $0xef8] sm:$0xff]
    %v2108 = vld [vmem:[#allocation3 + $0xf00] sm:$0xff]
    %v2109 = vld [vmem:[#allocation3 + $0xf08] sm:$0xff]
    %v2110 = vld [vmem:[#allocation3 + $0xf10] sm:$0xff]
    %v2111 = vld [vmem:[#allocation3 + $0xf18] sm:$0xff]
    %v2112 = vld [vmem:[#allocation3 + $0xf20] sm:$0xff]
    %v2113 = vld [vmem:[#allocation3 + $0xf28] sm:$0xff]
    %v2114 = vld [vmem:[#allocation3 + $0xf30] sm:$0xff]
    %v2115 = vld [vmem:[#allocation3 + $0xf38] sm:$0xff]
    %v2116 = vld [vmem:[#allocation3 + $0xf40] sm:$0xff]
    %v2117 = vld [vmem:[#allocation3 + $0xf48] sm:$0xff]
    %v2118 = vld [vmem:[#allocation3 + $0xf50] sm:$0xff]
    %v2119 = vld [vmem:[#allocation3 + $0xf58] sm:$0xff]
    %v2120 = vld [vmem:[#allocation3 + $0xf60] sm:$0xff]
    %v2121 = vld [vmem:[#allocation3 + $0xf68] sm:$0xff]
    %v2122 = vld [vmem:[#allocation3 + $0xf70] sm:$0xff]
    %v2123 = vld [vmem:[#allocation3 + $0xf78] sm:$0xff]
    %v2124 = vld [vmem:[#allocation3 + $0xf80] sm:$0xff]
    %v2125 = vld [vmem:[#allocation3 + $0xf88] sm:$0xff]
    %v2126 = vld [vmem:[#allocation3 + $0xf90] sm:$0xff]
    %v2127 = vld [vmem:[#allocation3 + $0xf98] sm:$0xff]
    %v2128 = vld [vmem:[#allocation3 + $0xfa0] sm:$0xff]
    %v2129 = vld [vmem:[#allocation3 + $0xfa8] sm:$0xff]
    %v2130 = vld [vmem:[#allocation3 + $0xfb0] sm:$0xff]
    %v2131 = vld [vmem:[#allocation3 + $0xfb8] sm:$0xff]
    %v2132 = vld [vmem:[#allocation3 + $0xfc0] sm:$0xff]
    %v2133 = vld [vmem:[#allocation3 + $0xfc8] sm:$0xff]
    %v2134 = vld [vmem:[#allocation3 + $0xfd0] sm:$0xff]
    %v2135 = vld [vmem:[#allocation3 + $0xfd8] sm:$0xff]
    %v2136 = vld [vmem:[#allocation3 + $0xfe0] sm:$0xff]
    %v2137 = vld [vmem:[#allocation3 + $0xfe8] sm:$0xff]
    %v2138 = vld [vmem:[#allocation3 + $0xff0] sm:$0xff]
    %v2139 = vld [vmem:[#allocation3 + $0xff8] sm:$0xff]
    %v2140 = vunpack.c.l.s8.bf16 %v1628
    %v2141 = vunpack.c.l.s8.bf16 %v1629
    %v2142 = vunpack.c.l.s8.bf16 %v1630
    %v2143 = vunpack.c.l.s8.bf16 %v1631
    %v2144 = vunpack.c.l.s8.bf16 %v1632
    %v2145 = vunpack.c.l.s8.bf16 %v1633
    %v2146 = vunpack.c.l.s8.bf16 %v1634
    %v2147 = vunpack.c.l.s8.bf16 %v1635
    %v2148 = vunpack.c.l.s8.bf16 %v1636
    %v2149 = vunpack.c.l.s8.bf16 %v1637
    %v2150 = vunpack.c.l.s8.bf16 %v1638
    %v2151 = vunpack.c.l.s8.bf16 %v1639
    %v2152 = vunpack.c.l.s8.bf16 %v1640
    %v2153 = vunpack.c.l.s8.bf16 %v1641
    %v2154 = vunpack.c.l.s8.bf16 %v1642
    %v2155 = vunpack.c.l.s8.bf16 %v1643
    %v2156 = vunpack.c.h.s8.bf16 %v1628
    %v2157 = vunpack.c.h.s8.bf16 %v1629
    %v2158 = vunpack.c.h.s8.bf16 %v1630
    %v2159 = vunpack.c.h.s8.bf16 %v1631
    %v2160 = vunpack.c.h.s8.bf16 %v1632
    %v2161 = vunpack.c.h.s8.bf16 %v1633
    %v2162 = vunpack.c.h.s8.bf16 %v1634
    %v2163 = vunpack.c.h.s8.bf16 %v1635
    %v2164 = vunpack.c.h.s8.bf16 %v1636
    %v2165 = vunpack.c.h.s8.bf16 %v1637
    %v2166 = vunpack.c.h.s8.bf16 %v1638
    %v2167 = vunpack.c.h.s8.bf16 %v1639
    %v2168 = vunpack.c.h.s8.bf16 %v1640
    %v2169 = vunpack.c.h.s8.bf16 %v1641
    %v2170 = vunpack.c.h.s8.bf16 %v1642
    %v2171 = vunpack.c.h.s8.bf16 %v1643
    %v2172 = vunpack.c.l.s8.bf16 %v1644
    %v2173 = vunpack.c.l.s8.bf16 %v1645
    %v2174 = vunpack.c.l.s8.bf16 %v1646
    %v2175 = vunpack.c.l.s8.bf16 %v1647
    %v2176 = vunpack.c.l.s8.bf16 %v1648
    %v2177 = vunpack.c.l.s8.bf16 %v1649
    %v2178 = vunpack.c.l.s8.bf16 %v1650
    %v2179 = vunpack.c.l.s8.bf16 %v1651
    %v2180 = vunpack.c.l.s8.bf16 %v1652
    %v2181 = vunpack.c.l.s8.bf16 %v1653
    %v2182 = vunpack.c.l.s8.bf16 %v1654
    %v2183 = vunpack.c.l.s8.bf16 %v1655
    %v2184 = vunpack.c.l.s8.bf16 %v1656
    %v2185 = vunpack.c.l.s8.bf16 %v1657
    %v2186 = vunpack.c.l.s8.bf16 %v1658
    %v2187 = vunpack.c.l.s8.bf16 %v1659
    %v2188 = vunpack.c.h.s8.bf16 %v1644
    %v2189 = vunpack.c.h.s8.bf16 %v1645
    %v2190 = vunpack.c.h.s8.bf16 %v1646
    %v2191 = vunpack.c.h.s8.bf16 %v1647
    %v2192 = vunpack.c.h.s8.bf16 %v1648
    %v2193 = vunpack.c.h.s8.bf16 %v1649
    %v2194 = vunpack.c.h.s8.bf16 %v1650
    %v2195 = vunpack.c.h.s8.bf16 %v1651
    %v2196 = vunpack.c.h.s8.bf16 %v1652
    %v2197 = vunpack.c.h.s8.bf16 %v1653
    %v2198 = vunpack.c.h.s8.bf16 %v1654
    %v2199 = vunpack.c.h.s8.bf16 %v1655
    %v2200 = vunpack.c.h.s8.bf16 %v1656
    %v2201 = vunpack.c.h.s8.bf16 %v1657
    %v2202 = vunpack.c.h.s8.bf16 %v1658
    %v2203 = vunpack.c.h.s8.bf16 %v1659
    %v2204 = vunpack.c.l.s8.bf16 %v1660
    %v2205 = vunpack.c.l.s8.bf16 %v1661
    %v2206 = vunpack.c.l.s8.bf16 %v1662
    %v2207 = vunpack.c.l.s8.bf16 %v1663
    %v2208 = vunpack.c.l.s8.bf16 %v1664
    %v2209 = vunpack.c.l.s8.bf16 %v1665
    %v2210 = vunpack.c.l.s8.bf16 %v1666
    %v2211 = vunpack.c.l.s8.bf16 %v1667
    %v2212 = vunpack.c.l.s8.bf16 %v1668
    %v2213 = vunpack.c.l.s8.bf16 %v1669
    %v2214 = vunpack.c.l.s8.bf16 %v1670
    %v2215 = vunpack.c.l.s8.bf16 %v1671
    %v2216 = vunpack.c.l.s8.bf16 %v1672
    %v2217 = vunpack.c.l.s8.bf16 %v1673
    %v2218 = vunpack.c.l.s8.bf16 %v1674
    %v2219 = vunpack.c.l.s8.bf16 %v1675
    %v2220 = vunpack.c.h.s8.bf16 %v1660
    %v2221 = vunpack.c.h.s8.bf16 %v1661
    %v2222 = vunpack.c.h.s8.bf16 %v1662
    %v2223 = vunpack.c.h.s8.bf16 %v1663
    %v2224 = vunpack.c.h.s8.bf16 %v1664
    %v2225 = vunpack.c.h.s8.bf16 %v1665
    %v2226 = vunpack.c.h.s8.bf16 %v1666
    %v2227 = vunpack.c.h.s8.bf16 %v1667
    %v2228 = vunpack.c.h.s8.bf16 %v1668
    %v2229 = vunpack.c.h.s8.bf16 %v1669
    %v2230 = vunpack.c.h.s8.bf16 %v1670
    %v2231 = vunpack.c.h.s8.bf16 %v1671
    %v2232 = vunpack.c.h.s8.bf16 %v1672
    %v2233 = vunpack.c.h.s8.bf16 %v1673
    %v2234 = vunpack.c.h.s8.bf16 %v1674
    %v2235 = vunpack.c.h.s8.bf16 %v1675
    %v2236 = vunpack.c.l.s8.bf16 %v1676
    %v2237 = vunpack.c.l.s8.bf16 %v1677
    %v2238 = vunpack.c.l.s8.bf16 %v1678
    %v2239 = vunpack.c.l.s8.bf16 %v1679
    %v2240 = vunpack.c.l.s8.bf16 %v1680
    %v2241 = vunpack.c.l.s8.bf16 %v1681
    %v2242 = vunpack.c.l.s8.bf16 %v1682
    %v2243 = vunpack.c.l.s8.bf16 %v1683
    %v2244 = vunpack.c.l.s8.bf16 %v1684
    %v2245 = vunpack.c.l.s8.bf16 %v1685
    %v2246 = vunpack.c.l.s8.bf16 %v1686
    %v2247 = vunpack.c.l.s8.bf16 %v1687
    %v2248 = vunpack.c.l.s8.bf16 %v1688
    %v2249 = vunpack.c.l.s8.bf16 %v1689
    %v2250 = vunpack.c.l.s8.bf16 %v1690
    %v2251 = vunpack.c.l.s8.bf16 %v1691
    %v2252 = vunpack.c.h.s8.bf16 %v1676
    %v2253 = vunpack.c.h.s8.bf16 %v1677
    %v2254 = vunpack.c.h.s8.bf16 %v1678
    %v2255 = vunpack.c.h.s8.bf16 %v1679
    %v2256 = vunpack.c.h.s8.bf16 %v1680
    %v2257 = vunpack.c.h.s8.bf16 %v1681
    %v2258 = vunpack.c.h.s8.bf16 %v1682
    %v2259 = vunpack.c.h.s8.bf16 %v1683
    %v2260 = vunpack.c.h.s8.bf16 %v1684
    %v2261 = vunpack.c.h.s8.bf16 %v1685
    %v2262 = vunpack.c.h.s8.bf16 %v1686
    %v2263 = vunpack.c.h.s8.bf16 %v1687
    %v2264 = vunpack.c.h.s8.bf16 %v1688
    %v2265 = vunpack.c.h.s8.bf16 %v1689
    %v2266 = vunpack.c.h.s8.bf16 %v1690
    %v2267 = vunpack.c.h.s8.bf16 %v1691
    %v2268 = vunpack.c.l.s8.bf16 %v1692
    %v2269 = vunpack.c.l.s8.bf16 %v1693
    %v2270 = vunpack.c.l.s8.bf16 %v1694
    %v2271 = vunpack.c.l.s8.bf16 %v1695
    %v2272 = vunpack.c.l.s8.bf16 %v1696
    %v2273 = vunpack.c.l.s8.bf16 %v1697
    %v2274 = vunpack.c.l.s8.bf16 %v1698
    %v2275 = vunpack.c.l.s8.bf16 %v1699
    %v2276 = vunpack.c.l.s8.bf16 %v1700
    %v2277 = vunpack.c.l.s8.bf16 %v1701
    %v2278 = vunpack.c.l.s8.bf16 %v1702
    %v2279 = vunpack.c.l.s8.bf16 %v1703
    %v2280 = vunpack.c.l.s8.bf16 %v1704
    %v2281 = vunpack.c.l.s8.bf16 %v1705
    %v2282 = vunpack.c.l.s8.bf16 %v1706
    %v2283 = vunpack.c.l.s8.bf16 %v1707
    %v2284 = vunpack.c.h.s8.bf16 %v1692
    %v2285 = vunpack.c.h.s8.bf16 %v1693
    %v2286 = vunpack.c.h.s8.bf16 %v1694
    %v2287 = vunpack.c.h.s8.bf16 %v1695
    %v2288 = vunpack.c.h.s8.bf16 %v1696
    %v2289 = vunpack.c.h.s8.bf16 %v1697
    %v2290 = vunpack.c.h.s8.bf16 %v1698
    %v2291 = vunpack.c.h.s8.bf16 %v1699
    %v2292 = vunpack.c.h.s8.bf16 %v1700
    %v2293 = vunpack.c.h.s8.bf16 %v1701
    %v2294 = vunpack.c.h.s8.bf16 %v1702
    %v2295 = vunpack.c.h.s8.bf16 %v1703
    %v2296 = vunpack.c.h.s8.bf16 %v1704
    %v2297 = vunpack.c.h.s8.bf16 %v1705
    %v2298 = vunpack.c.h.s8.bf16 %v1706
    %v2299 = vunpack.c.h.s8.bf16 %v1707
    %v2300 = vunpack.c.l.s8.bf16 %v1708
    %v2301 = vunpack.c.l.s8.bf16 %v1709
    %v2302 = vunpack.c.l.s8.bf16 %v1710
    %v2303 = vunpack.c.l.s8.bf16 %v1711
    %v2304 = vunpack.c.l.s8.bf16 %v1712
    %v2305 = vunpack.c.l.s8.bf16 %v1713
    %v2306 = vunpack.c.l.s8.bf16 %v1714
    %v2307 = vunpack.c.l.s8.bf16 %v1715
    %v2308 = vunpack.c.l.s8.bf16 %v1716
    %v2309 = vunpack.c.l.s8.bf16 %v1717
    %v2310 = vunpack.c.l.s8.bf16 %v1718
    %v2311 = vunpack.c.l.s8.bf16 %v1719
    %v2312 = vunpack.c.l.s8.bf16 %v1720
    %v2313 = vunpack.c.l.s8.bf16 %v1721
    %v2314 = vunpack.c.l.s8.bf16 %v1722
    %v2315 = vunpack.c.l.s8.bf16 %v1723
    %v2316 = vunpack.c.h.s8.bf16 %v1708
    %v2317 = vunpack.c.h.s8.bf16 %v1709
    %v2318 = vunpack.c.h.s8.bf16 %v1710
    %v2319 = vunpack.c.h.s8.bf16 %v1711
    %v2320 = vunpack.c.h.s8.bf16 %v1712
    %v2321 = vunpack.c.h.s8.bf16 %v1713
    %v2322 = vunpack.c.h.s8.bf16 %v1714
    %v2323 = vunpack.c.h.s8.bf16 %v1715
    %v2324 = vunpack.c.h.s8.bf16 %v1716
    %v2325 = vunpack.c.h.s8.bf16 %v1717
    %v2326 = vunpack.c.h.s8.bf16 %v1718
    %v2327 = vunpack.c.h.s8.bf16 %v1719
    %v2328 = vunpack.c.h.s8.bf16 %v1720
    %v2329 = vunpack.c.h.s8.bf16 %v1721
    %v2330 = vunpack.c.h.s8.bf16 %v1722
    %v2331 = vunpack.c.h.s8.bf16 %v1723
    %v2332 = vunpack.c.l.s8.bf16 %v1724
    %v2333 = vunpack.c.l.s8.bf16 %v1725
    %v2334 = vunpack.c.l.s8.bf16 %v1726
    %v2335 = vunpack.c.l.s8.bf16 %v1727
    %v2336 = vunpack.c.l.s8.bf16 %v1728
    %v2337 = vunpack.c.l.s8.bf16 %v1729
    %v2338 = vunpack.c.l.s8.bf16 %v1730
    %v2339 = vunpack.c.l.s8.bf16 %v1731
    %v2340 = vunpack.c.l.s8.bf16 %v1732
    %v2341 = vunpack.c.l.s8.bf16 %v1733
    %v2342 = vunpack.c.l.s8.bf16 %v1734
    %v2343 = vunpack.c.l.s8.bf16 %v1735
    %v2344 = vunpack.c.l.s8.bf16 %v1736
    %v2345 = vunpack.c.l.s8.bf16 %v1737
    %v2346 = vunpack.c.l.s8.bf16 %v1738
    %v2347 = vunpack.c.l.s8.bf16 %v1739
    %v2348 = vunpack.c.h.s8.bf16 %v1724
    %v2349 = vunpack.c.h.s8.bf16 %v1725
    %v2350 = vunpack.c.h.s8.bf16 %v1726
    %v2351 = vunpack.c.h.s8.bf16 %v1727
    %v2352 = vunpack.c.h.s8.bf16 %v1728
    %v2353 = vunpack.c.h.s8.bf16 %v1729
    %v2354 = vunpack.c.h.s8.bf16 %v1730
    %v2355 = vunpack.c.h.s8.bf16 %v1731
    %v2356 = vunpack.c.h.s8.bf16 %v1732
    %v2357 = vunpack.c.h.s8.bf16 %v1733
    %v2358 = vunpack.c.h.s8.bf16 %v1734
    %v2359 = vunpack.c.h.s8.bf16 %v1735
    %v2360 = vunpack.c.h.s8.bf16 %v1736
    %v2361 = vunpack.c.h.s8.bf16 %v1737
    %v2362 = vunpack.c.h.s8.bf16 %v1738
    %v2363 = vunpack.c.h.s8.bf16 %v1739
    %v2364 = vunpack.c.l.s8.bf16 %v1740
    %v2365 = vunpack.c.l.s8.bf16 %v1741
    %v2366 = vunpack.c.l.s8.bf16 %v1742
    %v2367 = vunpack.c.l.s8.bf16 %v1743
    %v2368 = vunpack.c.l.s8.bf16 %v1744
    %v2369 = vunpack.c.l.s8.bf16 %v1745
    %v2370 = vunpack.c.l.s8.bf16 %v1746
    %v2371 = vunpack.c.l.s8.bf16 %v1747
    %v2372 = vunpack.c.l.s8.bf16 %v1748
    %v2373 = vunpack.c.l.s8.bf16 %v1749
    %v2374 = vunpack.c.l.s8.bf16 %v1750
    %v2375 = vunpack.c.l.s8.bf16 %v1751
    %v2376 = vunpack.c.l.s8.bf16 %v1752
    %v2377 = vunpack.c.l.s8.bf16 %v1753
    %v2378 = vunpack.c.l.s8.bf16 %v1754
    %v2379 = vunpack.c.l.s8.bf16 %v1755
    %v2380 = vunpack.c.h.s8.bf16 %v1740
    %v2381 = vunpack.c.h.s8.bf16 %v1741
    %v2382 = vunpack.c.h.s8.bf16 %v1742
    %v2383 = vunpack.c.h.s8.bf16 %v1743
    %v2384 = vunpack.c.h.s8.bf16 %v1744
    %v2385 = vunpack.c.h.s8.bf16 %v1745
    %v2386 = vunpack.c.h.s8.bf16 %v1746
    %v2387 = vunpack.c.h.s8.bf16 %v1747
    %v2388 = vunpack.c.h.s8.bf16 %v1748
    %v2389 = vunpack.c.h.s8.bf16 %v1749
    %v2390 = vunpack.c.h.s8.bf16 %v1750
    %v2391 = vunpack.c.h.s8.bf16 %v1751
    %v2392 = vunpack.c.h.s8.bf16 %v1752
    %v2393 = vunpack.c.h.s8.bf16 %v1753
    %v2394 = vunpack.c.h.s8.bf16 %v1754
    %v2395 = vunpack.c.h.s8.bf16 %v1755
    %v2396 = vunpack.c.l.s8.bf16 %v1756
    %v2397 = vunpack.c.l.s8.bf16 %v1757
    %v2398 = vunpack.c.l.s8.bf16 %v1758
    %v2399 = vunpack.c.l.s8.bf16 %v1759
    %v2400 = vunpack.c.l.s8.bf16 %v1760
    %v2401 = vunpack.c.l.s8.bf16 %v1761
    %v2402 = vunpack.c.l.s8.bf16 %v1762
    %v2403 = vunpack.c.l.s8.bf16 %v1763
    %v2404 = vunpack.c.l.s8.bf16 %v1764
    %v2405 = vunpack.c.l.s8.bf16 %v1765
    %v2406 = vunpack.c.l.s8.bf16 %v1766
    %v2407 = vunpack.c.l.s8.bf16 %v1767
    %v2408 = vunpack.c.l.s8.bf16 %v1768
    %v2409 = vunpack.c.l.s8.bf16 %v1769
    %v2410 = vunpack.c.l.s8.bf16 %v1770
    %v2411 = vunpack.c.l.s8.bf16 %v1771
    %v2412 = vunpack.c.h.s8.bf16 %v1756
    %v2413 = vunpack.c.h.s8.bf16 %v1757
    %v2414 = vunpack.c.h.s8.bf16 %v1758
    %v2415 = vunpack.c.h.s8.bf16 %v1759
    %v2416 = vunpack.c.h.s8.bf16 %v1760
    %v2417 = vunpack.c.h.s8.bf16 %v1761
    %v2418 = vunpack.c.h.s8.bf16 %v1762
    %v2419 = vunpack.c.h.s8.bf16 %v1763
    %v2420 = vunpack.c.h.s8.bf16 %v1764
    %v2421 = vunpack.c.h.s8.bf16 %v1765
    %v2422 = vunpack.c.h.s8.bf16 %v1766
    %v2423 = vunpack.c.h.s8.bf16 %v1767
    %v2424 = vunpack.c.h.s8.bf16 %v1768
    %v2425 = vunpack.c.h.s8.bf16 %v1769
    %v2426 = vunpack.c.h.s8.bf16 %v1770
    %v2427 = vunpack.c.h.s8.bf16 %v1771
    %v2428 = vunpack.c.l.s8.bf16 %v1772
    %v2429 = vunpack.c.l.s8.bf16 %v1773
    %v2430 = vunpack.c.l.s8.bf16 %v1774
    %v2431 = vunpack.c.l.s8.bf16 %v1775
    %v2432 = vunpack.c.l.s8.bf16 %v1776
    %v2433 = vunpack.c.l.s8.bf16 %v1777
    %v2434 = vunpack.c.l.s8.bf16 %v1778
    %v2435 = vunpack.c.l.s8.bf16 %v1779
    %v2436 = vunpack.c.l.s8.bf16 %v1780
    %v2437 = vunpack.c.l.s8.bf16 %v1781
    %v2438 = vunpack.c.l.s8.bf16 %v1782
    %v2439 = vunpack.c.l.s8.bf16 %v1783
    %v2440 = vunpack.c.l.s8.bf16 %v1784
    %v2441 = vunpack.c.l.s8.bf16 %v1785
    %v2442 = vunpack.c.l.s8.bf16 %v1786
    %v2443 = vunpack.c.l.s8.bf16 %v1787
    %v2444 = vunpack.c.h.s8.bf16 %v1772
    %v2445 = vunpack.c.h.s8.bf16 %v1773
    %v2446 = vunpack.c.h.s8.bf16 %v1774
    %v2447 = vunpack.c.h.s8.bf16 %v1775
    %v2448 = vunpack.c.h.s8.bf16 %v1776
    %v2449 = vunpack.c.h.s8.bf16 %v1777
    %v2450 = vunpack.c.h.s8.bf16 %v1778
    %v2451 = vunpack.c.h.s8.bf16 %v1779
    %v2452 = vunpack.c.h.s8.bf16 %v1780
    %v2453 = vunpack.c.h.s8.bf16 %v1781
    %v2454 = vunpack.c.h.s8.bf16 %v1782
    %v2455 = vunpack.c.h.s8.bf16 %v1783
    %v2456 = vunpack.c.h.s8.bf16 %v1784
    %v2457 = vunpack.c.h.s8.bf16 %v1785
    %v2458 = vunpack.c.h.s8.bf16 %v1786
    %v2459 = vunpack.c.h.s8.bf16 %v1787
    %v2460 = vunpack.c.l.s8.bf16 %v1788
    %v2461 = vunpack.c.l.s8.bf16 %v1789
    %v2462 = vunpack.c.l.s8.bf16 %v1790
    %v2463 = vunpack.c.l.s8.bf16 %v1791
    %v2464 = vunpack.c.l.s8.bf16 %v1792
    %v2465 = vunpack.c.l.s8.bf16 %v1793
    %v2466 = vunpack.c.l.s8.bf16 %v1794
    %v2467 = vunpack.c.l.s8.bf16 %v1795
    %v2468 = vunpack.c.l.s8.bf16 %v1796
    %v2469 = vunpack.c.l.s8.bf16 %v1797
    %v2470 = vunpack.c.l.s8.bf16 %v1798
    %v2471 = vunpack.c.l.s8.bf16 %v1799
    %v2472 = vunpack.c.l.s8.bf16 %v1800
    %v2473 = vunpack.c.l.s8.bf16 %v1801
    %v2474 = vunpack.c.l.s8.bf16 %v1802
    %v2475 = vunpack.c.l.s8.bf16 %v1803
    %v2476 = vunpack.c.h.s8.bf16 %v1788
    %v2477 = vunpack.c.h.s8.bf16 %v1789
    %v2478 = vunpack.c.h.s8.bf16 %v1790
    %v2479 = vunpack.c.h.s8.bf16 %v1791
    %v2480 = vunpack.c.h.s8.bf16 %v1792
    %v2481 = vunpack.c.h.s8.bf16 %v1793
    %v2482 = vunpack.c.h.s8.bf16 %v1794
    %v2483 = vunpack.c.h.s8.bf16 %v1795
    %v2484 = vunpack.c.h.s8.bf16 %v1796
    %v2485 = vunpack.c.h.s8.bf16 %v1797
    %v2486 = vunpack.c.h.s8.bf16 %v1798
    %v2487 = vunpack.c.h.s8.bf16 %v1799
    %v2488 = vunpack.c.h.s8.bf16 %v1800
    %v2489 = vunpack.c.h.s8.bf16 %v1801
    %v2490 = vunpack.c.h.s8.bf16 %v1802
    %v2491 = vunpack.c.h.s8.bf16 %v1803
    %v2492 = vunpack.c.l.s8.bf16 %v1804
    %v2493 = vunpack.c.l.s8.bf16 %v1805
    %v2494 = vunpack.c.l.s8.bf16 %v1806
    %v2495 = vunpack.c.l.s8.bf16 %v1807
    %v2496 = vunpack.c.l.s8.bf16 %v1808
    %v2497 = vunpack.c.l.s8.bf16 %v1809
    %v2498 = vunpack.c.l.s8.bf16 %v1810
    %v2499 = vunpack.c.l.s8.bf16 %v1811
    %v2500 = vunpack.c.l.s8.bf16 %v1812
    %v2501 = vunpack.c.l.s8.bf16 %v1813
    %v2502 = vunpack.c.l.s8.bf16 %v1814
    %v2503 = vunpack.c.l.s8.bf16 %v1815
    %v2504 = vunpack.c.l.s8.bf16 %v1816
    %v2505 = vunpack.c.l.s8.bf16 %v1817
    %v2506 = vunpack.c.l.s8.bf16 %v1818
    %v2507 = vunpack.c.l.s8.bf16 %v1819
    %v2508 = vunpack.c.h.s8.bf16 %v1804
    %v2509 = vunpack.c.h.s8.bf16 %v1805
    %v2510 = vunpack.c.h.s8.bf16 %v1806
    %v2511 = vunpack.c.h.s8.bf16 %v1807
    %v2512 = vunpack.c.h.s8.bf16 %v1808
    %v2513 = vunpack.c.h.s8.bf16 %v1809
    %v2514 = vunpack.c.h.s8.bf16 %v1810
    %v2515 = vunpack.c.h.s8.bf16 %v1811
    %v2516 = vunpack.c.h.s8.bf16 %v1812
    %v2517 = vunpack.c.h.s8.bf16 %v1813
    %v2518 = vunpack.c.h.s8.bf16 %v1814
    %v2519 = vunpack.c.h.s8.bf16 %v1815
    %v2520 = vunpack.c.h.s8.bf16 %v1816
    %v2521 = vunpack.c.h.s8.bf16 %v1817
    %v2522 = vunpack.c.h.s8.bf16 %v1818
    %v2523 = vunpack.c.h.s8.bf16 %v1819
    %v2524 = vunpack.c.l.s8.bf16 %v1820
    %v2525 = vunpack.c.l.s8.bf16 %v1821
    %v2526 = vunpack.c.l.s8.bf16 %v1822
    %v2527 = vunpack.c.l.s8.bf16 %v1823
    %v2528 = vunpack.c.l.s8.bf16 %v1824
    %v2529 = vunpack.c.l.s8.bf16 %v1825
    %v2530 = vunpack.c.l.s8.bf16 %v1826
    %v2531 = vunpack.c.l.s8.bf16 %v1827
    %v2532 = vunpack.c.l.s8.bf16 %v1828
    %v2533 = vunpack.c.l.s8.bf16 %v1829
    %v2534 = vunpack.c.l.s8.bf16 %v1830
    %v2535 = vunpack.c.l.s8.bf16 %v1831
    %v2536 = vunpack.c.l.s8.bf16 %v1832
    %v2537 = vunpack.c.l.s8.bf16 %v1833
    %v2538 = vunpack.c.l.s8.bf16 %v1834
    %v2539 = vunpack.c.l.s8.bf16 %v1835
    %v2540 = vunpack.c.h.s8.bf16 %v1820
    %v2541 = vunpack.c.h.s8.bf16 %v1821
    %v2542 = vunpack.c.h.s8.bf16 %v1822
    %v2543 = vunpack.c.h.s8.bf16 %v1823
    %v2544 = vunpack.c.h.s8.bf16 %v1824
    %v2545 = vunpack.c.h.s8.bf16 %v1825
    %v2546 = vunpack.c.h.s8.bf16 %v1826
    %v2547 = vunpack.c.h.s8.bf16 %v1827
    %v2548 = vunpack.c.h.s8.bf16 %v1828
    %v2549 = vunpack.c.h.s8.bf16 %v1829
    %v2550 = vunpack.c.h.s8.bf16 %v1830
    %v2551 = vunpack.c.h.s8.bf16 %v1831
    %v2552 = vunpack.c.h.s8.bf16 %v1832
    %v2553 = vunpack.c.h.s8.bf16 %v1833
    %v2554 = vunpack.c.h.s8.bf16 %v1834
    %v2555 = vunpack.c.h.s8.bf16 %v1835
    %v2556 = vunpack.c.l.s8.bf16 %v1836
    %v2557 = vunpack.c.l.s8.bf16 %v1837
    %v2558 = vunpack.c.l.s8.bf16 %v1838
    %v2559 = vunpack.c.l.s8.bf16 %v1839
    %v2560 = vunpack.c.l.s8.bf16 %v1840
    %v2561 = vunpack.c.l.s8.bf16 %v1841
    %v2562 = vunpack.c.l.s8.bf16 %v1842
    %v2563 = vunpack.c.l.s8.bf16 %v1843
    %v2564 = vunpack.c.l.s8.bf16 %v1844
    %v2565 = vunpack.c.l.s8.bf16 %v1845
    %v2566 = vunpack.c.l.s8.bf16 %v1846
    %v2567 = vunpack.c.l.s8.bf16 %v1847
    %v2568 = vunpack.c.l.s8.bf16 %v1848
    %v2569 = vunpack.c.l.s8.bf16 %v1849
    %v2570 = vunpack.c.l.s8.bf16 %v1850
    %v2571 = vunpack.c.l.s8.bf16 %v1851
    %v2572 = vunpack.c.h.s8.bf16 %v1836
    %v2573 = vunpack.c.h.s8.bf16 %v1837
    %v2574 = vunpack.c.h.s8.bf16 %v1838
    %v2575 = vunpack.c.h.s8.bf16 %v1839
    %v2576 = vunpack.c.h.s8.bf16 %v1840
    %v2577 = vunpack.c.h.s8.bf16 %v1841
    %v2578 = vunpack.c.h.s8.bf16 %v1842
    %v2579 = vunpack.c.h.s8.bf16 %v1843
    %v2580 = vunpack.c.h.s8.bf16 %v1844
    %v2581 = vunpack.c.h.s8.bf16 %v1845
    %v2582 = vunpack.c.h.s8.bf16 %v1846
    %v2583 = vunpack.c.h.s8.bf16 %v1847
    %v2584 = vunpack.c.h.s8.bf16 %v1848
    %v2585 = vunpack.c.h.s8.bf16 %v1849
    %v2586 = vunpack.c.h.s8.bf16 %v1850
    %v2587 = vunpack.c.h.s8.bf16 %v1851
    %v2588 = vunpack.c.l.s8.bf16 %v1852
    %v2589 = vunpack.c.l.s8.bf16 %v1853
    %v2590 = vunpack.c.l.s8.bf16 %v1854
    %v2591 = vunpack.c.l.s8.bf16 %v1855
    %v2592 = vunpack.c.l.s8.bf16 %v1856
    %v2593 = vunpack.c.l.s8.bf16 %v1857
    %v2594 = vunpack.c.l.s8.bf16 %v1858
    %v2595 = vunpack.c.l.s8.bf16 %v1859
    %v2596 = vunpack.c.l.s8.bf16 %v1860
    %v2597 = vunpack.c.l.s8.bf16 %v1861
    %v2598 = vunpack.c.l.s8.bf16 %v1862
    %v2599 = vunpack.c.l.s8.bf16 %v1863
    %v2600 = vunpack.c.l.s8.bf16 %v1864
    %v2601 = vunpack.c.l.s8.bf16 %v1865
    %v2602 = vunpack.c.l.s8.bf16 %v1866
    %v2603 = vunpack.c.l.s8.bf16 %v1867
    %v2604 = vunpack.c.h.s8.bf16 %v1852
    %v2605 = vunpack.c.h.s8.bf16 %v1853
    %v2606 = vunpack.c.h.s8.bf16 %v1854
    %v2607 = vunpack.c.h.s8.bf16 %v1855
    %v2608 = vunpack.c.h.s8.bf16 %v1856
    %v2609 = vunpack.c.h.s8.bf16 %v1857
    %v2610 = vunpack.c.h.s8.bf16 %v1858
    %v2611 = vunpack.c.h.s8.bf16 %v1859
    %v2612 = vunpack.c.h.s8.bf16 %v1860
    %v2613 = vunpack.c.h.s8.bf16 %v1861
    %v2614 = vunpack.c.h.s8.bf16 %v1862
    %v2615 = vunpack.c.h.s8.bf16 %v1863
    %v2616 = vunpack.c.h.s8.bf16 %v1864
    %v2617 = vunpack.c.h.s8.bf16 %v1865
    %v2618 = vunpack.c.h.s8.bf16 %v1866
    %v2619 = vunpack.c.h.s8.bf16 %v1867
    %v2620 = vunpack.c.l.s8.bf16 %v1868
    %v2621 = vunpack.c.l.s8.bf16 %v1869
    %v2622 = vunpack.c.l.s8.bf16 %v1870
    %v2623 = vunpack.c.l.s8.bf16 %v1871
    %v2624 = vunpack.c.l.s8.bf16 %v1872
    %v2625 = vunpack.c.l.s8.bf16 %v1873
    %v2626 = vunpack.c.l.s8.bf16 %v1874
    %v2627 = vunpack.c.l.s8.bf16 %v1875
    %v2628 = vunpack.c.l.s8.bf16 %v1876
    %v2629 = vunpack.c.l.s8.bf16 %v1877
    %v2630 = vunpack.c.l.s8.bf16 %v1878
    %v2631 = vunpack.c.l.s8.bf16 %v1879
    %v2632 = vunpack.c.l.s8.bf16 %v1880
    %v2633 = vunpack.c.l.s8.bf16 %v1881
    %v2634 = vunpack.c.l.s8.bf16 %v1882
    %v2635 = vunpack.c.l.s8.bf16 %v1883
    %v2636 = vunpack.c.h.s8.bf16 %v1868
    %v2637 = vunpack.c.h.s8.bf16 %v1869
    %v2638 = vunpack.c.h.s8.bf16 %v1870
    %v2639 = vunpack.c.h.s8.bf16 %v1871
    %v2640 = vunpack.c.h.s8.bf16 %v1872
    %v2641 = vunpack.c.h.s8.bf16 %v1873
    %v2642 = vunpack.c.h.s8.bf16 %v1874
    %v2643 = vunpack.c.h.s8.bf16 %v1875
    %v2644 = vunpack.c.h.s8.bf16 %v1876
    %v2645 = vunpack.c.h.s8.bf16 %v1877
    %v2646 = vunpack.c.h.s8.bf16 %v1878
    %v2647 = vunpack.c.h.s8.bf16 %v1879
    %v2648 = vunpack.c.h.s8.bf16 %v1880
    %v2649 = vunpack.c.h.s8.bf16 %v1881
    %v2650 = vunpack.c.h.s8.bf16 %v1882
    %v2651 = vunpack.c.h.s8.bf16 %v1883
    %v2652 = vunpack.c.l.s8.bf16 %v1884
    %v2653 = vunpack.c.l.s8.bf16 %v1885
    %v2654 = vunpack.c.l.s8.bf16 %v1886
    %v2655 = vunpack.c.l.s8.bf16 %v1887
    %v2656 = vunpack.c.l.s8.bf16 %v1888
    %v2657 = vunpack.c.l.s8.bf16 %v1889
    %v2658 = vunpack.c.l.s8.bf16 %v1890
    %v2659 = vunpack.c.l.s8.bf16 %v1891
    %v2660 = vunpack.c.l.s8.bf16 %v1892
    %v2661 = vunpack.c.l.s8.bf16 %v1893
    %v2662 = vunpack.c.l.s8.bf16 %v1894
    %v2663 = vunpack.c.l.s8.bf16 %v1895
    %v2664 = vunpack.c.l.s8.bf16 %v1896
    %v2665 = vunpack.c.l.s8.bf16 %v1897
    %v2666 = vunpack.c.l.s8.bf16 %v1898
    %v2667 = vunpack.c.l.s8.bf16 %v1899
    %v2668 = vunpack.c.h.s8.bf16 %v1884
    %v2669 = vunpack.c.h.s8.bf16 %v1885
    %v2670 = vunpack.c.h.s8.bf16 %v1886
    %v2671 = vunpack.c.h.s8.bf16 %v1887
    %v2672 = vunpack.c.h.s8.bf16 %v1888
    %v2673 = vunpack.c.h.s8.bf16 %v1889
    %v2674 = vunpack.c.h.s8.bf16 %v1890
    %v2675 = vunpack.c.h.s8.bf16 %v1891
    %v2676 = vunpack.c.h.s8.bf16 %v1892
    %v2677 = vunpack.c.h.s8.bf16 %v1893
    %v2678 = vunpack.c.h.s8.bf16 %v1894
    %v2679 = vunpack.c.h.s8.bf16 %v1895
    %v2680 = vunpack.c.h.s8.bf16 %v1896
    %v2681 = vunpack.c.h.s8.bf16 %v1897
    %v2682 = vunpack.c.h.s8.bf16 %v1898
    %v2683 = vunpack.c.h.s8.bf16 %v1899
    %v2684 = vunpack.c.l.s8.bf16 %v1900
    %v2685 = vunpack.c.l.s8.bf16 %v1901
    %v2686 = vunpack.c.l.s8.bf16 %v1902
    %v2687 = vunpack.c.l.s8.bf16 %v1903
    %v2688 = vunpack.c.l.s8.bf16 %v1904
    %v2689 = vunpack.c.l.s8.bf16 %v1905
    %v2690 = vunpack.c.l.s8.bf16 %v1906
    %v2691 = vunpack.c.l.s8.bf16 %v1907
    %v2692 = vunpack.c.l.s8.bf16 %v1908
    %v2693 = vunpack.c.l.s8.bf16 %v1909
    %v2694 = vunpack.c.l.s8.bf16 %v1910
    %v2695 = vunpack.c.l.s8.bf16 %v1911
    %v2696 = vunpack.c.l.s8.bf16 %v1912
    %v2697 = vunpack.c.l.s8.bf16 %v1913
    %v2698 = vunpack.c.l.s8.bf16 %v1914
    %v2699 = vunpack.c.l.s8.bf16 %v1915
    %v2700 = vunpack.c.h.s8.bf16 %v1900
    %v2701 = vunpack.c.h.s8.bf16 %v1901
    %v2702 = vunpack.c.h.s8.bf16 %v1902
    %v2703 = vunpack.c.h.s8.bf16 %v1903
    %v2704 = vunpack.c.h.s8.bf16 %v1904
    %v2705 = vunpack.c.h.s8.bf16 %v1905
    %v2706 = vunpack.c.h.s8.bf16 %v1906
    %v2707 = vunpack.c.h.s8.bf16 %v1907
    %v2708 = vunpack.c.h.s8.bf16 %v1908
    %v2709 = vunpack.c.h.s8.bf16 %v1909
    %v2710 = vunpack.c.h.s8.bf16 %v1910
    %v2711 = vunpack.c.h.s8.bf16 %v1911
    %v2712 = vunpack.c.h.s8.bf16 %v1912
    %v2713 = vunpack.c.h.s8.bf16 %v1913
    %v2714 = vunpack.c.h.s8.bf16 %v1914
    %v2715 = vunpack.c.h.s8.bf16 %v1915
    %v2716 = vunpack.c.l.s8.bf16 %v1916
    %v2717 = vunpack.c.l.s8.bf16 %v1917
    %v2718 = vunpack.c.l.s8.bf16 %v1918
    %v2719 = vunpack.c.l.s8.bf16 %v1919
    %v2720 = vunpack.c.l.s8.bf16 %v1920
    %v2721 = vunpack.c.l.s8.bf16 %v1921
    %v2722 = vunpack.c.l.s8.bf16 %v1922
    %v2723 = vunpack.c.l.s8.bf16 %v1923
    %v2724 = vunpack.c.l.s8.bf16 %v1924
    %v2725 = vunpack.c.l.s8.bf16 %v1925
    %v2726 = vunpack.c.l.s8.bf16 %v1926
    %v2727 = vunpack.c.l.s8.bf16 %v1927
    %v2728 = vunpack.c.l.s8.bf16 %v1928
    %v2729 = vunpack.c.l.s8.bf16 %v1929
    %v2730 = vunpack.c.l.s8.bf16 %v1930
    %v2731 = vunpack.c.l.s8.bf16 %v1931
    %v2732 = vunpack.c.h.s8.bf16 %v1916
    %v2733 = vunpack.c.h.s8.bf16 %v1917
    %v2734 = vunpack.c.h.s8.bf16 %v1918
    %v2735 = vunpack.c.h.s8.bf16 %v1919
    %v2736 = vunpack.c.h.s8.bf16 %v1920
    %v2737 = vunpack.c.h.s8.bf16 %v1921
    %v2738 = vunpack.c.h.s8.bf16 %v1922
    %v2739 = vunpack.c.h.s8.bf16 %v1923
    %v2740 = vunpack.c.h.s8.bf16 %v1924
    %v2741 = vunpack.c.h.s8.bf16 %v1925
    %v2742 = vunpack.c.h.s8.bf16 %v1926
    %v2743 = vunpack.c.h.s8.bf16 %v1927
    %v2744 = vunpack.c.h.s8.bf16 %v1928
    %v2745 = vunpack.c.h.s8.bf16 %v1929
    %v2746 = vunpack.c.h.s8.bf16 %v1930
    %v2747 = vunpack.c.h.s8.bf16 %v1931
    %v2748 = vunpack.c.l.s8.bf16 %v1932
    %v2749 = vunpack.c.l.s8.bf16 %v1933
    %v2750 = vunpack.c.l.s8.bf16 %v1934
    %v2751 = vunpack.c.l.s8.bf16 %v1935
    %v2752 = vunpack.c.l.s8.bf16 %v1936
    %v2753 = vunpack.c.l.s8.bf16 %v1937
    %v2754 = vunpack.c.l.s8.bf16 %v1938
    %v2755 = vunpack.c.l.s8.bf16 %v1939
    %v2756 = vunpack.c.l.s8.bf16 %v1940
    %v2757 = vunpack.c.l.s8.bf16 %v1941
    %v2758 = vunpack.c.l.s8.bf16 %v1942
    %v2759 = vunpack.c.l.s8.bf16 %v1943
    %v2760 = vunpack.c.l.s8.bf16 %v1944
    %v2761 = vunpack.c.l.s8.bf16 %v1945
    %v2762 = vunpack.c.l.s8.bf16 %v1946
    %v2763 = vunpack.c.l.s8.bf16 %v1947
    %v2764 = vunpack.c.h.s8.bf16 %v1932
    %v2765 = vunpack.c.h.s8.bf16 %v1933
    %v2766 = vunpack.c.h.s8.bf16 %v1934
    %v2767 = vunpack.c.h.s8.bf16 %v1935
    %v2768 = vunpack.c.h.s8.bf16 %v1936
    %v2769 = vunpack.c.h.s8.bf16 %v1937
    %v2770 = vunpack.c.h.s8.bf16 %v1938
    %v2771 = vunpack.c.h.s8.bf16 %v1939
    %v2772 = vunpack.c.h.s8.bf16 %v1940
    %v2773 = vunpack.c.h.s8.bf16 %v1941
    %v2774 = vunpack.c.h.s8.bf16 %v1942
    %v2775 = vunpack.c.h.s8.bf16 %v1943
    %v2776 = vunpack.c.h.s8.bf16 %v1944
    %v2777 = vunpack.c.h.s8.bf16 %v1945
    %v2778 = vunpack.c.h.s8.bf16 %v1946
    %v2779 = vunpack.c.h.s8.bf16 %v1947
    %v2780 = vunpack.c.l.s8.bf16 %v1948
    %v2781 = vunpack.c.l.s8.bf16 %v1949
    %v2782 = vunpack.c.l.s8.bf16 %v1950
    %v2783 = vunpack.c.l.s8.bf16 %v1951
    %v2784 = vunpack.c.l.s8.bf16 %v1952
    %v2785 = vunpack.c.l.s8.bf16 %v1953
    %v2786 = vunpack.c.l.s8.bf16 %v1954
    %v2787 = vunpack.c.l.s8.bf16 %v1955
    %v2788 = vunpack.c.l.s8.bf16 %v1956
    %v2789 = vunpack.c.l.s8.bf16 %v1957
    %v2790 = vunpack.c.l.s8.bf16 %v1958
    %v2791 = vunpack.c.l.s8.bf16 %v1959
    %v2792 = vunpack.c.l.s8.bf16 %v1960
    %v2793 = vunpack.c.l.s8.bf16 %v1961
    %v2794 = vunpack.c.l.s8.bf16 %v1962
    %v2795 = vunpack.c.l.s8.bf16 %v1963
    %v2796 = vunpack.c.h.s8.bf16 %v1948
    %v2797 = vunpack.c.h.s8.bf16 %v1949
    %v2798 = vunpack.c.h.s8.bf16 %v1950
    %v2799 = vunpack.c.h.s8.bf16 %v1951
    %v2800 = vunpack.c.h.s8.bf16 %v1952
    %v2801 = vunpack.c.h.s8.bf16 %v1953
    %v2802 = vunpack.c.h.s8.bf16 %v1954
    %v2803 = vunpack.c.h.s8.bf16 %v1955
    %v2804 = vunpack.c.h.s8.bf16 %v1956
    %v2805 = vunpack.c.h.s8.bf16 %v1957
    %v2806 = vunpack.c.h.s8.bf16 %v1958
    %v2807 = vunpack.c.h.s8.bf16 %v1959
    %v2808 = vunpack.c.h.s8.bf16 %v1960
    %v2809 = vunpack.c.h.s8.bf16 %v1961
    %v2810 = vunpack.c.h.s8.bf16 %v1962
    %v2811 = vunpack.c.h.s8.bf16 %v1963
    %v2812 = vunpack.c.l.s8.bf16 %v1964
    %v2813 = vunpack.c.l.s8.bf16 %v1965
    %v2814 = vunpack.c.l.s8.bf16 %v1966
    %v2815 = vunpack.c.l.s8.bf16 %v1967
    %v2816 = vunpack.c.l.s8.bf16 %v1968
    %v2817 = vunpack.c.l.s8.bf16 %v1969
    %v2818 = vunpack.c.l.s8.bf16 %v1970
    %v2819 = vunpack.c.l.s8.bf16 %v1971
    %v2820 = vunpack.c.l.s8.bf16 %v1972
    %v2821 = vunpack.c.l.s8.bf16 %v1973
    %v2822 = vunpack.c.l.s8.bf16 %v1974
    %v2823 = vunpack.c.l.s8.bf16 %v1975
    %v2824 = vunpack.c.l.s8.bf16 %v1976
    %v2825 = vunpack.c.l.s8.bf16 %v1977
    %v2826 = vunpack.c.l.s8.bf16 %v1978
    %v2827 = vunpack.c.l.s8.bf16 %v1979
    %v2828 = vunpack.c.h.s8.bf16 %v1964
    %v2829 = vunpack.c.h.s8.bf16 %v1965
    %v2830 = vunpack.c.h.s8.bf16 %v1966
    %v2831 = vunpack.c.h.s8.bf16 %v1967
    %v2832 = vunpack.c.h.s8.bf16 %v1968
    %v2833 = vunpack.c.h.s8.bf16 %v1969
    %v2834 = vunpack.c.h.s8.bf16 %v1970
    %v2835 = vunpack.c.h.s8.bf16 %v1971
    %v2836 = vunpack.c.h.s8.bf16 %v1972
    %v2837 = vunpack.c.h.s8.bf16 %v1973
    %v2838 = vunpack.c.h.s8.bf16 %v1974
    %v2839 = vunpack.c.h.s8.bf16 %v1975
    %v2840 = vunpack.c.h.s8.bf16 %v1976
    %v2841 = vunpack.c.h.s8.bf16 %v1977
    %v2842 = vunpack.c.h.s8.bf16 %v1978
    %v2843 = vunpack.c.h.s8.bf16 %v1979
    %v2844 = vunpack.c.l.s8.bf16 %v1980
    %v2845 = vunpack.c.l.s8.bf16 %v1981
    %v2846 = vunpack.c.l.s8.bf16 %v1982
    %v2847 = vunpack.c.l.s8.bf16 %v1983
    %v2848 = vunpack.c.l.s8.bf16 %v1984
    %v2849 = vunpack.c.l.s8.bf16 %v1985
    %v2850 = vunpack.c.l.s8.bf16 %v1986
    %v2851 = vunpack.c.l.s8.bf16 %v1987
    %v2852 = vunpack.c.l.s8.bf16 %v1988
    %v2853 = vunpack.c.l.s8.bf16 %v1989
    %v2854 = vunpack.c.l.s8.bf16 %v1990
    %v2855 = vunpack.c.l.s8.bf16 %v1991
    %v2856 = vunpack.c.l.s8.bf16 %v1992
    %v2857 = vunpack.c.l.s8.bf16 %v1993
    %v2858 = vunpack.c.l.s8.bf16 %v1994
    %v2859 = vunpack.c.l.s8.bf16 %v1995
    %v2860 = vunpack.c.h.s8.bf16 %v1980
    %v2861 = vunpack.c.h.s8.bf16 %v1981
    %v2862 = vunpack.c.h.s8.bf16 %v1982
    %v2863 = vunpack.c.h.s8.bf16 %v1983
    %v2864 = vunpack.c.h.s8.bf16 %v1984
    %v2865 = vunpack.c.h.s8.bf16 %v1985
    %v2866 = vunpack.c.h.s8.bf16 %v1986
    %v2867 = vunpack.c.h.s8.bf16 %v1987
    %v2868 = vunpack.c.h.s8.bf16 %v1988
    %v2869 = vunpack.c.h.s8.bf16 %v1989
    %v2870 = vunpack.c.h.s8.bf16 %v1990
    %v2871 = vunpack.c.h.s8.bf16 %v1991
    %v2872 = vunpack.c.h.s8.bf16 %v1992
    %v2873 = vunpack.c.h.s8.bf16 %v1993
    %v2874 = vunpack.c.h.s8.bf16 %v1994
    %v2875 = vunpack.c.h.s8.bf16 %v1995
    %v2876 = vunpack.c.l.s8.bf16 %v1996
    %v2877 = vunpack.c.l.s8.bf16 %v1997
    %v2878 = vunpack.c.l.s8.bf16 %v1998
    %v2879 = vunpack.c.l.s8.bf16 %v1999
    %v2880 = vunpack.c.l.s8.bf16 %v2000
    %v2881 = vunpack.c.l.s8.bf16 %v2001
    %v2882 = vunpack.c.l.s8.bf16 %v2002
    %v2883 = vunpack.c.l.s8.bf16 %v2003
    %v2884 = vunpack.c.l.s8.bf16 %v2004
    %v2885 = vunpack.c.l.s8.bf16 %v2005
    %v2886 = vunpack.c.l.s8.bf16 %v2006
    %v2887 = vunpack.c.l.s8.bf16 %v2007
    %v2888 = vunpack.c.l.s8.bf16 %v2008
    %v2889 = vunpack.c.l.s8.bf16 %v2009
    %v2890 = vunpack.c.l.s8.bf16 %v2010
    %v2891 = vunpack.c.l.s8.bf16 %v2011
    %v2892 = vunpack.c.h.s8.bf16 %v1996
    %v2893 = vunpack.c.h.s8.bf16 %v1997
    %v2894 = vunpack.c.h.s8.bf16 %v1998
    %v2895 = vunpack.c.h.s8.bf16 %v1999
    %v2896 = vunpack.c.h.s8.bf16 %v2000
    %v2897 = vunpack.c.h.s8.bf16 %v2001
    %v2898 = vunpack.c.h.s8.bf16 %v2002
    %v2899 = vunpack.c.h.s8.bf16 %v2003
    %v2900 = vunpack.c.h.s8.bf16 %v2004
    %v2901 = vunpack.c.h.s8.bf16 %v2005
    %v2902 = vunpack.c.h.s8.bf16 %v2006
    %v2903 = vunpack.c.h.s8.bf16 %v2007
    %v2904 = vunpack.c.h.s8.bf16 %v2008
    %v2905 = vunpack.c.h.s8.bf16 %v2009
    %v2906 = vunpack.c.h.s8.bf16 %v2010
    %v2907 = vunpack.c.h.s8.bf16 %v2011
    %v2908 = vunpack.c.l.s8.bf16 %v2012
    %v2909 = vunpack.c.l.s8.bf16 %v2013
    %v2910 = vunpack.c.l.s8.bf16 %v2014
    %v2911 = vunpack.c.l.s8.bf16 %v2015
    %v2912 = vunpack.c.l.s8.bf16 %v2016
    %v2913 = vunpack.c.l.s8.bf16 %v2017
    %v2914 = vunpack.c.l.s8.bf16 %v2018
    %v2915 = vunpack.c.l.s8.bf16 %v2019
    %v2916 = vunpack.c.l.s8.bf16 %v2020
    %v2917 = vunpack.c.l.s8.bf16 %v2021
    %v2918 = vunpack.c.l.s8.bf16 %v2022
    %v2919 = vunpack.c.l.s8.bf16 %v2023
    %v2920 = vunpack.c.l.s8.bf16 %v2024
    %v2921 = vunpack.c.l.s8.bf16 %v2025
    %v2922 = vunpack.c.l.s8.bf16 %v2026
    %v2923 = vunpack.c.l.s8.bf16 %v2027
    %v2924 = vunpack.c.h.s8.bf16 %v2012
    %v2925 = vunpack.c.h.s8.bf16 %v2013
    %v2926 = vunpack.c.h.s8.bf16 %v2014
    %v2927 = vunpack.c.h.s8.bf16 %v2015
    %v2928 = vunpack.c.h.s8.bf16 %v2016
    %v2929 = vunpack.c.h.s8.bf16 %v2017
    %v2930 = vunpack.c.h.s8.bf16 %v2018
    %v2931 = vunpack.c.h.s8.bf16 %v2019
    %v2932 = vunpack.c.h.s8.bf16 %v2020
    %v2933 = vunpack.c.h.s8.bf16 %v2021
    %v2934 = vunpack.c.h.s8.bf16 %v2022
    %v2935 = vunpack.c.h.s8.bf16 %v2023
    %v2936 = vunpack.c.h.s8.bf16 %v2024
    %v2937 = vunpack.c.h.s8.bf16 %v2025
    %v2938 = vunpack.c.h.s8.bf16 %v2026
    %v2939 = vunpack.c.h.s8.bf16 %v2027
    %v2940 = vunpack.c.l.s8.bf16 %v2028
    %v2941 = vunpack.c.l.s8.bf16 %v2029
    %v2942 = vunpack.c.l.s8.bf16 %v2030
    %v2943 = vunpack.c.l.s8.bf16 %v2031
    %v2944 = vunpack.c.l.s8.bf16 %v2032
    %v2945 = vunpack.c.l.s8.bf16 %v2033
    %v2946 = vunpack.c.l.s8.bf16 %v2034
    %v2947 = vunpack.c.l.s8.bf16 %v2035
    %v2948 = vunpack.c.l.s8.bf16 %v2036
    %v2949 = vunpack.c.l.s8.bf16 %v2037
    %v2950 = vunpack.c.l.s8.bf16 %v2038
    %v2951 = vunpack.c.l.s8.bf16 %v2039
    %v2952 = vunpack.c.l.s8.bf16 %v2040
    %v2953 = vunpack.c.l.s8.bf16 %v2041
    %v2954 = vunpack.c.l.s8.bf16 %v2042
    %v2955 = vunpack.c.l.s8.bf16 %v2043
    %v2956 = vunpack.c.h.s8.bf16 %v2028
    %v2957 = vunpack.c.h.s8.bf16 %v2029
    %v2958 = vunpack.c.h.s8.bf16 %v2030
    %v2959 = vunpack.c.h.s8.bf16 %v2031
    %v2960 = vunpack.c.h.s8.bf16 %v2032
    %v2961 = vunpack.c.h.s8.bf16 %v2033
    %v2962 = vunpack.c.h.s8.bf16 %v2034
    %v2963 = vunpack.c.h.s8.bf16 %v2035
    %v2964 = vunpack.c.h.s8.bf16 %v2036
    %v2965 = vunpack.c.h.s8.bf16 %v2037
    %v2966 = vunpack.c.h.s8.bf16 %v2038
    %v2967 = vunpack.c.h.s8.bf16 %v2039
    %v2968 = vunpack.c.h.s8.bf16 %v2040
    %v2969 = vunpack.c.h.s8.bf16 %v2041
    %v2970 = vunpack.c.h.s8.bf16 %v2042
    %v2971 = vunpack.c.h.s8.bf16 %v2043
    %v2972 = vunpack.c.l.s8.bf16 %v2044
    %v2973 = vunpack.c.l.s8.bf16 %v2045
    %v2974 = vunpack.c.l.s8.bf16 %v2046
    %v2975 = vunpack.c.l.s8.bf16 %v2047
    %v2976 = vunpack.c.l.s8.bf16 %v2048
    %v2977 = vunpack.c.l.s8.bf16 %v2049
    %v2978 = vunpack.c.l.s8.bf16 %v2050
    %v2979 = vunpack.c.l.s8.bf16 %v2051
    %v2980 = vunpack.c.l.s8.bf16 %v2052
    %v2981 = vunpack.c.l.s8.bf16 %v2053
    %v2982 = vunpack.c.l.s8.bf16 %v2054
    %v2983 = vunpack.c.l.s8.bf16 %v2055
    %v2984 = vunpack.c.l.s8.bf16 %v2056
    %v2985 = vunpack.c.l.s8.bf16 %v2057
    %v2986 = vunpack.c.l.s8.bf16 %v2058
    %v2987 = vunpack.c.l.s8.bf16 %v2059
    %v2988 = vunpack.c.h.s8.bf16 %v2044
    %v2989 = vunpack.c.h.s8.bf16 %v2045
    %v2990 = vunpack.c.h.s8.bf16 %v2046
    %v2991 = vunpack.c.h.s8.bf16 %v2047
    %v2992 = vunpack.c.h.s8.bf16 %v2048
    %v2993 = vunpack.c.h.s8.bf16 %v2049
    %v2994 = vunpack.c.h.s8.bf16 %v2050
    %v2995 = vunpack.c.h.s8.bf16 %v2051
    %v2996 = vunpack.c.h.s8.bf16 %v2052
    %v2997 = vunpack.c.h.s8.bf16 %v2053
    %v2998 = vunpack.c.h.s8.bf16 %v2054
    %v2999 = vunpack.c.h.s8.bf16 %v2055
    %v3000 = vunpack.c.h.s8.bf16 %v2056
    %v3001 = vunpack.c.h.s8.bf16 %v2057
    %v3002 = vunpack.c.h.s8.bf16 %v2058
    %v3003 = vunpack.c.h.s8.bf16 %v2059
    %v3004 = vunpack.c.l.s8.bf16 %v2060
    %v3005 = vunpack.c.l.s8.bf16 %v2061
    %v3006 = vunpack.c.l.s8.bf16 %v2062
    %v3007 = vunpack.c.l.s8.bf16 %v2063
    %v3008 = vunpack.c.l.s8.bf16 %v2064
    %v3009 = vunpack.c.l.s8.bf16 %v2065
    %v3010 = vunpack.c.l.s8.bf16 %v2066
    %v3011 = vunpack.c.l.s8.bf16 %v2067
    %v3012 = vunpack.c.l.s8.bf16 %v2068
    %v3013 = vunpack.c.l.s8.bf16 %v2069
    %v3014 = vunpack.c.l.s8.bf16 %v2070
    %v3015 = vunpack.c.l.s8.bf16 %v2071
    %v3016 = vunpack.c.l.s8.bf16 %v2072
    %v3017 = vunpack.c.l.s8.bf16 %v2073
    %v3018 = vunpack.c.l.s8.bf16 %v2074
    %v3019 = vunpack.c.l.s8.bf16 %v2075
    %v3020 = vunpack.c.h.s8.bf16 %v2060
    %v3021 = vunpack.c.h.s8.bf16 %v2061
    %v3022 = vunpack.c.h.s8.bf16 %v2062
    %v3023 = vunpack.c.h.s8.bf16 %v2063
    %v3024 = vunpack.c.h.s8.bf16 %v2064
    %v3025 = vunpack.c.h.s8.bf16 %v2065
    %v3026 = vunpack.c.h.s8.bf16 %v2066
    %v3027 = vunpack.c.h.s8.bf16 %v2067
    %v3028 = vunpack.c.h.s8.bf16 %v2068
    %v3029 = vunpack.c.h.s8.bf16 %v2069
    %v3030 = vunpack.c.h.s8.bf16 %v2070
    %v3031 = vunpack.c.h.s8.bf16 %v2071
    %v3032 = vunpack.c.h.s8.bf16 %v2072
    %v3033 = vunpack.c.h.s8.bf16 %v2073
    %v3034 = vunpack.c.h.s8.bf16 %v2074
    %v3035 = vunpack.c.h.s8.bf16 %v2075
    %v3036 = vunpack.c.l.s8.bf16 %v2076
    %v3037 = vunpack.c.l.s8.bf16 %v2077
    %v3038 = vunpack.c.l.s8.bf16 %v2078
    %v3039 = vunpack.c.l.s8.bf16 %v2079
    %v3040 = vunpack.c.l.s8.bf16 %v2080
    %v3041 = vunpack.c.l.s8.bf16 %v2081
    %v3042 = vunpack.c.l.s8.bf16 %v2082
    %v3043 = vunpack.c.l.s8.bf16 %v2083
    %v3044 = vunpack.c.l.s8.bf16 %v2084
    %v3045 = vunpack.c.l.s8.bf16 %v2085
    %v3046 = vunpack.c.l.s8.bf16 %v2086
    %v3047 = vunpack.c.l.s8.bf16 %v2087
    %v3048 = vunpack.c.l.s8.bf16 %v2088
    %v3049 = vunpack.c.l.s8.bf16 %v2089
    %v3050 = vunpack.c.l.s8.bf16 %v2090
    %v3051 = vunpack.c.l.s8.bf16 %v2091
    %v3052 = vunpack.c.h.s8.bf16 %v2076
    %v3053 = vunpack.c.h.s8.bf16 %v2077
    %v3054 = vunpack.c.h.s8.bf16 %v2078
    %v3055 = vunpack.c.h.s8.bf16 %v2079
    %v3056 = vunpack.c.h.s8.bf16 %v2080
    %v3057 = vunpack.c.h.s8.bf16 %v2081
    %v3058 = vunpack.c.h.s8.bf16 %v2082
    %v3059 = vunpack.c.h.s8.bf16 %v2083
    %v3060 = vunpack.c.h.s8.bf16 %v2084
    %v3061 = vunpack.c.h.s8.bf16 %v2085
    %v3062 = vunpack.c.h.s8.bf16 %v2086
    %v3063 = vunpack.c.h.s8.bf16 %v2087
    %v3064 = vunpack.c.h.s8.bf16 %v2088
    %v3065 = vunpack.c.h.s8.bf16 %v2089
    %v3066 = vunpack.c.h.s8.bf16 %v2090
    %v3067 = vunpack.c.h.s8.bf16 %v2091
    %v3068 = vunpack.c.l.s8.bf16 %v2092
    %v3069 = vunpack.c.l.s8.bf16 %v2093
    %v3070 = vunpack.c.l.s8.bf16 %v2094
    %v3071 = vunpack.c.l.s8.bf16 %v2095
    %v3072 = vunpack.c.l.s8.bf16 %v2096
    %v3073 = vunpack.c.l.s8.bf16 %v2097
    %v3074 = vunpack.c.l.s8.bf16 %v2098
    %v3075 = vunpack.c.l.s8.bf16 %v2099
    %v3076 = vunpack.c.l.s8.bf16 %v2100
    %v3077 = vunpack.c.l.s8.bf16 %v2101
    %v3078 = vunpack.c.l.s8.bf16 %v2102
    %v3079 = vunpack.c.l.s8.bf16 %v2103
    %v3080 = vunpack.c.l.s8.bf16 %v2104
    %v3081 = vunpack.c.l.s8.bf16 %v2105
    %v3082 = vunpack.c.l.s8.bf16 %v2106
    %v3083 = vunpack.c.l.s8.bf16 %v2107
    %v3084 = vunpack.c.h.s8.bf16 %v2092
    %v3085 = vunpack.c.h.s8.bf16 %v2093
    %v3086 = vunpack.c.h.s8.bf16 %v2094
    %v3087 = vunpack.c.h.s8.bf16 %v2095
    %v3088 = vunpack.c.h.s8.bf16 %v2096
    %v3089 = vunpack.c.h.s8.bf16 %v2097
    %v3090 = vunpack.c.h.s8.bf16 %v2098
    %v3091 = vunpack.c.h.s8.bf16 %v2099
    %v3092 = vunpack.c.h.s8.bf16 %v2100
    %v3093 = vunpack.c.h.s8.bf16 %v2101
    %v3094 = vunpack.c.h.s8.bf16 %v2102
    %v3095 = vunpack.c.h.s8.bf16 %v2103
    %v3096 = vunpack.c.h.s8.bf16 %v2104
    %v3097 = vunpack.c.h.s8.bf16 %v2105
    %v3098 = vunpack.c.h.s8.bf16 %v2106
    %v3099 = vunpack.c.h.s8.bf16 %v2107
    %v3100 = vunpack.c.l.s8.bf16 %v2108
    %v3101 = vunpack.c.l.s8.bf16 %v2109
    %v3102 = vunpack.c.l.s8.bf16 %v2110
    %v3103 = vunpack.c.l.s8.bf16 %v2111
    %v3104 = vunpack.c.l.s8.bf16 %v2112
    %v3105 = vunpack.c.l.s8.bf16 %v2113
    %v3106 = vunpack.c.l.s8.bf16 %v2114
    %v3107 = vunpack.c.l.s8.bf16 %v2115
    %v3108 = vunpack.c.l.s8.bf16 %v2116
    %v3109 = vunpack.c.l.s8.bf16 %v2117
    %v3110 = vunpack.c.l.s8.bf16 %v2118
    %v3111 = vunpack.c.l.s8.bf16 %v2119
    %v3112 = vunpack.c.l.s8.bf16 %v2120
    %v3113 = vunpack.c.l.s8.bf16 %v2121
    %v3114 = vunpack.c.l.s8.bf16 %v2122
    %v3115 = vunpack.c.l.s8.bf16 %v2123
    %v3116 = vunpack.c.h.s8.bf16 %v2108
    %v3117 = vunpack.c.h.s8.bf16 %v2109
    %v3118 = vunpack.c.h.s8.bf16 %v2110
    %v3119 = vunpack.c.h.s8.bf16 %v2111
    %v3120 = vunpack.c.h.s8.bf16 %v2112
    %v3121 = vunpack.c.h.s8.bf16 %v2113
    %v3122 = vunpack.c.h.s8.bf16 %v2114
    %v3123 = vunpack.c.h.s8.bf16 %v2115
    %v3124 = vunpack.c.h.s8.bf16 %v2116
    %v3125 = vunpack.c.h.s8.bf16 %v2117
    %v3126 = vunpack.c.h.s8.bf16 %v2118
    %v3127 = vunpack.c.h.s8.bf16 %v2119
    %v3128 = vunpack.c.h.s8.bf16 %v2120
    %v3129 = vunpack.c.h.s8.bf16 %v2121
    %v3130 = vunpack.c.h.s8.bf16 %v2122
    %v3131 = vunpack.c.h.s8.bf16 %v2123
    %v3132 = vunpack.c.l.s8.bf16 %v2124
    %v3133 = vunpack.c.l.s8.bf16 %v2125
    %v3134 = vunpack.c.l.s8.bf16 %v2126
    %v3135 = vunpack.c.l.s8.bf16 %v2127
    %v3136 = vunpack.c.l.s8.bf16 %v2128
    %v3137 = vunpack.c.l.s8.bf16 %v2129
    %v3138 = vunpack.c.l.s8.bf16 %v2130
    %v3139 = vunpack.c.l.s8.bf16 %v2131
    %v3140 = vunpack.c.l.s8.bf16 %v2132
    %v3141 = vunpack.c.l.s8.bf16 %v2133
    %v3142 = vunpack.c.l.s8.bf16 %v2134
    %v3143 = vunpack.c.l.s8.bf16 %v2135
    %v3144 = vunpack.c.l.s8.bf16 %v2136
    %v3145 = vunpack.c.l.s8.bf16 %v2137
    %v3146 = vunpack.c.l.s8.bf16 %v2138
    %v3147 = vunpack.c.l.s8.bf16 %v2139
    %v3148 = vunpack.c.h.s8.bf16 %v2124
    %v3149 = vunpack.c.h.s8.bf16 %v2125
    %v3150 = vunpack.c.h.s8.bf16 %v2126
    %v3151 = vunpack.c.h.s8.bf16 %v2127
    %v3152 = vunpack.c.h.s8.bf16 %v2128
    %v3153 = vunpack.c.h.s8.bf16 %v2129
    %v3154 = vunpack.c.h.s8.bf16 %v2130
    %v3155 = vunpack.c.h.s8.bf16 %v2131
    %v3156 = vunpack.c.h.s8.bf16 %v2132
    %v3157 = vunpack.c.h.s8.bf16 %v2133
    %v3158 = vunpack.c.h.s8.bf16 %v2134
    %v3159 = vunpack.c.h.s8.bf16 %v2135
    %v3160 = vunpack.c.h.s8.bf16 %v2136
    %v3161 = vunpack.c.h.s8.bf16 %v2137
    %v3162 = vunpack.c.h.s8.bf16 %v2138
    %v3163 = vunpack.c.h.s8.bf16 %v2139
    %3164 = vmatprep.subr.bf16.mxu0 %v2141
    %3165 = vmatpush1.bf16.msra.mxu0 %v2140
    %3166 = vmatprep.subr.bf16.mxu0 %v2157
    %3167 = vmatpush1.bf16.msra.mxu0 %v2156
    %3168 = vmatprep.subr.bf16.mxu0 %v2173
    %3169 = vmatpush1.bf16.msra.mxu0 %v2172
    %3170 = vmatprep.subr.bf16.mxu0 %v2189
    %3171 = vmatpush1.bf16.msra.mxu0 %v2188
    %3172 = vmatprep.subr.bf16.mxu0 %v2205
    %3173 = vmatpush1.bf16.msra.mxu0 %v2204
    %3174 = vmatprep.subr.bf16.mxu0 %v2221
    %3175 = vmatpush1.bf16.msra.mxu0 %v2220
    %3176 = vmatprep.subr.bf16.mxu0 %v2237
    %3177 = vmatpush1.bf16.msra.mxu0 %v2236
    %3178 = vmatprep.subr.bf16.mxu0 %v2253
    %3179 = vmatpush1.bf16.msra.mxu0 %v2252
    %3180 = vmatprep.subr.bf16.mxu0 %v2269
    %3181 = vmatpush1.bf16.msra.mxu0 %v2268
    %3182 = vmatprep.subr.bf16.mxu0 %v2285
    %3183 = vmatpush1.bf16.msra.mxu0 %v2284
    %3184 = vmatprep.subr.bf16.mxu0 %v2301
    %3185 = vmatpush1.bf16.msra.mxu0 %v2300
    %3186 = vmatprep.subr.bf16.mxu0 %v2317
    %3187 = vmatpush1.bf16.msra.mxu0 %v2316
    %3188 = vmatprep.subr.bf16.mxu0 %v2333
    %3189 = vmatpush1.bf16.msra.mxu0 %v2332
    %3190 = vmatprep.subr.bf16.mxu0 %v2349
    %3191 = vmatpush1.bf16.msra.mxu0 %v2348
    %3192 = vmatprep.subr.bf16.mxu0 %v2365
    %3193 = vmatpush1.bf16.msra.mxu0 %v2364
    %3194 = vmatprep.subr.bf16.mxu0 %v2381
    %3195 = vmatpush1.bf16.msra.mxu0 %v2380
    %3196 = vmatprep.mubr.bf16.mxu0 %v1621
    %3197 = vmatmul.mubr.bf16.gmra.mrb[0].mxu0 %v1620
    %v3198 = vpop.f32.mrb[0].mxu0
    %v3199 = vadd.f32 0.0, %v3198
    %v3200 = vpop.f32.mrb[0].mxu0
    %v3201 = vadd.f32 0.0, %v3200
    %v3202 = vpop.f32.mrb[0].mxu0
    %v3203 = vpop.f32.mrb[0].mxu0
    %3204 = vdwg.mxu0
    %3205 = vmatprep.subr.bf16.mxu0 %v2397
    %3206 = vmatpush1.bf16.msra.mxu0 %v2396
    %3207 = vmatprep.subr.bf16.mxu0 %v2413
    %3208 = vmatpush1.bf16.msra.mxu0 %v2412
    %3209 = vmatprep.subr.bf16.mxu0 %v2429
    %3210 = vmatpush1.bf16.msra.mxu0 %v2428
    %3211 = vmatprep.subr.bf16.mxu0 %v2445
    %3212 = vmatpush1.bf16.msra.mxu0 %v2444
    %3213 = vmatprep.subr.bf16.mxu0 %v2461
    %3214 = vmatpush1.bf16.msra.mxu0 %v2460
    %3215 = vmatprep.subr.bf16.mxu0 %v2477
    %3216 = vmatpush1.bf16.msra.mxu0 %v2476
    %3217 = vmatprep.subr.bf16.mxu0 %v2493
    %3218 = vmatpush1.bf16.msra.mxu0 %v2492
    %3219 = vmatprep.subr.bf16.mxu0 %v2509
    %3220 = vmatpush1.bf16.msra.mxu0 %v2508
    %3221 = vmatprep.subr.bf16.mxu0 %v2525
    %3222 = vmatpush1.bf16.msra.mxu0 %v2524
    %3223 = vmatprep.subr.bf16.mxu0 %v2541
    %3224 = vmatpush1.bf16.msra.mxu0 %v2540
    %3225 = vmatprep.subr.bf16.mxu0 %v2557
    %3226 = vmatpush1.bf16.msra.mxu0 %v2556
    %3227 = vmatprep.subr.bf16.mxu0 %v2573
    %3228 = vmatpush1.bf16.msra.mxu0 %v2572
    %3229 = vmatprep.subr.bf16.mxu0 %v2589
    %3230 = vmatpush1.bf16.msra.mxu0 %v2588
    %3231 = vmatprep.subr.bf16.mxu0 %v2605
    %3232 = vmatpush1.bf16.msra.mxu0 %v2604
    %3233 = vmatprep.subr.bf16.mxu0 %v2621
    %3234 = vmatpush1.bf16.msra.mxu0 %v2620
    %3235 = vmatprep.subr.bf16.mxu0 %v2637
    %3236 = vmatpush1.bf16.msra.mxu0 %v2636
    %3237 = vmatprep.mubr.bf16.mxu0 %v1623
    %3238 = vmatmul.mubr.bf16.gmra.mrb[0].mxu0 %v1622
    %v3239 = vpop.f32.mrb[0].mxu0
    %v3240 = vadd.f32 %v3199, %v3239
    %v3241 = vpop.f32.mrb[0].mxu0
    %v3242 = vadd.f32 %v3201, %v3241
    %v3243 = vpop.f32.mrb[0].mxu0
    %v3244 = vpop.f32.mrb[0].mxu0
    %3245 = vdwg.mxu0
    %3246 = vmatprep.subr.bf16.mxu0 %v2653
    %3247 = vmatpush1.bf16.msra.mxu0 %v2652
    %3248 = vmatprep.subr.bf16.mxu0 %v2669
    %3249 = vmatpush1.bf16.msra.mxu0 %v2668
    %3250 = vmatprep.subr.bf16.mxu0 %v2685
    %3251 = vmatpush1.bf16.msra.mxu0 %v2684
    %3252 = vmatprep.subr.bf16.mxu0 %v2701
    %3253 = vmatpush1.bf16.msra.mxu0 %v2700
    %3254 = vmatprep.subr.bf16.mxu0 %v2717
    %3255 = vmatpush1.bf16.msra.mxu0 %v2716
    %3256 = vmatprep.subr.bf16.mxu0 %v2733
    %3257 = vmatpush1.bf16.msra.mxu0 %v2732
    %3258 = vmatprep.subr.bf16.mxu0 %v2749
    %3259 = vmatpush1.bf16.msra.mxu0 %v2748
    %3260 = vmatprep.subr.bf16.mxu0 %v2765
    %3261 = vmatpush1.bf16.msra.mxu0 %v2764
    %3262 = vmatprep.subr.bf16.mxu0 %v2781
    %3263 = vmatpush1.bf16.msra.mxu0 %v2780
    %3264 = vmatprep.subr.bf16.mxu0 %v2797
    %3265 = vmatpush1.bf16.msra.mxu0 %v2796
    %3266 = vmatprep.subr.bf16.mxu0 %v2813
    %3267 = vmatpush1.bf16.msra.mxu0 %v2812
    %3268 = vmatprep.subr.bf16.mxu0 %v2829
    %3269 = vmatpush1.bf16.msra.mxu0 %v2828
    %3270 = vmatprep.subr.bf16.mxu0 %v2845
    %3271 = vmatpush1.bf16.msra.mxu0 %v2844
    %3272 = vmatprep.subr.bf16.mxu0 %v2861
    %3273 = vmatpush1.bf16.msra.mxu0 %v2860
    %3274 = vmatprep.subr.bf16.mxu0 %v2877
    %3275 = vmatpush1.bf16.msra.mxu0 %v2876
    %3276 = vmatprep.subr.bf16.mxu0 %v2893
    %3277 = vmatpush1.bf16.msra.mxu0 %v2892
    %3278 = vmatprep.mubr.bf16.mxu0 %v1625
    %3279 = vmatmul.mubr.bf16.gmra.mrb[0].mxu0 %v1624
    %v3280 = vpop.f32.mrb[0].mxu0
    %v3281 = vadd.f32 %v3240, %v3280
    %v3282 = vpop.f32.mrb[0].mxu0
    %v3283 = vadd.f32 %v3242, %v3282
    %v3284 = vpop.f32.mrb[0].mxu0
    %v3285 = vpop.f32.mrb[0].mxu0
    %3286 = vdwg.mxu0
    %3287 = vmatprep.subr.bf16.mxu0 %v2909
    %3288 = vmatpush1.bf16.msra.mxu0 %v2908
    %3289 = vmatprep.subr.bf16.mxu0 %v2925
    %3290 = vmatpush1.bf16.msra.mxu0 %v2924
    %3291 = vmatprep.subr.bf16.mxu0 %v2941
    %3292 = vmatpush1.bf16.msra.mxu0 %v2940
    %3293 = vmatprep.subr.bf16.mxu0 %v2957
    %3294 = vmatpush1.bf16.msra.mxu0 %v2956
    %3295 = vmatprep.subr.bf16.mxu0 %v2973
    %3296 = vmatpush1.bf16.msra.mxu0 %v2972
    %3297 = vmatprep.subr.bf16.mxu0 %v2989
    %3298 = vmatpush1.bf16.msra.mxu0 %v2988
    %3299 = vmatprep.subr.bf16.mxu0 %v3005
    %3300 = vmatpush1.bf16.msra.mxu0 %v3004
    %3301 = vmatprep.subr.bf16.mxu0 %v3021
    %3302 = vmatpush1.bf16.msra.mxu0 %v3020
    %3303 = vmatprep.subr.bf16.mxu0 %v3037
    %3304 = vmatpush1.bf16.msra.mxu0 %v3036
    %3305 = vmatprep.subr.bf16.mxu0 %v3053
    %3306 = vmatpush1.bf16.msra.mxu0 %v3052
    %3307 = vmatprep.subr.bf16.mxu0 %v3069
    %3308 = vmatpush1.bf16.msra.mxu0 %v3068
    %3309 = vmatprep.subr.bf16.mxu0 %v3085
    %3310 = vmatpush1.bf16.msra.mxu0 %v3084
    %3311 = vmatprep.subr.bf16.mxu0 %v3101
    %3312 = vmatpush1.bf16.msra.mxu0 %v3100
    %3313 = vmatprep.subr.bf16.mxu0 %v3117
    %3314 = vmatpush1.bf16.msra.mxu0 %v3116
    %3315 = vmatprep.subr.bf16.mxu0 %v3133
    %3316 = vmatpush1.bf16.msra.mxu0 %v3132
    %3317 = vmatprep.subr.bf16.mxu0 %v3149
    %3318 = vmatpush1.bf16.msra.mxu0 %v3148
    %3319 = vmatprep.mubr.bf16.mxu0 %v1627
    %3320 = vmatmul.mubr.bf16.gmra.mrb[0].mxu0 %v1626
    %v3321 = vpop.f32.mrb[0].mxu0
    %v3322 = vadd.f32 %v3281, %v3321
    %v3323 = vpop.f32.mrb[0].mxu0
    %v3324 = vadd.f32 %v3283, %v3323
    %v3325 = vpop.f32.mrb[0].mxu0
    %v3326 = vpop.f32.mrb[0].mxu0
    %3327 = vdwg.mxu0
    %3328 = vmatprep.subr.bf16.mxu0 %v2143
    %3329 = vmatpush1.bf16.msra.mxu0 %v2142
    %3330 = vmatprep.subr.bf16.mxu0 %v2159
    %3331 = vmatpush1.bf16.msra.mxu0 %v2158
    %3332 = vmatprep.subr.bf16.mxu0 %v2175
    %3333 = vmatpush1.bf16.msra.mxu0 %v2174
    %3334 = vmatprep.subr.bf16.mxu0 %v2191
    %3335 = vmatpush1.bf16.msra.mxu0 %v2190
    %3336 = vmatprep.subr.bf16.mxu0 %v2207
    %3337 = vmatpush1.bf16.msra.mxu0 %v2206
    %3338 = vmatprep.subr.bf16.mxu0 %v2223
    %3339 = vmatpush1.bf16.msra.mxu0 %v2222
    %3340 = vmatprep.subr.bf16.mxu0 %v2239
    %3341 = vmatpush1.bf16.msra.mxu0 %v2238
    %3342 = vmatprep.subr.bf16.mxu0 %v2255
    %3343 = vmatpush1.bf16.msra.mxu0 %v2254
    %3344 = vmatprep.subr.bf16.mxu0 %v2271
    %3345 = vmatpush1.bf16.msra.mxu0 %v2270
    %3346 = vmatprep.subr.bf16.mxu0 %v2287
    %3347 = vmatpush1.bf16.msra.mxu0 %v2286
    %3348 = vmatprep.subr.bf16.mxu0 %v2303
    %3349 = vmatpush1.bf16.msra.mxu0 %v2302
    %3350 = vmatprep.subr.bf16.mxu0 %v2319
    %3351 = vmatpush1.bf16.msra.mxu0 %v2318
    %3352 = vmatprep.subr.bf16.mxu0 %v2335
    %3353 = vmatpush1.bf16.msra.mxu0 %v2334
    %3354 = vmatprep.subr.bf16.mxu0 %v2351
    %3355 = vmatpush1.bf16.msra.mxu0 %v2350
    %3356 = vmatprep.subr.bf16.mxu0 %v2367
    %3357 = vmatpush1.bf16.msra.mxu0 %v2366
    %3358 = vmatprep.subr.bf16.mxu0 %v2383
    %3359 = vmatpush1.bf16.msra.mxu0 %v2382
    %3360 = vmatprep.mubr.bf16.mxu0 %v1621
    %3361 = vmatmul.mubr.bf16.gmra.mrb[0].mxu0 %v1620
    %v3362 = vpop.f32.mrb[0].mxu0
    %v3363 = vadd.f32 0.0, %v3362
    %v3364 = vpop.f32.mrb[0].mxu0
    %v3365 = vadd.f32 0.0, %v3364
    %v3366 = vpop.f32.mrb[0].mxu0
    %v3367 = vpop.f32.mrb[0].mxu0
    %3368 = vdwg.mxu0
    %3369 = vmatprep.subr.bf16.mxu0 %v2399
    %3370 = vmatpush1.bf16.msra.mxu0 %v2398
    %3371 = vmatprep.subr.bf16.mxu0 %v2415
    %3372 = vmatpush1.bf16.msra.mxu0 %v2414
    %3373 = vmatprep.subr.bf16.mxu0 %v2431
    %3374 = vmatpush1.bf16.msra.mxu0 %v2430
    %3375 = vmatprep.subr.bf16.mxu0 %v2447
    %3376 = vmatpush1.bf16.msra.mxu0 %v2446
    %3377 = vmatprep.subr.bf16.mxu0 %v2463
    %3378 = vmatpush1.bf16.msra.mxu0 %v2462
    %3379 = vmatprep.subr.bf16.mxu0 %v2479
    %3380 = vmatpush1.bf16.msra.mxu0 %v2478
    %3381 = vmatprep.subr.bf16.mxu0 %v2495
    %3382 = vmatpush1.bf16.msra.mxu0 %v2494
    %3383 = vmatprep.subr.bf16.mxu0 %v2511
    %3384 = vmatpush1.bf16.msra.mxu0 %v2510
    %3385 = vmatprep.subr.bf16.mxu0 %v2527
    %3386 = vmatpush1.bf16.msra.mxu0 %v2526
    %3387 = vmatprep.subr.bf16.mxu0 %v2543
    %3388 = vmatpush1.bf16.msra.mxu0 %v2542
    %3389 = vmatprep.subr.bf16.mxu0 %v2559
    %3390 = vmatpush1.bf16.msra.mxu0 %v2558
    %3391 = vmatprep.subr.bf16.mxu0 %v2575
    %3392 = vmatpush1.bf16.msra.mxu0 %v2574
    %3393 = vmatprep.subr.bf16.mxu0 %v2591
    %3394 = vmatpush1.bf16.msra.mxu0 %v2590
    %3395 = vmatprep.subr.bf16.mxu0 %v2607
    %3396 = vmatpush1.bf16.msra.mxu0 %v2606
    %3397 = vmatprep.subr.bf16.mxu0 %v2623
    %3398 = vmatpush1.bf16.msra.mxu0 %v2622
    %3399 = vmatprep.subr.bf16.mxu0 %v2639
    %3400 = vmatpush1.bf16.msra.mxu0 %v2638
    %3401 = vmatprep.mubr.bf16.mxu0 %v1623
    %3402 = vmatmul.mubr.bf16.gmra.mrb[0].mxu0 %v1622
    %v3403 = vpop.f32.mrb[0].mxu0
    %v3404 = vadd.f32 %v3363, %v3403
    %v3405 = vpop.f32.mrb[0].mxu0
    %v3406 = vadd.f32 %v3365, %v3405
    %v3407 = vpop.f32.mrb[0].mxu0
    %v3408 = vpop.f32.mrb[0].mxu0
    %3409 = vdwg.mxu0
    %3410 = vmatprep.subr.bf16.mxu0 %v2655
    %3411 = vmatpush1.bf16.msra.mxu0 %v2654
    %3412 = vmatprep.subr.bf16.mxu0 %v2671
    %3413 = vmatpush1.bf16.msra.mxu0 %v2670
    %3414 = vmatprep.subr.bf16.mxu0 %v2687
    %3415 = vmatpush1.bf16.msra.mxu0 %v2686
    %3416 = vmatprep.subr.bf16.mxu0 %v2703
    %3417 = vmatpush1.bf16.msra.mxu0 %v2702
    %3418 = vmatprep.subr.bf16.mxu0 %v2719
    %3419 = vmatpush1.bf16.msra.mxu0 %v2718
    %3420 = vmatprep.subr.bf16.mxu0 %v2735
    %3421 = vmatpush1.bf16.msra.mxu0 %v2734
    %3422 = vmatprep.subr.bf16.mxu0 %v2751
    %3423 = vmatpush1.bf16.msra.mxu0 %v2750
    %3424 = vmatprep.subr.bf16.mxu0 %v2767
    %3425 = vmatpush1.bf16.msra.mxu0 %v2766
    %3426 = vmatprep.subr.bf16.mxu0 %v2783
    %3427 = vmatpush1.bf16.msra.mxu0 %v2782
    %3428 = vmatprep.subr.bf16.mxu0 %v2799
    %3429 = vmatpush1.bf16.msra.mxu0 %v2798
    %3430 = vmatprep.subr.bf16.mxu0 %v2815
    %3431 = vmatpush1.bf16.msra.mxu0 %v2814
    %3432 = vmatprep.subr.bf16.mxu0 %v2831
    %3433 = vmatpush1.bf16.msra.mxu0 %v2830
    %3434 = vmatprep.subr.bf16.mxu0 %v2847
    %3435 = vmatpush1.bf16.msra.mxu0 %v2846
    %3436 = vmatprep.subr.bf16.mxu0 %v2863
    %3437 = vmatpush1.bf16.msra.mxu0 %v2862
    %3438 = vmatprep.subr.bf16.mxu0 %v2879
    %3439 = vmatpush1.bf16.msra.mxu0 %v2878
    %3440 = vmatprep.subr.bf16.mxu0 %v2895
    %3441 = vmatpush1.bf16.msra.mxu0 %v2894
    %3442 = vmatprep.mubr.bf16.mxu0 %v1625
    %3443 = vmatmul.mubr.bf16.gmra.mrb[0].mxu0 %v1624
    %v3444 = vpop.f32.mrb[0].mxu0
    %v3445 = vadd.f32 %v3404, %v3444
    %v3446 = vpop.f32.mrb[0].mxu0
    %v3447 = vadd.f32 %v3406, %v3446
    %v3448 = vpop.f32.mrb[0].mxu0
    %v3449 = vpop.f32.mrb[0].mxu0
    %3450 = vdwg.mxu0
    %3451 = vmatprep.subr.bf16.mxu0 %v2911
    %3452 = vmatpush1.bf16.msra.mxu0 %v2910
    %3453 = vmatprep.subr.bf16.mxu0 %v2927
    %3454 = vmatpush1.bf16.msra.mxu0 %v2926
    %3455 = vmatprep.subr.bf16.mxu0 %v2943
    %3456 = vmatpush1.bf16.msra.mxu0 %v2942
    %3457 = vmatprep.subr.bf16.mxu0 %v2959
    %3458 = vmatpush1.bf16.msra.mxu0 %v2958
    %3459 = vmatprep.subr.bf16.mxu0 %v2975
    %3460 = vmatpush1.bf16.msra.mxu0 %v2974
    %3461 = vmatprep.subr.bf16.mxu0 %v2991
    %3462 = vmatpush1.bf16.msra.mxu0 %v2990
    %3463 = vmatprep.subr.bf16.mxu0 %v3007
    %3464 = vmatpush1.bf16.msra.mxu0 %v3006
    %3465 = vmatprep.subr.bf16.mxu0 %v3023
    %3466 = vmatpush1.bf16.msra.mxu0 %v3022
    %3467 = vmatprep.subr.bf16.mxu0 %v3039
    %3468 = vmatpush1.bf16.msra.mxu0 %v3038
    %3469 = vmatprep.subr.bf16.mxu0 %v3055
    %3470 = vmatpush1.bf16.msra.mxu0 %v3054
    %3471 = vmatprep.subr.bf16.mxu0 %v3071
    %3472 = vmatpush1.bf16.msra.mxu0 %v3070
    %3473 = vmatprep.subr.bf16.mxu0 %v3087
    %3474 = vmatpush1.bf16.msra.mxu0 %v3086
    %3475 = vmatprep.subr.bf16.mxu0 %v3103
    %3476 = vmatpush1.bf16.msra.mxu0 %v3102
    %3477 = vmatprep.subr.bf16.mxu0 %v3119
    %3478 = vmatpush1.bf16.msra.mxu0 %v3118
    %3479 = vmatprep.subr.bf16.mxu0 %v3135
    %3480 = vmatpush1.bf16.msra.mxu0 %v3134
    %3481 = vmatprep.subr.bf16.mxu0 %v3151
    %3482 = vmatpush1.bf16.msra.mxu0 %v3150
    %3483 = vmatprep.mubr.bf16.mxu0 %v1627
    %3484 = vmatmul.mubr.bf16.gmra.mrb[0].mxu0 %v1626
    %v3485 = vpop.f32.mrb[0].mxu0
    %v3486 = vadd.f32 %v3445, %v3485
    %v3487 = vpop.f32.mrb[0].mxu0
    %v3488 = vadd.f32 %v3447, %v3487
    %v3489 = vpop.f32.mrb[0].mxu0
    %v3490 = vpop.f32.mrb[0].mxu0
    %3491 = vdwg.mxu0
    %3492 = vmatprep.subr.bf16.mxu0 %v2145
    %3493 = vmatpush1.bf16.msra.mxu0 %v2144
    %3494 = vmatprep.subr.bf16.mxu0 %v2161
    %3495 = vmatpush1.bf16.msra.mxu0 %v2160
    %3496 = vmatprep.subr.bf16.mxu0 %v2177
    %3497 = vmatpush1.bf16.msra.mxu0 %v2176
    %3498 = vmatprep.subr.bf16.mxu0 %v2193
    %3499 = vmatpush1.bf16.msra.mxu0 %v2192
    %3500 = vmatprep.subr.bf16.mxu0 %v2209
    %3501 = vmatpush1.bf16.msra.mxu0 %v2208
    %3502 = vmatprep.subr.bf16.mxu0 %v2225
    %3503 = vmatpush1.bf16.msra.mxu0 %v2224
    %3504 = vmatprep.subr.bf16.mxu0 %v2241
    %3505 = vmatpush1.bf16.msra.mxu0 %v2240
    %3506 = vmatprep.subr.bf16.mxu0 %v2257
    %3507 = vmatpush1.bf16.msra.mxu0 %v2256
    %3508 = vmatprep.subr.bf16.mxu0 %v2273
    %3509 = vmatpush1.bf16.msra.mxu0 %v2272
    %3510 = vmatprep.subr.bf16.mxu0 %v2289
    %3511 = vmatpush1.bf16.msra.mxu0 %v2288
    %3512 = vmatprep.subr.bf16.mxu0 %v2305
    %3513 = vmatpush1.bf16.msra.mxu0 %v2304
    %3514 = vmatprep.subr.bf16.mxu0 %v2321
    %3515 = vmatpush1.bf16.msra.mxu0 %v2320
    %3516 = vmatprep.subr.bf16.mxu0 %v2337
    %3517 = vmatpush1.bf16.msra.mxu0 %v2336
    %3518 = vmatprep.subr.bf16.mxu0 %v2353
    %3519 = vmatpush1.bf16.msra.mxu0 %v2352
    %3520 = vmatprep.subr.bf16.mxu0 %v2369
    %3521 = vmatpush1.bf16.msra.mxu0 %v2368
    %3522 = vmatprep.subr.bf16.mxu0 %v2385
    %3523 = vmatpush1.bf16.msra.mxu0 %v2384
    %3524 = vmatprep.mubr.bf16.mxu0 %v1621
    %3525 = vmatmul.mubr.bf16.gmra.mrb[0].mxu0 %v1620
    %v3526 = vpop.f32.mrb[0].mxu0
    %v3527 = vadd.f32 0.0, %v3526
    %v3528 = vpop.f32.mrb[0].mxu0
    %v3529 = vadd.f32 0.0, %v3528
    %v3530 = vpop.f32.mrb[0].mxu0
    %v3531 = vpop.f32.mrb[0].mxu0
    %3532 = vdwg.mxu0
    %3533 = vmatprep.subr.bf16.mxu0 %v2401
    %3534 = vmatpush1.bf16.msra.mxu0 %v2400
    %3535 = vmatprep.subr.bf16.mxu0 %v2417
    %3536 = vmatpush1.bf16.msra.mxu0 %v2416
    %3537 = vmatprep.subr.bf16.mxu0 %v2433
    %3538 = vmatpush1.bf16.msra.mxu0 %v2432
    %3539 = vmatprep.subr.bf16.mxu0 %v2449
    %3540 = vmatpush1.bf16.msra.mxu0 %v2448
    %3541 = vmatprep.subr.bf16.mxu0 %v2465
    %3542 = vmatpush1.bf16.msra.mxu0 %v2464
    %3543 = vmatprep.subr.bf16.mxu0 %v2481
    %3544 = vmatpush1.bf16.msra.mxu0 %v2480
    %3545 = vmatprep.subr.bf16.mxu0 %v2497
    %3546 = vmatpush1.bf16.msra.mxu0 %v2496
    %3547 = vmatprep.subr.bf16.mxu0 %v2513
    %3548 = vmatpush1.bf16.msra.mxu0 %v2512
    %3549 = vmatprep.subr.bf16.mxu0 %v2529
    %3550 = vmatpush1.bf16.msra.mxu0 %v2528
    %3551 = vmatprep.subr.bf16.mxu0 %v2545
    %3552 = vmatpush1.bf16.msra.mxu0 %v2544
    %3553 = vmatprep.subr.bf16.mxu0 %v2561
    %3554 = vmatpush1.bf16.msra.mxu0 %v2560
    %3555 = vmatprep.subr.bf16.mxu0 %v2577
    %3556 = vmatpush1.bf16.msra.mxu0 %v2576
    %3557 = vmatprep.subr.bf16.mxu0 %v2593
    %3558 = vmatpush1.bf16.msra.mxu0 %v2592
    %3559 = vmatprep.subr.bf16.mxu0 %v2609
    %3560 = vmatpush1.bf16.msra.mxu0 %v2608
    %3561 = vmatprep.subr.bf16.mxu0 %v2625
    %3562 = vmatpush1.bf16.msra.mxu0 %v2624
    %3563 = vmatprep.subr.bf16.mxu0 %v2641
    %3564 = vmatpush1.bf16.msra.mxu0 %v2640
    %3565 = vmatprep.mubr.bf16.mxu0 %v1623
    %3566 = vmatmul.mubr.bf16.gmra.mrb[0].mxu0 %v1622
    %v3567 = vpop.f32.mrb[0].mxu0
    %v3568 = vadd.f32 %v3527, %v3567
    %v3569 = vpop.f32.mrb[0].mxu0
    %v3570 = vadd.f32 %v3529, %v3569
    %v3571 = vpop.f32.mrb[0].mxu0
    %v3572 = vpop.f32.mrb[0].mxu0
    %3573 = vdwg.mxu0
    %3574 = vmatprep.subr.bf16.mxu0 %v2657
    %3575 = vmatpush1.bf16.msra.mxu0 %v2656
    %3576 = vmatprep.subr.bf16.mxu0 %v2673
    %3577 = vmatpush1.bf16.msra.mxu0 %v2672
    %3578 = vmatprep.subr.bf16.mxu0 %v2689
    %3579 = vmatpush1.bf16.msra.mxu0 %v2688
    %3580 = vmatprep.subr.bf16.mxu0 %v2705
    %3581 = vmatpush1.bf16.msra.mxu0 %v2704
    %3582 = vmatprep.subr.bf16.mxu0 %v2721
    %3583 = vmatpush1.bf16.msra.mxu0 %v2720
    %3584 = vmatprep.subr.bf16.mxu0 %v2737
    %3585 = vmatpush1.bf16.msra.mxu0 %v2736
    %3586 = vmatprep.subr.bf16.mxu0 %v2753
    %3587 = vmatpush1.bf16.msra.mxu0 %v2752
    %3588 = vmatprep.subr.bf16.mxu0 %v2769
    %3589 = vmatpush1.bf16.msra.mxu0 %v2768
    %3590 = vmatprep.subr.bf16.mxu0 %v2785
    %3591 = vmatpush1.bf16.msra.mxu0 %v2784
    %3592 = vmatprep.subr.bf16.mxu0 %v2801
    %3593 = vmatpush1.bf16.msra.mxu0 %v2800
    %3594 = vmatprep.subr.bf16.mxu0 %v2817
    %3595 = vmatpush1.bf16.msra.mxu0 %v2816
    %3596 = vmatprep.subr.bf16.mxu0 %v2833
    %3597 = vmatpush1.bf16.msra.mxu0 %v2832
    %3598 = vmatprep.subr.bf16.mxu0 %v2849
    %3599 = vmatpush1.bf16.msra.mxu0 %v2848
    %3600 = vmatprep.subr.bf16.mxu0 %v2865
    %3601 = vmatpush1.bf16.msra.mxu0 %v2864
    %3602 = vmatprep.subr.bf16.mxu0 %v2881
    %3603 = vmatpush1.bf16.msra.mxu0 %v2880
    %3604 = vmatprep.subr.bf16.mxu0 %v2897
    %3605 = vmatpush1.bf16.msra.mxu0 %v2896
    %3606 = vmatprep.mubr.bf16.mxu0 %v1625
    %3607 = vmatmul.mubr.bf16.gmra.mrb[0].mxu0 %v1624
    %v3608 = vpop.f32.mrb[0].mxu0
    %v3609 = vadd.f32 %v3568, %v3608
    %v3610 = vpop.f32.mrb[0].mxu0
    %v3611 = vadd.f32 %v3570, %v3610
    %v3612 = vpop.f32.mrb[0].mxu0
    %v3613 = vpop.f32.mrb[0].mxu0
    %3614 = vdwg.mxu0
    %3615 = vmatprep.subr.bf16.mxu0 %v2913
    %3616 = vmatpush1.bf16.msra.mxu0 %v2912
    %3617 = vmatprep.subr.bf16.mxu0 %v2929
    %3618 = vmatpush1.bf16.msra.mxu0 %v2928
    %3619 = vmatprep.subr.bf16.mxu0 %v2945
    %3620 = vmatpush1.bf16.msra.mxu0 %v2944
    %3621 = vmatprep.subr.bf16.mxu0 %v2961
    %3622 = vmatpush1.bf16.msra.mxu0 %v2960
    %3623 = vmatprep.subr.bf16.mxu0 %v2977
    %3624 = vmatpush1.bf16.msra.mxu0 %v2976
    %3625 = vmatprep.subr.bf16.mxu0 %v2993
    %3626 = vmatpush1.bf16.msra.mxu0 %v2992
    %3627 = vmatprep.subr.bf16.mxu0 %v3009
    %3628 = vmatpush1.bf16.msra.mxu0 %v3008
    %3629 = vmatprep.subr.bf16.mxu0 %v3025
    %3630 = vmatpush1.bf16.msra.mxu0 %v3024
    %3631 = vmatprep.subr.bf16.mxu0 %v3041
    %3632 = vmatpush1.bf16.msra.mxu0 %v3040
    %3633 = vmatprep.subr.bf16.mxu0 %v3057
    %3634 = vmatpush1.bf16.msra.mxu0 %v3056
    %3635 = vmatprep.subr.bf16.mxu0 %v3073
    %3636 = vmatpush1.bf16.msra.mxu0 %v3072
    %3637 = vmatprep.subr.bf16.mxu0 %v3089
    %3638 = vmatpush1.bf16.msra.mxu0 %v3088
    %3639 = vmatprep.subr.bf16.mxu0 %v3105
    %3640 = vmatpush1.bf16.msra.mxu0 %v3104
    %3641 = vmatprep.subr.bf16.mxu0 %v3121
    %3642 = vmatpush1.bf16.msra.mxu0 %v3120
    %3643 = vmatprep.subr.bf16.mxu0 %v3137
    %3644 = vmatpush1.bf16.msra.mxu0 %v3136
    %3645 = vmatprep.subr.bf16.mxu0 %v3153
    %3646 = vmatpush1.bf16.msra.mxu0 %v3152
    %3647 = vmatprep.mubr.bf16.mxu0 %v1627
    %3648 = vmatmul.mubr.bf16.gmra.mrb[0].mxu0 %v1626
    %v3649 = vpop.f32.mrb[0].mxu0
    %v3650 = vadd.f32 %v3609, %v3649
    %v3651 = vpop.f32.mrb[0].mxu0
    %v3652 = vadd.f32 %v3611, %v3651
    %v3653 = vpop.f32.mrb[0].mxu0
    %v3654 = vpop.f32.mrb[0].mxu0
    %3655 = vdwg.mxu0
    %3656 = vmatprep.subr.bf16.mxu0 %v2147
    %3657 = vmatpush1.bf16.msra.mxu0 %v2146
    %3658 = vmatprep.subr.bf16.mxu0 %v2163
    %3659 = vmatpush1.bf16.msra.mxu0 %v2162
    %3660 = vmatprep.subr.bf16.mxu0 %v2179
    %3661 = vmatpush1.bf16.msra.mxu0 %v2178
    %3662 = vmatprep.subr.bf16.mxu0 %v2195
    %3663 = vmatpush1.bf16.msra.mxu0 %v2194
    %3664 = vmatprep.subr.bf16.mxu0 %v2211
    %3665 = vmatpush1.bf16.msra.mxu0 %v2210
    %3666 = vmatprep.subr.bf16.mxu0 %v2227
    %3667 = vmatpush1.bf16.msra.mxu0 %v2226
    %3668 = vmatprep.subr.bf16.mxu0 %v2243
    %3669 = vmatpush1.bf16.msra.mxu0 %v2242
    %3670 = vmatprep.subr.bf16.mxu0 %v2259
    %3671 = vmatpush1.bf16.msra.mxu0 %v2258
    %3672 = vmatprep.subr.bf16.mxu0 %v2275
    %3673 = vmatpush1.bf16.msra.mxu0 %v2274
    %3674 = vmatprep.subr.bf16.mxu0 %v2291
    %3675 = vmatpush1.bf16.msra.mxu0 %v2290
    %3676 = vmatprep.subr.bf16.mxu0 %v2307
    %3677 = vmatpush1.bf16.msra.mxu0 %v2306
    %3678 = vmatprep.subr.bf16.mxu0 %v2323
    %3679 = vmatpush1.bf16.msra.mxu0 %v2322
    %3680 = vmatprep.subr.bf16.mxu0 %v2339
    %3681 = vmatpush1.bf16.msra.mxu0 %v2338
    %3682 = vmatprep.subr.bf16.mxu0 %v2355
    %3683 = vmatpush1.bf16.msra.mxu0 %v2354
    %3684 = vmatprep.subr.bf16.mxu0 %v2371
    %3685 = vmatpush1.bf16.msra.mxu0 %v2370
    %3686 = vmatprep.subr.bf16.mxu0 %v2387
    %3687 = vmatpush1.bf16.msra.mxu0 %v2386
    %3688 = vmatprep.mubr.bf16.mxu0 %v1621
    %3689 = vmatmul.mubr.bf16.gmra.mrb[0].mxu0 %v1620
    %v3690 = vpop.f32.mrb[0].mxu0
    %v3691 = vadd.f32 0.0, %v3690
    %v3692 = vpop.f32.mrb[0].mxu0
    %v3693 = vadd.f32 0.0, %v3692
    %v3694 = vpop.f32.mrb[0].mxu0
    %v3695 = vpop.f32.mrb[0].mxu0
    %3696 = vdwg.mxu0
    %3697 = vmatprep.subr.bf16.mxu0 %v2403
    %3698 = vmatpush1.bf16.msra.mxu0 %v2402
    %3699 = vmatprep.subr.bf16.mxu0 %v2419
    %3700 = vmatpush1.bf16.msra.mxu0 %v2418
    %3701 = vmatprep.subr.bf16.mxu0 %v2435
    %3702 = vmatpush1.bf16.msra.mxu0 %v2434
    %3703 = vmatprep.subr.bf16.mxu0 %v2451
    %3704 = vmatpush1.bf16.msra.mxu0 %v2450
    %3705 = vmatprep.subr.bf16.mxu0 %v2467
    %3706 = vmatpush1.bf16.msra.mxu0 %v2466
    %3707 = vmatprep.subr.bf16.mxu0 %v2483
    %3708 = vmatpush1.bf16.msra.mxu0 %v2482
    %3709 = vmatprep.subr.bf16.mxu0 %v2499
    %3710 = vmatpush1.bf16.msra.mxu0 %v2498
    %3711 = vmatprep.subr.bf16.mxu0 %v2515
    %3712 = vmatpush1.bf16.msra.mxu0 %v2514
    %3713 = vmatprep.subr.bf16.mxu0 %v2531
    %3714 = vmatpush1.bf16.msra.mxu0 %v2530
    %3715 = vmatprep.subr.bf16.mxu0 %v2547
    %3716 = vmatpush1.bf16.msra.mxu0 %v2546
    %3717 = vmatprep.subr.bf16.mxu0 %v2563
    %3718 = vmatpush1.bf16.msra.mxu0 %v2562
    %3719 = vmatprep.subr.bf16.mxu0 %v2579
    %3720 = vmatpush1.bf16.msra.mxu0 %v2578
    %3721 = vmatprep.subr.bf16.mxu0 %v2595
    %3722 = vmatpush1.bf16.msra.mxu0 %v2594
    %3723 = vmatprep.subr.bf16.mxu0 %v2611
    %3724 = vmatpush1.bf16.msra.mxu0 %v2610
    %3725 = vmatprep.subr.bf16.mxu0 %v2627
    %3726 = vmatpush1.bf16.msra.mxu0 %v2626
    %3727 = vmatprep.subr.bf16.mxu0 %v2643
    %3728 = vmatpush1.bf16.msra.mxu0 %v2642
    %3729 = vmatprep.mubr.bf16.mxu0 %v1623
    %3730 = vmatmul.mubr.bf16.gmra.mrb[0].mxu0 %v1622
    %v3731 = vpop.f32.mrb[0].mxu0
    %v3732 = vadd.f32 %v3691, %v3731
    %v3733 = vpop.f32.mrb[0].mxu0
    %v3734 = vadd.f32 %v3693, %v3733
    %v3735 = vpop.f32.mrb[0].mxu0
    %v3736 = vpop.f32.mrb[0].mxu0
    %3737 = vdwg.mxu0
    %3738 = vmatprep.subr.bf16.mxu0 %v2659
    %3739 = vmatpush1.bf16.msra.mxu0 %v2658
    %3740 = vmatprep.subr.bf16.mxu0 %v2675
    %3741 = vmatpush1.bf16.msra.mxu0 %v2674
    %3742 = vmatprep.subr.bf16.mxu0 %v2691
    %3743 = vmatpush1.bf16.msra.mxu0 %v2690
    %3744 = vmatprep.subr.bf16.mxu0 %v2707
    %3745 = vmatpush1.bf16.msra.mxu0 %v2706
    %3746 = vmatprep.subr.bf16.mxu0 %v2723
    %3747 = vmatpush1.bf16.msra.mxu0 %v2722
    %3748 = vmatprep.subr.bf16.mxu0 %v2739
    %3749 = vmatpush1.bf16.msra.mxu0 %v2738
    %3750 = vmatprep.subr.bf16.mxu0 %v2755
    %3751 = vmatpush1.bf16.msra.mxu0 %v2754
    %3752 = vmatprep.subr.bf16.mxu0 %v2771
    %3753 = vmatpush1.bf16.msra.mxu0 %v2770
    %3754 = vmatprep.subr.bf16.mxu0 %v2787
    %3755 = vmatpush1.bf16.msra.mxu0 %v2786
    %3756 = vmatprep.subr.bf16.mxu0 %v2803
    %3757 = vmatpush1.bf16.msra.mxu0 %v2802
    %3758 = vmatprep.subr.bf16.mxu0 %v2819
    %3759 = vmatpush1.bf16.msra.mxu0 %v2818
    %3760 = vmatprep.subr.bf16.mxu0 %v2835
    %3761 = vmatpush1.bf16.msra.mxu0 %v2834
    %3762 = vmatprep.subr.bf16.mxu0 %v2851
    %3763 = vmatpush1.bf16.msra.mxu0 %v2850
    %3764 = vmatprep.subr.bf16.mxu0 %v2867
    %3765 = vmatpush1.bf16.msra.mxu0 %v2866
    %3766 = vmatprep.subr.bf16.mxu0 %v2883
    %3767 = vmatpush1.bf16.msra.mxu0 %v2882
    %3768 = vmatprep.subr.bf16.mxu0 %v2899
    %3769 = vmatpush1.bf16.msra.mxu0 %v2898
    %3770 = vmatprep.mubr.bf16.mxu0 %v1625
    %3771 = vmatmul.mubr.bf16.gmra.mrb[0].mxu0 %v1624
    %v3772 = vpop.f32.mrb[0].mxu0
    %v3773 = vadd.f32 %v3732, %v3772
    %v3774 = vpop.f32.mrb[0].mxu0
    %v3775 = vadd.f32 %v3734, %v3774
    %v3776 = vpop.f32.mrb[0].mxu0
    %v3777 = vpop.f32.mrb[0].mxu0
    %3778 = vdwg.mxu0
    %3779 = vmatprep.subr.bf16.mxu0 %v2915
    %3780 = vmatpush1.bf16.msra.mxu0 %v2914
    %3781 = vmatprep.subr.bf16.mxu0 %v2931
    %3782 = vmatpush1.bf16.msra.mxu0 %v2930
    %3783 = vmatprep.subr.bf16.mxu0 %v2947
    %3784 = vmatpush1.bf16.msra.mxu0 %v2946
    %3785 = vmatprep.subr.bf16.mxu0 %v2963
    %3786 = vmatpush1.bf16.msra.mxu0 %v2962
    %3787 = vmatprep.subr.bf16.mxu0 %v2979
    %3788 = vmatpush1.bf16.msra.mxu0 %v2978
    %3789 = vmatprep.subr.bf16.mxu0 %v2995
    %3790 = vmatpush1.bf16.msra.mxu0 %v2994
    %3791 = vmatprep.subr.bf16.mxu0 %v3011
    %3792 = vmatpush1.bf16.msra.mxu0 %v3010
    %3793 = vmatprep.subr.bf16.mxu0 %v3027
    %3794 = vmatpush1.bf16.msra.mxu0 %v3026
    %3795 = vmatprep.subr.bf16.mxu0 %v3043
    %3796 = vmatpush1.bf16.msra.mxu0 %v3042
    %3797 = vmatprep.subr.bf16.mxu0 %v3059
    %3798 = vmatpush1.bf16.msra.mxu0 %v3058
    %3799 = vmatprep.subr.bf16.mxu0 %v3075
    %3800 = vmatpush1.bf16.msra.mxu0 %v3074
    %3801 = vmatprep.subr.bf16.mxu0 %v3091
    %3802 = vmatpush1.bf16.msra.mxu0 %v3090
    %3803 = vmatprep.subr.bf16.mxu0 %v3107
    %3804 = vmatpush1.bf16.msra.mxu0 %v3106
    %3805 = vmatprep.subr.bf16.mxu0 %v3123
    %3806 = vmatpush1.bf16.msra.mxu0 %v3122
    %3807 = vmatprep.subr.bf16.mxu0 %v3139
    %3808 = vmatpush1.bf16.msra.mxu0 %v3138
    %3809 = vmatprep.subr.bf16.mxu0 %v3155
    %3810 = vmatpush1.bf16.msra.mxu0 %v3154
    %3811 = vmatprep.mubr.bf16.mxu0 %v1627
    %3812 = vmatmul.mubr.bf16.gmra.mrb[0].mxu0 %v1626
    %v3813 = vpop.f32.mrb[0].mxu0
    %v3814 = vadd.f32 %v3773, %v3813
    %v3815 = vpop.f32.mrb[0].mxu0
    %v3816 = vadd.f32 %v3775, %v3815
    %v3817 = vpop.f32.mrb[0].mxu0
    %v3818 = vpop.f32.mrb[0].mxu0
    %3819 = vdwg.mxu0
    %3820 = vmatprep.subr.bf16.mxu0 %v2149
    %3821 = vmatpush1.bf16.msra.mxu0 %v2148
    %3822 = vmatprep.subr.bf16.mxu0 %v2165
    %3823 = vmatpush1.bf16.msra.mxu0 %v2164
    %3824 = vmatprep.subr.bf16.mxu0 %v2181
    %3825 = vmatpush1.bf16.msra.mxu0 %v2180
    %3826 = vmatprep.subr.bf16.mxu0 %v2197
    %3827 = vmatpush1.bf16.msra.mxu0 %v2196
    %3828 = vmatprep.subr.bf16.mxu0 %v2213
    %3829 = vmatpush1.bf16.msra.mxu0 %v2212
    %3830 = vmatprep.subr.bf16.mxu0 %v2229
    %3831 = vmatpush1.bf16.msra.mxu0 %v2228
    %3832 = vmatprep.subr.bf16.mxu0 %v2245
    %3833 = vmatpush1.bf16.msra.mxu0 %v2244
    %3834 = vmatprep.subr.bf16.mxu0 %v2261
    %3835 = vmatpush1.bf16.msra.mxu0 %v2260
    %3836 = vmatprep.subr.bf16.mxu0 %v2277
    %3837 = vmatpush1.bf16.msra.mxu0 %v2276
    %3838 = vmatprep.subr.bf16.mxu0 %v2293
    %3839 = vmatpush1.bf16.msra.mxu0 %v2292
    %3840 = vmatprep.subr.bf16.mxu0 %v2309
    %3841 = vmatpush1.bf16.msra.mxu0 %v2308
    %3842 = vmatprep.subr.bf16.mxu0 %v2325
    %3843 = vmatpush1.bf16.msra.mxu0 %v2324
    %3844 = vmatprep.subr.bf16.mxu0 %v2341
    %3845 = vmatpush1.bf16.msra.mxu0 %v2340
    %3846 = vmatprep.subr.bf16.mxu0 %v2357
    %3847 = vmatpush1.bf16.msra.mxu0 %v2356
    %3848 = vmatprep.subr.bf16.mxu0 %v2373
    %3849 = vmatpush1.bf16.msra.mxu0 %v2372
    %3850 = vmatprep.subr.bf16.mxu0 %v2389
    %3851 = vmatpush1.bf16.msra.mxu0 %v2388
    %3852 = vmatprep.mubr.bf16.mxu0 %v1621
    %3853 = vmatmul.mubr.bf16.gmra.mrb[0].mxu0 %v1620
    %v3854 = vpop.f32.mrb[0].mxu0
    %v3855 = vadd.f32 0.0, %v3854
    %v3856 = vpop.f32.mrb[0].mxu0
    %v3857 = vadd.f32 0.0, %v3856
    %v3858 = vpop.f32.mrb[0].mxu0
    %v3859 = vpop.f32.mrb[0].mxu0
    %3860 = vdwg.mxu0
    %3861 = vmatprep.subr.bf16.mxu0 %v2405
    %3862 = vmatpush1.bf16.msra.mxu0 %v2404
    %3863 = vmatprep.subr.bf16.mxu0 %v2421
    %3864 = vmatpush1.bf16.msra.mxu0 %v2420
    %3865 = vmatprep.subr.bf16.mxu0 %v2437
    %3866 = vmatpush1.bf16.msra.mxu0 %v2436
    %3867 = vmatprep.subr.bf16.mxu0 %v2453
    %3868 = vmatpush1.bf16.msra.mxu0 %v2452
    %3869 = vmatprep.subr.bf16.mxu0 %v2469
    %3870 = vmatpush1.bf16.msra.mxu0 %v2468
    %3871 = vmatprep.subr.bf16.mxu0 %v2485
    %3872 = vmatpush1.bf16.msra.mxu0 %v2484
    %3873 = vmatprep.subr.bf16.mxu0 %v2501
    %3874 = vmatpush1.bf16.msra.mxu0 %v2500
    %3875 = vmatprep.subr.bf16.mxu0 %v2517
    %3876 = vmatpush1.bf16.msra.mxu0 %v2516
    %3877 = vmatprep.subr.bf16.mxu0 %v2533
    %3878 = vmatpush1.bf16.msra.mxu0 %v2532
    %3879 = vmatprep.subr.bf16.mxu0 %v2549
    %3880 = vmatpush1.bf16.msra.mxu0 %v2548
    %3881 = vmatprep.subr.bf16.mxu0 %v2565
    %3882 = vmatpush1.bf16.msra.mxu0 %v2564
    %3883 = vmatprep.subr.bf16.mxu0 %v2581
    %3884 = vmatpush1.bf16.msra.mxu0 %v2580
    %3885 = vmatprep.subr.bf16.mxu0 %v2597
    %3886 = vmatpush1.bf16.msra.mxu0 %v2596
    %3887 = vmatprep.subr.bf16.mxu0 %v2613
    %3888 = vmatpush1.bf16.msra.mxu0 %v2612
    %3889 = vmatprep.subr.bf16.mxu0 %v2629
    %3890 = vmatpush1.bf16.msra.mxu0 %v2628
    %3891 = vmatprep.subr.bf16.mxu0 %v2645
    %3892 = vmatpush1.bf16.msra.mxu0 %v2644
    %3893 = vmatprep.mubr.bf16.mxu0 %v1623
    %3894 = vmatmul.mubr.bf16.gmra.mrb[0].mxu0 %v1622
    %v3895 = vpop.f32.mrb[0].mxu0
    %v3896 = vadd.f32 %v3855, %v3895
    %v3897 = vpop.f32.mrb[0].mxu0
    %v3898 = vadd.f32 %v3857, %v3897
    %v3899 = vpop.f32.mrb[0].mxu0
    %v3900 = vpop.f32.mrb[0].mxu0
    %3901 = vdwg.mxu0
    %3902 = vmatprep.subr.bf16.mxu0 %v2661
    %3903 = vmatpush1.bf16.msra.mxu0 %v2660
    %3904 = vmatprep.subr.bf16.mxu0 %v2677
    %3905 = vmatpush1.bf16.msra.mxu0 %v2676
    %3906 = vmatprep.subr.bf16.mxu0 %v2693
    %3907 = vmatpush1.bf16.msra.mxu0 %v2692
    %3908 = vmatprep.subr.bf16.mxu0 %v2709
    %3909 = vmatpush1.bf16.msra.mxu0 %v2708
    %3910 = vmatprep.subr.bf16.mxu0 %v2725
    %3911 = vmatpush1.bf16.msra.mxu0 %v2724
    %3912 = vmatprep.subr.bf16.mxu0 %v2741
    %3913 = vmatpush1.bf16.msra.mxu0 %v2740
    %3914 = vmatprep.subr.bf16.mxu0 %v2757
    %3915 = vmatpush1.bf16.msra.mxu0 %v2756
    %3916 = vmatprep.subr.bf16.mxu0 %v2773
    %3917 = vmatpush1.bf16.msra.mxu0 %v2772
    %3918 = vmatprep.subr.bf16.mxu0 %v2789
    %3919 = vmatpush1.bf16.msra.mxu0 %v2788
    %3920 = vmatprep.subr.bf16.mxu0 %v2805
    %3921 = vmatpush1.bf16.msra.mxu0 %v2804
    %3922 = vmatprep.subr.bf16.mxu0 %v2821
    %3923 = vmatpush1.bf16.msra.mxu0 %v2820
    %3924 = vmatprep.subr.bf16.mxu0 %v2837
    %3925 = vmatpush1.bf16.msra.mxu0 %v2836
    %3926 = vmatprep.subr.bf16.mxu0 %v2853
    %3927 = vmatpush1.bf16.msra.mxu0 %v2852
    %3928 = vmatprep.subr.bf16.mxu0 %v2869
    %3929 = vmatpush1.bf16.msra.mxu0 %v2868
    %3930 = vmatprep.subr.bf16.mxu0 %v2885
    %3931 = vmatpush1.bf16.msra.mxu0 %v2884
    %3932 = vmatprep.subr.bf16.mxu0 %v2901
    %3933 = vmatpush1.bf16.msra.mxu0 %v2900
    %3934 = vmatprep.mubr.bf16.mxu0 %v1625
    %3935 = vmatmul.mubr.bf16.gmra.mrb[0].mxu0 %v1624
    %v3936 = vpop.f32.mrb[0].mxu0
    %v3937 = vadd.f32 %v3896, %v3936
    %v3938 = vpop.f32.mrb[0].mxu0
    %v3939 = vadd.f32 %v3898, %v3938
    %v3940 = vpop.f32.mrb[0].mxu0
    %v3941 = vpop.f32.mrb[0].mxu0
    %3942 = vdwg.mxu0
    %3943 = vmatprep.subr.bf16.mxu0 %v2917
    %3944 = vmatpush1.bf16.msra.mxu0 %v2916
    %3945 = vmatprep.subr.bf16.mxu0 %v2933
    %3946 = vmatpush1.bf16.msra.mxu0 %v2932
    %3947 = vmatprep.subr.bf16.mxu0 %v2949
    %3948 = vmatpush1.bf16.msra.mxu0 %v2948
    %3949 = vmatprep.subr.bf16.mxu0 %v2965
    %3950 = vmatpush1.bf16.msra.mxu0 %v2964
    %3951 = vmatprep.subr.bf16.mxu0 %v2981
    %3952 = vmatpush1.bf16.msra.mxu0 %v2980
    %3953 = vmatprep.subr.bf16.mxu0 %v2997
    %3954 = vmatpush1.bf16.msra.mxu0 %v2996
    %3955 = vmatprep.subr.bf16.mxu0 %v3013
    %3956 = vmatpush1.bf16.msra.mxu0 %v3012
    %3957 = vmatprep.subr.bf16.mxu0 %v3029
    %3958 = vmatpush1.bf16.msra.mxu0 %v3028
    %3959 = vmatprep.subr.bf16.mxu0 %v3045
    %3960 = vmatpush1.bf16.msra.mxu0 %v3044
    %3961 = vmatprep.subr.bf16.mxu0 %v3061
    %3962 = vmatpush1.bf16.msra.mxu0 %v3060
    %3963 = vmatprep.subr.bf16.mxu0 %v3077
    %3964 = vmatpush1.bf16.msra.mxu0 %v3076
    %3965 = vmatprep.subr.bf16.mxu0 %v3093
    %3966 = vmatpush1.bf16.msra.mxu0 %v3092
    %3967 = vmatprep.subr.bf16.mxu0 %v3109
    %3968 = vmatpush1.bf16.msra.mxu0 %v3108
    %3969 = vmatprep.subr.bf16.mxu0 %v3125
    %3970 = vmatpush1.bf16.msra.mxu0 %v3124
    %3971 = vmatprep.subr.bf16.mxu0 %v3141
    %3972 = vmatpush1.bf16.msra.mxu0 %v3140
    %3973 = vmatprep.subr.bf16.mxu0 %v3157
    %3974 = vmatpush1.bf16.msra.mxu0 %v3156
    %3975 = vmatprep.mubr.bf16.mxu0 %v1627
    %3976 = vmatmul.mubr.bf16.gmra.mrb[0].mxu0 %v1626
    %v3977 = vpop.f32.mrb[0].mxu0
    %v3978 = vadd.f32 %v3937, %v3977
    %v3979 = vpop.f32.mrb[0].mxu0
    %v3980 = vadd.f32 %v3939, %v3979
    %v3981 = vpop.f32.mrb[0].mxu0
    %v3982 = vpop.f32.mrb[0].mxu0
    %3983 = vdwg.mxu0
    %3984 = vmatprep.subr.bf16.mxu0 %v2151
    %3985 = vmatpush1.bf16.msra.mxu0 %v2150
    %3986 = vmatprep.subr.bf16.mxu0 %v2167
    %3987 = vmatpush1.bf16.msra.mxu0 %v2166
    %3988 = vmatprep.subr.bf16.mxu0 %v2183
    %3989 = vmatpush1.bf16.msra.mxu0 %v2182
    %3990 = vmatprep.subr.bf16.mxu0 %v2199
    %3991 = vmatpush1.bf16.msra.mxu0 %v2198
    %3992 = vmatprep.subr.bf16.mxu0 %v2215
    %3993 = vmatpush1.bf16.msra.mxu0 %v2214
    %3994 = vmatprep.subr.bf16.mxu0 %v2231
    %3995 = vmatpush1.bf16.msra.mxu0 %v2230
    %3996 = vmatprep.subr.bf16.mxu0 %v2247
    %3997 = vmatpush1.bf16.msra.mxu0 %v2246
    %3998 = vmatprep.subr.bf16.mxu0 %v2263
    %3999 = vmatpush1.bf16.msra.mxu0 %v2262
    %4000 = vmatprep.subr.bf16.mxu0 %v2279
    %4001 = vmatpush1.bf16.msra.mxu0 %v2278
    %4002 = vmatprep.subr.bf16.mxu0 %v2295
    %4003 = vmatpush1.bf16.msra.mxu0 %v2294
    %4004 = vmatprep.subr.bf16.mxu0 %v2311
    %4005 = vmatpush1.bf16.msra.mxu0 %v2310
    %4006 = vmatprep.subr.bf16.mxu0 %v2327
    %4007 = vmatpush1.bf16.msra.mxu0 %v2326
    %4008 = vmatprep.subr.bf16.mxu0 %v2343
    %4009 = vmatpush1.bf16.msra.mxu0 %v2342
    %4010 = vmatprep.subr.bf16.mxu0 %v2359
    %4011 = vmatpush1.bf16.msra.mxu0 %v2358
    %4012 = vmatprep.subr.bf16.mxu0 %v2375
    %4013 = vmatpush1.bf16.msra.mxu0 %v2374
    %4014 = vmatprep.subr.bf16.mxu0 %v2391
    %4015 = vmatpush1.bf16.msra.mxu0 %v2390
    %4016 = vmatprep.mubr.bf16.mxu0 %v1621
    %4017 = vmatmul.mubr.bf16.gmra.mrb[0].mxu0 %v1620
    %v4018 = vpop.f32.mrb[0].mxu0
    %v4019 = vadd.f32 0.0, %v4018
    %v4020 = vpop.f32.mrb[0].mxu0
    %v4021 = vadd.f32 0.0, %v4020
    %v4022 = vpop.f32.mrb[0].mxu0
    %v4023 = vpop.f32.mrb[0].mxu0
    %4024 = vdwg.mxu0
    %4025 = vmatprep.subr.bf16.mxu0 %v2407
    %4026 = vmatpush1.bf16.msra.mxu0 %v2406
    %4027 = vmatprep.subr.bf16.mxu0 %v2423
    %4028 = vmatpush1.bf16.msra.mxu0 %v2422
    %4029 = vmatprep.subr.bf16.mxu0 %v2439
    %4030 = vmatpush1.bf16.msra.mxu0 %v2438
    %4031 = vmatprep.subr.bf16.mxu0 %v2455
    %4032 = vmatpush1.bf16.msra.mxu0 %v2454
    %4033 = vmatprep.subr.bf16.mxu0 %v2471
    %4034 = vmatpush1.bf16.msra.mxu0 %v2470
    %4035 = vmatprep.subr.bf16.mxu0 %v2487
    %4036 = vmatpush1.bf16.msra.mxu0 %v2486
    %4037 = vmatprep.subr.bf16.mxu0 %v2503
    %4038 = vmatpush1.bf16.msra.mxu0 %v2502
    %4039 = vmatprep.subr.bf16.mxu0 %v2519
    %4040 = vmatpush1.bf16.msra.mxu0 %v2518
    %4041 = vmatprep.subr.bf16.mxu0 %v2535
    %4042 = vmatpush1.bf16.msra.mxu0 %v2534
    %4043 = vmatprep.subr.bf16.mxu0 %v2551
    %4044 = vmatpush1.bf16.msra.mxu0 %v2550
    %4045 = vmatprep.subr.bf16.mxu0 %v2567
    %4046 = vmatpush1.bf16.msra.mxu0 %v2566
    %4047 = vmatprep.subr.bf16.mxu0 %v2583
    %4048 = vmatpush1.bf16.msra.mxu0 %v2582
    %4049 = vmatprep.subr.bf16.mxu0 %v2599
    %4050 = vmatpush1.bf16.msra.mxu0 %v2598
    %4051 = vmatprep.subr.bf16.mxu0 %v2615
    %4052 = vmatpush1.bf16.msra.mxu0 %v2614
    %4053 = vmatprep.subr.bf16.mxu0 %v2631
    %4054 = vmatpush1.bf16.msra.mxu0 %v2630
    %4055 = vmatprep.subr.bf16.mxu0 %v2647
    %4056 = vmatpush1.bf16.msra.mxu0 %v2646
    %4057 = vmatprep.mubr.bf16.mxu0 %v1623
    %4058 = vmatmul.mubr.bf16.gmra.mrb[0].mxu0 %v1622
    %v4059 = vpop.f32.mrb[0].mxu0
    %v4060 = vadd.f32 %v4019, %v4059
    %v4061 = vpop.f32.mrb[0].mxu0
    %v4062 = vadd.f32 %v4021, %v4061
    %v4063 = vpop.f32.mrb[0].mxu0
    %v4064 = vpop.f32.mrb[0].mxu0
    %4065 = vdwg.mxu0
    %4066 = vmatprep.subr.bf16.mxu0 %v2663
    %4067 = vmatpush1.bf16.msra.mxu0 %v2662
    %4068 = vmatprep.subr.bf16.mxu0 %v2679
    %4069 = vmatpush1.bf16.msra.mxu0 %v2678
    %4070 = vmatprep.subr.bf16.mxu0 %v2695
    %4071 = vmatpush1.bf16.msra.mxu0 %v2694
    %4072 = vmatprep.subr.bf16.mxu0 %v2711
    %4073 = vmatpush1.bf16.msra.mxu0 %v2710
    %4074 = vmatprep.subr.bf16.mxu0 %v2727
    %4075 = vmatpush1.bf16.msra.mxu0 %v2726
    %4076 = vmatprep.subr.bf16.mxu0 %v2743
    %4077 = vmatpush1.bf16.msra.mxu0 %v2742
    %4078 = vmatprep.subr.bf16.mxu0 %v2759
    %4079 = vmatpush1.bf16.msra.mxu0 %v2758
    %4080 = vmatprep.subr.bf16.mxu0 %v2775
    %4081 = vmatpush1.bf16.msra.mxu0 %v2774
    %4082 = vmatprep.subr.bf16.mxu0 %v2791
    %4083 = vmatpush1.bf16.msra.mxu0 %v2790
    %4084 = vmatprep.subr.bf16.mxu0 %v2807
    %4085 = vmatpush1.bf16.msra.mxu0 %v2806
    %4086 = vmatprep.subr.bf16.mxu0 %v2823
    %4087 = vmatpush1.bf16.msra.mxu0 %v2822
    %4088 = vmatprep.subr.bf16.mxu0 %v2839
    %4089 = vmatpush1.bf16.msra.mxu0 %v2838
    %4090 = vmatprep.subr.bf16.mxu0 %v2855
    %4091 = vmatpush1.bf16.msra.mxu0 %v2854
    %4092 = vmatprep.subr.bf16.mxu0 %v2871
    %4093 = vmatpush1.bf16.msra.mxu0 %v2870
    %4094 = vmatprep.subr.bf16.mxu0 %v2887
    %4095 = vmatpush1.bf16.msra.mxu0 %v2886
    %4096 = vmatprep.subr.bf16.mxu0 %v2903
    %4097 = vmatpush1.bf16.msra.mxu0 %v2902
    %4098 = vmatprep.mubr.bf16.mxu0 %v1625
    %4099 = vmatmul.mubr.bf16.gmra.mrb[0].mxu0 %v1624
    %v4100 = vpop.f32.mrb[0].mxu0
    %v4101 = vadd.f32 %v4060, %v4100
    %v4102 = vpop.f32.mrb[0].mxu0
    %v4103 = vadd.f32 %v4062, %v4102
    %v4104 = vpop.f32.mrb[0].mxu0
    %v4105 = vpop.f32.mrb[0].mxu0
    %4106 = vdwg.mxu0
    %4107 = vmatprep.subr.bf16.mxu0 %v2919
    %4108 = vmatpush1.bf16.msra.mxu0 %v2918
    %4109 = vmatprep.subr.bf16.mxu0 %v2935
    %4110 = vmatpush1.bf16.msra.mxu0 %v2934
    %4111 = vmatprep.subr.bf16.mxu0 %v2951
    %4112 = vmatpush1.bf16.msra.mxu0 %v2950
    %4113 = vmatprep.subr.bf16.mxu0 %v2967
    %4114 = vmatpush1.bf16.msra.mxu0 %v2966
    %4115 = vmatprep.subr.bf16.mxu0 %v2983
    %4116 = vmatpush1.bf16.msra.mxu0 %v2982
    %4117 = vmatprep.subr.bf16.mxu0 %v2999
    %4118 = vmatpush1.bf16.msra.mxu0 %v2998
    %4119 = vmatprep.subr.bf16.mxu0 %v3015
    %4120 = vmatpush1.bf16.msra.mxu0 %v3014
    %4121 = vmatprep.subr.bf16.mxu0 %v3031
    %4122 = vmatpush1.bf16.msra.mxu0 %v3030
    %4123 = vmatprep.subr.bf16.mxu0 %v3047
    %4124 = vmatpush1.bf16.msra.mxu0 %v3046
    %4125 = vmatprep.subr.bf16.mxu0 %v3063
    %4126 = vmatpush1.bf16.msra.mxu0 %v3062
    %4127 = vmatprep.subr.bf16.mxu0 %v3079
    %4128 = vmatpush1.bf16.msra.mxu0 %v3078
    %4129 = vmatprep.subr.bf16.mxu0 %v3095
    %4130 = vmatpush1.bf16.msra.mxu0 %v3094
    %4131 = vmatprep.subr.bf16.mxu0 %v3111
    %4132 = vmatpush1.bf16.msra.mxu0 %v3110
    %4133 = vmatprep.subr.bf16.mxu0 %v3127
    %4134 = vmatpush1.bf16.msra.mxu0 %v3126
    %4135 = vmatprep.subr.bf16.mxu0 %v3143
    %4136 = vmatpush1.bf16.msra.mxu0 %v3142
    %4137 = vmatprep.subr.bf16.mxu0 %v3159
    %4138 = vmatpush1.bf16.msra.mxu0 %v3158
    %4139 = vmatprep.mubr.bf16.mxu0 %v1627
    %4140 = vmatmul.mubr.bf16.gmra.mrb[0].mxu0 %v1626
    %v4141 = vpop.f32.mrb[0].mxu0
    %v4142 = vadd.f32 %v4101, %v4141
    %v4143 = vpop.f32.mrb[0].mxu0
    %v4144 = vadd.f32 %v4103, %v4143
    %v4145 = vpop.f32.mrb[0].mxu0
    %v4146 = vpop.f32.mrb[0].mxu0
    %4147 = vdwg.mxu0
    %4148 = vmatprep.subr.bf16.mxu0 %v2153
    %4149 = vmatpush1.bf16.msra.mxu0 %v2152
    %4150 = vmatprep.subr.bf16.mxu0 %v2169
    %4151 = vmatpush1.bf16.msra.mxu0 %v2168
    %4152 = vmatprep.subr.bf16.mxu0 %v2185
    %4153 = vmatpush1.bf16.msra.mxu0 %v2184
    %4154 = vmatprep.subr.bf16.mxu0 %v2201
    %4155 = vmatpush1.bf16.msra.mxu0 %v2200
    %4156 = vmatprep.subr.bf16.mxu0 %v2217
    %4157 = vmatpush1.bf16.msra.mxu0 %v2216
    %4158 = vmatprep.subr.bf16.mxu0 %v2233
    %4159 = vmatpush1.bf16.msra.mxu0 %v2232
    %4160 = vmatprep.subr.bf16.mxu0 %v2249
    %4161 = vmatpush1.bf16.msra.mxu0 %v2248
    %4162 = vmatprep.subr.bf16.mxu0 %v2265
    %4163 = vmatpush1.bf16.msra.mxu0 %v2264
    %4164 = vmatprep.subr.bf16.mxu0 %v2281
    %4165 = vmatpush1.bf16.msra.mxu0 %v2280
    %4166 = vmatprep.subr.bf16.mxu0 %v2297
    %4167 = vmatpush1.bf16.msra.mxu0 %v2296
    %4168 = vmatprep.subr.bf16.mxu0 %v2313
    %4169 = vmatpush1.bf16.msra.mxu0 %v2312
    %4170 = vmatprep.subr.bf16.mxu0 %v2329
    %4171 = vmatpush1.bf16.msra.mxu0 %v2328
    %4172 = vmatprep.subr.bf16.mxu0 %v2345
    %4173 = vmatpush1.bf16.msra.mxu0 %v2344
    %4174 = vmatprep.subr.bf16.mxu0 %v2361
    %4175 = vmatpush1.bf16.msra.mxu0 %v2360
    %4176 = vmatprep.subr.bf16.mxu0 %v2377
    %4177 = vmatpush1.bf16.msra.mxu0 %v2376
    %4178 = vmatprep.subr.bf16.mxu0 %v2393
    %4179 = vmatpush1.bf16.msra.mxu0 %v2392
    %4180 = vmatprep.mubr.bf16.mxu0 %v1621
    %4181 = vmatmul.mubr.bf16.gmra.mrb[0].mxu0 %v1620
    %v4182 = vpop.f32.mrb[0].mxu0
    %v4183 = vadd.f32 0.0, %v4182
    %v4184 = vpop.f32.mrb[0].mxu0
    %v4185 = vadd.f32 0.0, %v4184
    %v4186 = vpop.f32.mrb[0].mxu0
    %v4187 = vpop.f32.mrb[0].mxu0
    %4188 = vdwg.mxu0
    %4189 = vmatprep.subr.bf16.mxu0 %v2409
    %4190 = vmatpush1.bf16.msra.mxu0 %v2408
    %4191 = vmatprep.subr.bf16.mxu0 %v2425
    %4192 = vmatpush1.bf16.msra.mxu0 %v2424
    %4193 = vmatprep.subr.bf16.mxu0 %v2441
    %4194 = vmatpush1.bf16.msra.mxu0 %v2440
    %4195 = vmatprep.subr.bf16.mxu0 %v2457
    %4196 = vmatpush1.bf16.msra.mxu0 %v2456
    %4197 = vmatprep.subr.bf16.mxu0 %v2473
    %4198 = vmatpush1.bf16.msra.mxu0 %v2472
    %4199 = vmatprep.subr.bf16.mxu0 %v2489
    %4200 = vmatpush1.bf16.msra.mxu0 %v2488
    %4201 = vmatprep.subr.bf16.mxu0 %v2505
    %4202 = vmatpush1.bf16.msra.mxu0 %v2504
    %4203 = vmatprep.subr.bf16.mxu0 %v2521
    %4204 = vmatpush1.bf16.msra.mxu0 %v2520
    %4205 = vmatprep.subr.bf16.mxu0 %v2537
    %4206 = vmatpush1.bf16.msra.mxu0 %v2536
    %4207 = vmatprep.subr.bf16.mxu0 %v2553
    %4208 = vmatpush1.bf16.msra.mxu0 %v2552
    %4209 = vmatprep.subr.bf16.mxu0 %v2569
    %4210 = vmatpush1.bf16.msra.mxu0 %v2568
    %4211 = vmatprep.subr.bf16.mxu0 %v2585
    %4212 = vmatpush1.bf16.msra.mxu0 %v2584
    %4213 = vmatprep.subr.bf16.mxu0 %v2601
    %4214 = vmatpush1.bf16.msra.mxu0 %v2600
    %4215 = vmatprep.subr.bf16.mxu0 %v2617
    %4216 = vmatpush1.bf16.msra.mxu0 %v2616
    %4217 = vmatprep.subr.bf16.mxu0 %v2633
    %4218 = vmatpush1.bf16.msra.mxu0 %v2632
    %4219 = vmatprep.subr.bf16.mxu0 %v2649
    %4220 = vmatpush1.bf16.msra.mxu0 %v2648
    %4221 = vmatprep.mubr.bf16.mxu0 %v1623
    %4222 = vmatmul.mubr.bf16.gmra.mrb[0].mxu0 %v1622
    %v4223 = vpop.f32.mrb[0].mxu0
    %v4224 = vadd.f32 %v4183, %v4223
    %v4225 = vpop.f32.mrb[0].mxu0
    %v4226 = vadd.f32 %v4185, %v4225
    %v4227 = vpop.f32.mrb[0].mxu0
    %v4228 = vpop.f32.mrb[0].mxu0
    %4229 = vdwg.mxu0
    %4230 = vmatprep.subr.bf16.mxu0 %v2665
    %4231 = vmatpush1.bf16.msra.mxu0 %v2664
    %4232 = vmatprep.subr.bf16.mxu0 %v2681
    %4233 = vmatpush1.bf16.msra.mxu0 %v2680
    %4234 = vmatprep.subr.bf16.mxu0 %v2697
    %4235 = vmatpush1.bf16.msra.mxu0 %v2696
    %4236 = vmatprep.subr.bf16.mxu0 %v2713
    %4237 = vmatpush1.bf16.msra.mxu0 %v2712
    %4238 = vmatprep.subr.bf16.mxu0 %v2729
    %4239 = vmatpush1.bf16.msra.mxu0 %v2728
    %4240 = vmatprep.subr.bf16.mxu0 %v2745
    %4241 = vmatpush1.bf16.msra.mxu0 %v2744
    %4242 = vmatprep.subr.bf16.mxu0 %v2761
    %4243 = vmatpush1.bf16.msra.mxu0 %v2760
    %4244 = vmatprep.subr.bf16.mxu0 %v2777
    %4245 = vmatpush1.bf16.msra.mxu0 %v2776
    %4246 = vmatprep.subr.bf16.mxu0 %v2793
    %4247 = vmatpush1.bf16.msra.mxu0 %v2792
    %4248 = vmatprep.subr.bf16.mxu0 %v2809
    %4249 = vmatpush1.bf16.msra.mxu0 %v2808
    %4250 = vmatprep.subr.bf16.mxu0 %v2825
    %4251 = vmatpush1.bf16.msra.mxu0 %v2824
    %4252 = vmatprep.subr.bf16.mxu0 %v2841
    %4253 = vmatpush1.bf16.msra.mxu0 %v2840
    %4254 = vmatprep.subr.bf16.mxu0 %v2857
    %4255 = vmatpush1.bf16.msra.mxu0 %v2856
    %4256 = vmatprep.subr.bf16.mxu0 %v2873
    %4257 = vmatpush1.bf16.msra.mxu0 %v2872
    %4258 = vmatprep.subr.bf16.mxu0 %v2889
    %4259 = vmatpush1.bf16.msra.mxu0 %v2888
    %4260 = vmatprep.subr.bf16.mxu0 %v2905
    %4261 = vmatpush1.bf16.msra.mxu0 %v2904
    %4262 = vmatprep.mubr.bf16.mxu0 %v1625
    %4263 = vmatmul.mubr.bf16.gmra.mrb[0].mxu0 %v1624
    %v4264 = vpop.f32.mrb[0].mxu0
    %v4265 = vadd.f32 %v4224, %v4264
    %v4266 = vpop.f32.mrb[0].mxu0
    %v4267 = vadd.f32 %v4226, %v4266
    %v4268 = vpop.f32.mrb[0].mxu0
    %v4269 = vpop.f32.mrb[0].mxu0
    %4270 = vdwg.mxu0
    %4271 = vmatprep.subr.bf16.mxu0 %v2921
    %4272 = vmatpush1.bf16.msra.mxu0 %v2920
    %4273 = vmatprep.subr.bf16.mxu0 %v2937
    %4274 = vmatpush1.bf16.msra.mxu0 %v2936
    %4275 = vmatprep.subr.bf16.mxu0 %v2953
    %4276 = vmatpush1.bf16.msra.mxu0 %v2952
    %4277 = vmatprep.subr.bf16.mxu0 %v2969
    %4278 = vmatpush1.bf16.msra.mxu0 %v2968
    %4279 = vmatprep.subr.bf16.mxu0 %v2985
    %4280 = vmatpush1.bf16.msra.mxu0 %v2984
    %4281 = vmatprep.subr.bf16.mxu0 %v3001
    %4282 = vmatpush1.bf16.msra.mxu0 %v3000
    %4283 = vmatprep.subr.bf16.mxu0 %v3017
    %4284 = vmatpush1.bf16.msra.mxu0 %v3016
    %4285 = vmatprep.subr.bf16.mxu0 %v3033
    %4286 = vmatpush1.bf16.msra.mxu0 %v3032
    %4287 = vmatprep.subr.bf16.mxu0 %v3049
    %4288 = vmatpush1.bf16.msra.mxu0 %v3048
    %4289 = vmatprep.subr.bf16.mxu0 %v3065
    %4290 = vmatpush1.bf16.msra.mxu0 %v3064
    %4291 = vmatprep.subr.bf16.mxu0 %v3081
    %4292 = vmatpush1.bf16.msra.mxu0 %v3080
    %4293 = vmatprep.subr.bf16.mxu0 %v3097
    %4294 = vmatpush1.bf16.msra.mxu0 %v3096
    %4295 = vmatprep.subr.bf16.mxu0 %v3113
    %4296 = vmatpush1.bf16.msra.mxu0 %v3112
    %4297 = vmatprep.subr.bf16.mxu0 %v3129
    %4298 = vmatpush1.bf16.msra.mxu0 %v3128
    %4299 = vmatprep.subr.bf16.mxu0 %v3145
    %4300 = vmatpush1.bf16.msra.mxu0 %v3144
    %4301 = vmatprep.subr.bf16.mxu0 %v3161
    %4302 = vmatpush1.bf16.msra.mxu0 %v3160
    %4303 = vmatprep.mubr.bf16.mxu0 %v1627
    %4304 = vmatmul.mubr.bf16.gmra.mrb[0].mxu0 %v1626
    %v4305 = vpop.f32.mrb[0].mxu0
    %v4306 = vadd.f32 %v4265, %v4305
    %v4307 = vpop.f32.mrb[0].mxu0
    %v4308 = vadd.f32 %v4267, %v4307
    %v4309 = vpop.f32.mrb[0].mxu0
    %v4310 = vpop.f32.mrb[0].mxu0
    %4311 = vdwg.mxu0
    %4312 = vmatprep.subr.bf16.mxu0 %v2155
    %4313 = vmatpush1.bf16.msra.mxu0 %v2154
    %4314 = vmatprep.subr.bf16.mxu0 %v2171
    %4315 = vmatpush1.bf16.msra.mxu0 %v2170
    %4316 = vmatprep.subr.bf16.mxu0 %v2187
    %4317 = vmatpush1.bf16.msra.mxu0 %v2186
    %4318 = vmatprep.subr.bf16.mxu0 %v2203
    %4319 = vmatpush1.bf16.msra.mxu0 %v2202
    %4320 = vmatprep.subr.bf16.mxu0 %v2219
    %4321 = vmatpush1.bf16.msra.mxu0 %v2218
    %4322 = vmatprep.subr.bf16.mxu0 %v2235
    %4323 = vmatpush1.bf16.msra.mxu0 %v2234
    %4324 = vmatprep.subr.bf16.mxu0 %v2251
    %4325 = vmatpush1.bf16.msra.mxu0 %v2250
    %4326 = vmatprep.subr.bf16.mxu0 %v2267
    %4327 = vmatpush1.bf16.msra.mxu0 %v2266
    %4328 = vmatprep.subr.bf16.mxu0 %v2283
    %4329 = vmatpush1.bf16.msra.mxu0 %v2282
    %4330 = vmatprep.subr.bf16.mxu0 %v2299
    %4331 = vmatpush1.bf16.msra.mxu0 %v2298
    %4332 = vmatprep.subr.bf16.mxu0 %v2315
    %4333 = vmatpush1.bf16.msra.mxu0 %v2314
    %4334 = vmatprep.subr.bf16.mxu0 %v2331
    %4335 = vmatpush1.bf16.msra.mxu0 %v2330
    %4336 = vmatprep.subr.bf16.mxu0 %v2347
    %4337 = vmatpush1.bf16.msra.mxu0 %v2346
    %4338 = vmatprep.subr.bf16.mxu0 %v2363
    %4339 = vmatpush1.bf16.msra.mxu0 %v2362
    %4340 = vmatprep.subr.bf16.mxu0 %v2379
    %4341 = vmatpush1.bf16.msra.mxu0 %v2378
    %4342 = vmatprep.subr.bf16.mxu0 %v2395
    %4343 = vmatpush1.bf16.msra.mxu0 %v2394
    %4344 = vmatprep.mubr.bf16.mxu0 %v1621
    %4345 = vmatmul.mubr.bf16.gmra.mrb[0].mxu0 %v1620
    %v4346 = vpop.f32.mrb[0].mxu0
    %v4347 = vadd.f32 0.0, %v4346
    %v4348 = vpop.f32.mrb[0].mxu0
    %v4349 = vadd.f32 0.0, %v4348
    %v4350 = vpop.f32.mrb[0].mxu0
    %v4351 = vpop.f32.mrb[0].mxu0
    %4352 = vdwg.mxu0
    %4353 = vmatprep.subr.bf16.mxu0 %v2411
    %4354 = vmatpush1.bf16.msra.mxu0 %v2410
    %4355 = vmatprep.subr.bf16.mxu0 %v2427
    %4356 = vmatpush1.bf16.msra.mxu0 %v2426
    %4357 = vmatprep.subr.bf16.mxu0 %v2443
    %4358 = vmatpush1.bf16.msra.mxu0 %v2442
    %4359 = vmatprep.subr.bf16.mxu0 %v2459
    %4360 = vmatpush1.bf16.msra.mxu0 %v2458
    %4361 = vmatprep.subr.bf16.mxu0 %v2475
    %4362 = vmatpush1.bf16.msra.mxu0 %v2474
    %4363 = vmatprep.subr.bf16.mxu0 %v2491
    %4364 = vmatpush1.bf16.msra.mxu0 %v2490
    %4365 = vmatprep.subr.bf16.mxu0 %v2507
    %4366 = vmatpush1.bf16.msra.mxu0 %v2506
    %4367 = vmatprep.subr.bf16.mxu0 %v2523
    %4368 = vmatpush1.bf16.msra.mxu0 %v2522
    %4369 = vmatprep.subr.bf16.mxu0 %v2539
    %4370 = vmatpush1.bf16.msra.mxu0 %v2538
    %4371 = vmatprep.subr.bf16.mxu0 %v2555
    %4372 = vmatpush1.bf16.msra.mxu0 %v2554
    %4373 = vmatprep.subr.bf16.mxu0 %v2571
    %4374 = vmatpush1.bf16.msra.mxu0 %v2570
    %4375 = vmatprep.subr.bf16.mxu0 %v2587
    %4376 = vmatpush1.bf16.msra.mxu0 %v2586
    %4377 = vmatprep.subr.bf16.mxu0 %v2603
    %4378 = vmatpush1.bf16.msra.mxu0 %v2602
    %4379 = vmatprep.subr.bf16.mxu0 %v2619
    %4380 = vmatpush1.bf16.msra.mxu0 %v2618
    %4381 = vmatprep.subr.bf16.mxu0 %v2635
    %4382 = vmatpush1.bf16.msra.mxu0 %v2634
    %4383 = vmatprep.subr.bf16.mxu0 %v2651
    %4384 = vmatpush1.bf16.msra.mxu0 %v2650
    %4385 = vmatprep.mubr.bf16.mxu0 %v1623
    %4386 = vmatmul.mubr.bf16.gmra.mrb[0].mxu0 %v1622
    %v4387 = vpop.f32.mrb[0].mxu0
    %v4388 = vadd.f32 %v4347, %v4387
    %v4389 = vpop.f32.mrb[0].mxu0
    %v4390 = vadd.f32 %v4349, %v4389
    %v4391 = vpop.f32.mrb[0].mxu0
    %v4392 = vpop.f32.mrb[0].mxu0
    %4393 = vdwg.mxu0
    %4394 = vmatprep.subr.bf16.mxu0 %v2667
    %4395 = vmatpush1.bf16.msra.mxu0 %v2666
    %4396 = vmatprep.subr.bf16.mxu0 %v2683
    %4397 = vmatpush1.bf16.msra.mxu0 %v2682
    %4398 = vmatprep.subr.bf16.mxu0 %v2699
    %4399 = vmatpush1.bf16.msra.mxu0 %v2698
    %4400 = vmatprep.subr.bf16.mxu0 %v2715
    %4401 = vmatpush1.bf16.msra.mxu0 %v2714
    %4402 = vmatprep.subr.bf16.mxu0 %v2731
    %4403 = vmatpush1.bf16.msra.mxu0 %v2730
    %4404 = vmatprep.subr.bf16.mxu0 %v2747
    %4405 = vmatpush1.bf16.msra.mxu0 %v2746
    %4406 = vmatprep.subr.bf16.mxu0 %v2763
    %4407 = vmatpush1.bf16.msra.mxu0 %v2762
    %4408 = vmatprep.subr.bf16.mxu0 %v2779
    %4409 = vmatpush1.bf16.msra.mxu0 %v2778
    %4410 = vmatprep.subr.bf16.mxu0 %v2795
    %4411 = vmatpush1.bf16.msra.mxu0 %v2794
    %4412 = vmatprep.subr.bf16.mxu0 %v2811
    %4413 = vmatpush1.bf16.msra.mxu0 %v2810
    %4414 = vmatprep.subr.bf16.mxu0 %v2827
    %4415 = vmatpush1.bf16.msra.mxu0 %v2826
    %4416 = vmatprep.subr.bf16.mxu0 %v2843
    %4417 = vmatpush1.bf16.msra.mxu0 %v2842
    %4418 = vmatprep.subr.bf16.mxu0 %v2859
    %4419 = vmatpush1.bf16.msra.mxu0 %v2858
    %4420 = vmatprep.subr.bf16.mxu0 %v2875
    %4421 = vmatpush1.bf16.msra.mxu0 %v2874
    %4422 = vmatprep.subr.bf16.mxu0 %v2891
    %4423 = vmatpush1.bf16.msra.mxu0 %v2890
    %4424 = vmatprep.subr.bf16.mxu0 %v2907
    %4425 = vmatpush1.bf16.msra.mxu0 %v2906
    %4426 = vmatprep.mubr.bf16.mxu0 %v1625
    %4427 = vmatmul.mubr.bf16.gmra.mrb[0].mxu0 %v1624
    %v4428 = vpop.f32.mrb[0].mxu0
    %v4429 = vadd.f32 %v4388, %v4428
    %v4430 = vpop.f32.mrb[0].mxu0
    %v4431 = vadd.f32 %v4390, %v4430
    %v4432 = vpop.f32.mrb[0].mxu0
    %v4433 = vpop.f32.mrb[0].mxu0
    %4434 = vdwg.mxu0
    %4435 = vmatprep.subr.bf16.mxu0 %v2923
    %4436 = vmatpush1.bf16.msra.mxu0 %v2922
    %4437 = vmatprep.subr.bf16.mxu0 %v2939
    %4438 = vmatpush1.bf16.msra.mxu0 %v2938
    %4439 = vmatprep.subr.bf16.mxu0 %v2955
    %4440 = vmatpush1.bf16.msra.mxu0 %v2954
    %4441 = vmatprep.subr.bf16.mxu0 %v2971
    %4442 = vmatpush1.bf16.msra.mxu0 %v2970
    %4443 = vmatprep.subr.bf16.mxu0 %v2987
    %4444 = vmatpush1.bf16.msra.mxu0 %v2986
    %4445 = vmatprep.subr.bf16.mxu0 %v3003
    %4446 = vmatpush1.bf16.msra.mxu0 %v3002
    %4447 = vmatprep.subr.bf16.mxu0 %v3019
    %4448 = vmatpush1.bf16.msra.mxu0 %v3018
    %4449 = vmatprep.subr.bf16.mxu0 %v3035
    %4450 = vmatpush1.bf16.msra.mxu0 %v3034
    %4451 = vmatprep.subr.bf16.mxu0 %v3051
    %4452 = vmatpush1.bf16.msra.mxu0 %v3050
    %4453 = vmatprep.subr.bf16.mxu0 %v3067
    %4454 = vmatpush1.bf16.msra.mxu0 %v3066
    %4455 = vmatprep.subr.bf16.mxu0 %v3083
    %4456 = vmatpush1.bf16.msra.mxu0 %v3082
    %4457 = vmatprep.subr.bf16.mxu0 %v3099
    %4458 = vmatpush1.bf16.msra.mxu0 %v3098
    %4459 = vmatprep.subr.bf16.mxu0 %v3115
    %4460 = vmatpush1.bf16.msra.mxu0 %v3114
    %4461 = vmatprep.subr.bf16.mxu0 %v3131
    %4462 = vmatpush1.bf16.msra.mxu0 %v3130
    %4463 = vmatprep.subr.bf16.mxu0 %v3147
    %4464 = vmatpush1.bf16.msra.mxu0 %v3146
    %4465 = vmatprep.subr.bf16.mxu0 %v3163
    %4466 = vmatpush1.bf16.msra.mxu0 %v3162
    %4467 = vmatprep.mubr.bf16.mxu0 %v1627
    %4468 = vmatmul.mubr.bf16.gmra.mrb[0].mxu0 %v1626
    %v4469 = vpop.f32.mrb[0].mxu0
    %v4470 = vadd.f32 %v4429, %v4469
    %v4471 = vpop.f32.mrb[0].mxu0
    %v4472 = vadd.f32 %v4431, %v4471
    %v4473 = vpop.f32.mrb[0].mxu0
    %v4474 = vpop.f32.mrb[0].mxu0
    %4475 = vdwg.mxu0
    %v4476 = vld [vmem:[#allocation19] sm:$0xff]
    %v4477 = vld [vmem:[#allocation19 + $0x8] sm:$0xff]
    %v4480 = vlaneseq
    %v4481 = vshrl.u32 %v4480, 7
    %v4482 = vsub.s32 0, %v4481
    %v4483 = vrot.slane %v4476, %v4482
    %v4484 = vlaneseq
    %v4485 = vshrl.u32 %v4484, 7
    %v4486 = vsub.s32 1, %v4485
    %v4487 = vrot.slane %v4476, %v4486
    %v4488 = vlaneseq
    %v4489 = vshrl.u32 %v4488, 7
    %v4490 = vsub.s32 2, %v4489
    %v4491 = vrot.slane %v4476, %v4490
    %v4492 = vlaneseq
    %v4493 = vshrl.u32 %v4492, 7
    %v4494 = vsub.s32 3, %v4493
    %v4495 = vrot.slane %v4476, %v4494
    %v4496 = vlaneseq
    %v4497 = vshrl.u32 %v4496, 7
    %v4498 = vsub.s32 4, %v4497
    %v4499 = vrot.slane %v4476, %v4498
    %v4500 = vlaneseq
    %v4501 = vshrl.u32 %v4500, 7
    %v4502 = vsub.s32 5, %v4501
    %v4503 = vrot.slane %v4476, %v4502
    %v4504 = vlaneseq
    %v4505 = vshrl.u32 %v4504, 7
    %v4506 = vsub.s32 6, %v4505
    %v4507 = vrot.slane %v4476, %v4506
    %v4508 = vlaneseq
    %v4509 = vshrl.u32 %v4508, 7
    %v4510 = vsub.s32 7, %v4509
    %v4511 = vrot.slane %v4476, %v4510
    %v4512 = vlaneseq
    %v4513 = vshrl.u32 %v4512, 7
    %v4514 = vsub.s32 0, %v4513
    %v4515 = vrot.slane %v4477, %v4514
    %v4516 = vlaneseq
    %v4517 = vshrl.u32 %v4516, 7
    %v4518 = vsub.s32 1, %v4517
    %v4519 = vrot.slane %v4477, %v4518
    %v4520 = vlaneseq
    %v4521 = vshrl.u32 %v4520, 7
    %v4522 = vsub.s32 2, %v4521
    %v4523 = vrot.slane %v4477, %v4522
    %v4524 = vlaneseq
    %v4525 = vshrl.u32 %v4524, 7
    %v4526 = vsub.s32 3, %v4525
    %v4527 = vrot.slane %v4477, %v4526
    %v4528 = vlaneseq
    %v4529 = vshrl.u32 %v4528, 7
    %v4530 = vsub.s32 4, %v4529
    %v4531 = vrot.slane %v4477, %v4530
    %v4532 = vlaneseq
    %v4533 = vshrl.u32 %v4532, 7
    %v4534 = vsub.s32 5, %v4533
    %v4535 = vrot.slane %v4477, %v4534
    %v4536 = vlaneseq
    %v4537 = vshrl.u32 %v4536, 7
    %v4538 = vsub.s32 6, %v4537
    %v4539 = vrot.slane %v4477, %v4538
    %v4540 = vlaneseq
    %v4541 = vshrl.u32 %v4540, 7
    %v4542 = vsub.s32 7, %v4541
    %v4543 = vrot.slane %v4477, %v4542
    %v4560 = vmul.f32 %v3322, %v4483
    %v4561 = vmul.f32 %v3324, %v4487
    %v4562 = vmul.f32 %v3486, %v4491
    %v4563 = vmul.f32 %v3488, %v4495
    %v4564 = vmul.f32 %v3650, %v4499
    %v4565 = vmul.f32 %v3652, %v4503
    %v4566 = vmul.f32 %v3814, %v4507
    %v4567 = vmul.f32 %v3816, %v4511
    %v4568 = vmul.f32 %v3978, %v4515
    %v4569 = vmul.f32 %v3980, %v4519
    %v4570 = vmul.f32 %v4142, %v4523
    %v4571 = vmul.f32 %v4144, %v4527
    %v4572 = vmul.f32 %v4306, %v4531
    %v4573 = vmul.f32 %v4308, %v4535
    %v4574 = vmul.f32 %v4470, %v4539
    %v4575 = vmul.f32 %v4472, %v4543
    %v4576 = vld [vmem:[#allocation16] sm:$0xff]
    %v4577 = vld [vmem:[#allocation16 + $0x8] sm:$0xff]
    %v4578 = vld [vmem:[#allocation18] sm:$0xff]
    %v4579 = vld [vmem:[#allocation18 + $0x8] sm:$0xff]
    %v4580 = vrot.slane %v4560, 4
    %v4581 = vadd.f32 %v4560, %v4580
    %v4582 = vrot.slane %v4581, 2
    %v4583 = vadd.f32 %v4581, %v4582
    %v4584 = vrot.slane %v4583, 1
    %v4585 = vadd.f32 %v4583, %v4584
    %v4586 = vrot.slane %v4561, 4
    %v4587 = vadd.f32 %v4561, %v4586
    %v4588 = vrot.slane %v4587, 2
    %v4589 = vadd.f32 %v4587, %v4588
    %v4590 = vrot.slane %v4589, 1
    %v4591 = vadd.f32 %v4589, %v4590
    %v4592 = vrot.slane %v4562, 4
    %v4593 = vadd.f32 %v4562, %v4592
    %v4594 = vrot.slane %v4593, 2
    %v4595 = vadd.f32 %v4593, %v4594
    %v4596 = vrot.slane %v4595, 1
    %v4597 = vadd.f32 %v4595, %v4596
    %v4598 = vrot.slane %v4563, 4
    %v4599 = vadd.f32 %v4563, %v4598
    %v4600 = vrot.slane %v4599, 2
    %v4601 = vadd.f32 %v4599, %v4600
    %v4602 = vrot.slane %v4601, 1
    %v4603 = vadd.f32 %v4601, %v4602
    %v4604 = vrot.slane %v4564, 4
    %v4605 = vadd.f32 %v4564, %v4604
    %v4606 = vrot.slane %v4605, 2
    %v4607 = vadd.f32 %v4605, %v4606
    %v4608 = vrot.slane %v4607, 1
    %v4609 = vadd.f32 %v4607, %v4608
    %v4610 = vrot.slane %v4565, 4
    %v4611 = vadd.f32 %v4565, %v4610
    %v4612 = vrot.slane %v4611, 2
    %v4613 = vadd.f32 %v4611, %v4612
    %v4614 = vrot.slane %v4613, 1
    %v4615 = vadd.f32 %v4613, %v4614
    %v4616 = vrot.slane %v4566, 4
    %v4617 = vadd.f32 %v4566, %v4616
    %v4618 = vrot.slane %v4617, 2
    %v4619 = vadd.f32 %v4617, %v4618
    %v4620 = vrot.slane %v4619, 1
    %v4621 = vadd.f32 %v4619, %v4620
    %v4622 = vrot.slane %v4567, 4
    %v4623 = vadd.f32 %v4567, %v4622
    %v4624 = vrot.slane %v4623, 2
    %v4625 = vadd.f32 %v4623, %v4624
    %v4626 = vrot.slane %v4625, 1
    %v4627 = vadd.f32 %v4625, %v4626
    %v4628 = vrot.slane %v4568, 4
    %v4629 = vadd.f32 %v4568, %v4628
    %v4630 = vrot.slane %v4629, 2
    %v4631 = vadd.f32 %v4629, %v4630
    %v4632 = vrot.slane %v4631, 1
    %v4633 = vadd.f32 %v4631, %v4632
    %v4634 = vrot.slane %v4569, 4
    %v4635 = vadd.f32 %v4569, %v4634
    %v4636 = vrot.slane %v4635, 2
    %v4637 = vadd.f32 %v4635, %v4636
    %v4638 = vrot.slane %v4637, 1
    %v4639 = vadd.f32 %v4637, %v4638
    %v4640 = vrot.slane %v4570, 4
    %v4641 = vadd.f32 %v4570, %v4640
    %v4642 = vrot.slane %v4641, 2
    %v4643 = vadd.f32 %v4641, %v4642
    %v4644 = vrot.slane %v4643, 1
    %v4645 = vadd.f32 %v4643, %v4644
    %v4646 = vrot.slane %v4571, 4
    %v4647 = vadd.f32 %v4571, %v4646
    %v4648 = vrot.slane %v4647, 2
    %v4649 = vadd.f32 %v4647, %v4648
    %v4650 = vrot.slane %v4649, 1
    %v4651 = vadd.f32 %v4649, %v4650
    %v4652 = vrot.slane %v4572, 4
    %v4653 = vadd.f32 %v4572, %v4652
    %v4654 = vrot.slane %v4653, 2
    %v4655 = vadd.f32 %v4653, %v4654
    %v4656 = vrot.slane %v4655, 1
    %v4657 = vadd.f32 %v4655, %v4656
    %v4658 = vrot.slane %v4573, 4
    %v4659 = vadd.f32 %v4573, %v4658
    %v4660 = vrot.slane %v4659, 2
    %v4661 = vadd.f32 %v4659, %v4660
    %v4662 = vrot.slane %v4661, 1
    %v4663 = vadd.f32 %v4661, %v4662
    %v4664 = vrot.slane %v4574, 4
    %v4665 = vadd.f32 %v4574, %v4664
    %v4666 = vrot.slane %v4665, 2
    %v4667 = vadd.f32 %v4665, %v4666
    %v4668 = vrot.slane %v4667, 1
    %v4669 = vadd.f32 %v4667, %v4668
    %v4670 = vrot.slane %v4575, 4
    %v4671 = vadd.f32 %v4575, %v4670
    %v4672 = vrot.slane %v4671, 2
    %v4673 = vadd.f32 %v4671, %v4672
    %v4674 = vrot.slane %v4673, 1
    %v4675 = vadd.f32 %v4673, %v4674
    %v4676 = vmul.f32 %v4585, %v402
    %v4677 = vmul.f32 %v4591, %v402
    %v4678 = vmul.f32 %v4597, %v402
    %v4679 = vmul.f32 %v4603, %v402
    %v4680 = vmul.f32 %v4609, %v402
    %v4681 = vmul.f32 %v4615, %v402
    %v4682 = vmul.f32 %v4621, %v402
    %v4683 = vmul.f32 %v4627, %v402
    %v4684 = vmul.f32 %v4633, %v402
    %v4685 = vmul.f32 %v4639, %v402
    %v4686 = vmul.f32 %v4645, %v402
    %v4687 = vmul.f32 %v4651, %v402
    %v4688 = vmul.f32 %v4657, %v402
    %v4689 = vmul.f32 %v4663, %v402
    %v4690 = vmul.f32 %v4669, %v402
    %v4691 = vmul.f32 %v4675, %v402
    %v4692 = vsub.f32 %v4560, %v4676
    %v4693 = vsub.f32 %v4561, %v4677
    %v4694 = vsub.f32 %v4562, %v4678
    %v4695 = vsub.f32 %v4563, %v4679
    %v4696 = vsub.f32 %v4564, %v4680
    %v4697 = vsub.f32 %v4565, %v4681
    %v4698 = vsub.f32 %v4566, %v4682
    %v4699 = vsub.f32 %v4567, %v4683
    %v4700 = vsub.f32 %v4568, %v4684
    %v4701 = vsub.f32 %v4569, %v4685
    %v4702 = vsub.f32 %v4570, %v4686
    %v4703 = vsub.f32 %v4571, %v4687
    %v4704 = vsub.f32 %v4572, %v4688
    %v4705 = vsub.f32 %v4573, %v4689
    %v4706 = vsub.f32 %v4574, %v4690
    %v4707 = vsub.f32 %v4575, %v4691
    %v4708 = vmul.f32 %v4692, %v4692
    %v4709 = vmul.f32 %v4693, %v4693
    %v4710 = vmul.f32 %v4694, %v4694
    %v4711 = vmul.f32 %v4695, %v4695
    %v4712 = vmul.f32 %v4696, %v4696
    %v4713 = vmul.f32 %v4697, %v4697
    %v4714 = vmul.f32 %v4698, %v4698
    %v4715 = vmul.f32 %v4699, %v4699
    %v4716 = vmul.f32 %v4700, %v4700
    %v4717 = vmul.f32 %v4701, %v4701
    %v4718 = vmul.f32 %v4702, %v4702
    %v4719 = vmul.f32 %v4703, %v4703
    %v4720 = vmul.f32 %v4704, %v4704
    %v4721 = vmul.f32 %v4705, %v4705
    %v4722 = vmul.f32 %v4706, %v4706
    %v4723 = vmul.f32 %v4707, %v4707
    %v4724 = vrot.slane %v4708, 4
    %v4725 = vadd.f32 %v4708, %v4724
    %v4726 = vrot.slane %v4725, 2
    %v4727 = vadd.f32 %v4725, %v4726
    %v4728 = vrot.slane %v4727, 1
    %v4729 = vadd.f32 %v4727, %v4728
    %v4730 = vrot.slane %v4709, 4
    %v4731 = vadd.f32 %v4709, %v4730
    %v4732 = vrot.slane %v4731, 2
    %v4733 = vadd.f32 %v4731, %v4732
    %v4734 = vrot.slane %v4733, 1
    %v4735 = vadd.f32 %v4733, %v4734
    %v4736 = vrot.slane %v4710, 4
    %v4737 = vadd.f32 %v4710, %v4736
    %v4738 = vrot.slane %v4737, 2
    %v4739 = vadd.f32 %v4737, %v4738
    %v4740 = vrot.slane %v4739, 1
    %v4741 = vadd.f32 %v4739, %v4740
    %v4742 = vrot.slane %v4711, 4
    %v4743 = vadd.f32 %v4711, %v4742
    %v4744 = vrot.slane %v4743, 2
    %v4745 = vadd.f32 %v4743, %v4744
    %v4746 = vrot.slane %v4745, 1
    %v4747 = vadd.f32 %v4745, %v4746
    %v4748 = vrot.slane %v4712, 4
    %v4749 = vadd.f32 %v4712, %v4748
    %v4750 = vrot.slane %v4749, 2
    %v4751 = vadd.f32 %v4749, %v4750
    %v4752 = vrot.slane %v4751, 1
    %v4753 = vadd.f32 %v4751, %v4752
    %v4754 = vrot.slane %v4713, 4
    %v4755 = vadd.f32 %v4713, %v4754
    %v4756 = vrot.slane %v4755, 2
    %v4757 = vadd.f32 %v4755, %v4756
    %v4758 = vrot.slane %v4757, 1
    %v4759 = vadd.f32 %v4757, %v4758
    %v4760 = vrot.slane %v4714, 4
    %v4761 = vadd.f32 %v4714, %v4760
    %v4762 = vrot.slane %v4761, 2
    %v4763 = vadd.f32 %v4761, %v4762
    %v4764 = vrot.slane %v4763, 1
    %v4765 = vadd.f32 %v4763, %v4764
    %v4766 = vrot.slane %v4715, 4
    %v4767 = vadd.f32 %v4715, %v4766
    %v4768 = vrot.slane %v4767, 2
    %v4769 = vadd.f32 %v4767, %v4768
    %v4770 = vrot.slane %v4769, 1
    %v4771 = vadd.f32 %v4769, %v4770
    %v4772 = vrot.slane %v4716, 4
    %v4773 = vadd.f32 %v4716, %v4772
    %v4774 = vrot.slane %v4773, 2
    %v4775 = vadd.f32 %v4773, %v4774
    %v4776 = vrot.slane %v4775, 1
    %v4777 = vadd.f32 %v4775, %v4776
    %v4778 = vrot.slane %v4717, 4
    %v4779 = vadd.f32 %v4717, %v4778
    %v4780 = vrot.slane %v4779, 2
    %v4781 = vadd.f32 %v4779, %v4780
    %v4782 = vrot.slane %v4781, 1
    %v4783 = vadd.f32 %v4781, %v4782
    %v4784 = vrot.slane %v4718, 4
    %v4785 = vadd.f32 %v4718, %v4784
    %v4786 = vrot.slane %v4785, 2
    %v4787 = vadd.f32 %v4785, %v4786
    %v4788 = vrot.slane %v4787, 1
    %v4789 = vadd.f32 %v4787, %v4788
    %v4790 = vrot.slane %v4719, 4
    %v4791 = vadd.f32 %v4719, %v4790
    %v4792 = vrot.slane %v4791, 2
    %v4793 = vadd.f32 %v4791, %v4792
    %v4794 = vrot.slane %v4793, 1
    %v4795 = vadd.f32 %v4793, %v4794
    %v4796 = vrot.slane %v4720, 4
    %v4797 = vadd.f32 %v4720, %v4796
    %v4798 = vrot.slane %v4797, 2
    %v4799 = vadd.f32 %v4797, %v4798
    %v4800 = vrot.slane %v4799, 1
    %v4801 = vadd.f32 %v4799, %v4800
    %v4802 = vrot.slane %v4721, 4
    %v4803 = vadd.f32 %v4721, %v4802
    %v4804 = vrot.slane %v4803, 2
    %v4805 = vadd.f32 %v4803, %v4804
    %v4806 = vrot.slane %v4805, 1
    %v4807 = vadd.f32 %v4805, %v4806
    %v4808 = vrot.slane %v4722, 4
    %v4809 = vadd.f32 %v4722, %v4808
    %v4810 = vrot.slane %v4809, 2
    %v4811 = vadd.f32 %v4809, %v4810
    %v4812 = vrot.slane %v4811, 1
    %v4813 = vadd.f32 %v4811, %v4812
    %v4814 = vrot.slane %v4723, 4
    %v4815 = vadd.f32 %v4723, %v4814
    %v4816 = vrot.slane %v4815, 2
    %v4817 = vadd.f32 %v4815, %v4816
    %v4818 = vrot.slane %v4817, 1
    %v4819 = vadd.f32 %v4817, %v4818
    %v4820 = vmul.f32 %v4729, %v402
    %v4821 = vmul.f32 %v4735, %v402
    %v4822 = vmul.f32 %v4741, %v402
    %v4823 = vmul.f32 %v4747, %v402
    %v4824 = vmul.f32 %v4753, %v402
    %v4825 = vmul.f32 %v4759, %v402
    %v4826 = vmul.f32 %v4765, %v402
    %v4827 = vmul.f32 %v4771, %v402
    %v4828 = vmul.f32 %v4777, %v402
    %v4829 = vmul.f32 %v4783, %v402
    %v4830 = vmul.f32 %v4789, %v402
    %v4831 = vmul.f32 %v4795, %v402
    %v4832 = vmul.f32 %v4801, %v402
    %v4833 = vmul.f32 %v4807, %v402
    %v4834 = vmul.f32 %v4813, %v402
    %v4835 = vmul.f32 %v4819, %v402
    %v4836 = vadd.f32 %v4820, 1e-05
    %v4837 = vadd.f32 %v4821, 1e-05
    %v4838 = vadd.f32 %v4822, 1e-05
    %v4839 = vadd.f32 %v4823, 1e-05
    %v4840 = vadd.f32 %v4824, 1e-05
    %v4841 = vadd.f32 %v4825, 1e-05
    %v4842 = vadd.f32 %v4826, 1e-05
    %v4843 = vadd.f32 %v4827, 1e-05
    %v4844 = vadd.f32 %v4828, 1e-05
    %v4845 = vadd.f32 %v4829, 1e-05
    %v4846 = vadd.f32 %v4830, 1e-05
    %v4847 = vadd.f32 %v4831, 1e-05
    %v4848 = vadd.f32 %v4832, 1e-05
    %v4849 = vadd.f32 %v4833, 1e-05
    %v4850 = vadd.f32 %v4834, 1e-05
    %v4851 = vadd.f32 %v4835, 1e-05
    %v4852 = vrsqrt.pop %v4836
    %v4853 = vrsqrt.pop %v4837
    %v4854 = vrsqrt.pop %v4838
    %v4855 = vrsqrt.pop %v4839
    %v4856 = vrsqrt.pop %v4840
    %v4857 = vrsqrt.pop %v4841
    %v4858 = vrsqrt.pop %v4842
    %v4859 = vrsqrt.pop %v4843
    %v4860 = vrsqrt.pop %v4844
    %v4861 = vrsqrt.pop %v4845
    %v4862 = vrsqrt.pop %v4846
    %v4863 = vrsqrt.pop %v4847
    %v4864 = vrsqrt.pop %v4848
    %v4865 = vrsqrt.pop %v4849
    %v4866 = vrsqrt.pop %v4850
    %v4867 = vrsqrt.pop %v4851
    %v4884 = vcombine.low %v4852, %v4853
    %v4885 = vcombine.low %v4854, %v4855
    %v4886 = vcombine.low %v4856, %v4857
    %v4887 = vcombine.low %v4858, %v4859
    %v4889 = vunpack.c.l.s4 1966171168
    %v4890 = vunpack.c.0.s8 %v4889
    %v4891 = vlaneseq
    %v4892 = vshrl.u32 %v4891, 7
    %v4893 = vsub.s32 %v4890, %v4892
    %v4894 = vrot.slane %v4884, %v4893
    %v4896 = vunpack.c.l.s4 1966171168
    %v4897 = vunpack.c.0.s8 %v4896
    %v4898 = vlaneseq
    %v4899 = vshrl.u32 %v4898, 7
    %v4900 = vsub.s32 %v4897, %v4899
    %v4901 = vrot.slane %v4885, %v4900
    %v4903 = vunpack.c.l.s4 1966171168
    %v4904 = vunpack.c.0.s8 %v4903
    %v4905 = vlaneseq
    %v4906 = vshrl.u32 %v4905, 7
    %v4907 = vsub.s32 %v4904, %v4906
    %v4908 = vrot.slane %v4886, %v4907
    %v4910 = vunpack.c.l.s4 1966171168
    %v4911 = vunpack.c.0.s8 %v4910
    %v4912 = vlaneseq
    %v4913 = vshrl.u32 %v4912, 7
    %v4914 = vsub.s32 %v4911, %v4913
    %v4915 = vrot.slane %v4887, %v4914
    %v4916 = vcombine.low %v4894, %v4901
    %v4917 = vcombine.low %v4908, %v4915
    %v4919 = vunpack.c.l.s4 1966171168
    %v4920 = vunpack.c.0.s8 %v4919
    %v4921 = vlaneseq
    %v4922 = vshrl.u32 %v4921, 7
    %v4923 = vsub.s32 %v4920, %v4922
    %v4924 = vrot.slane %v4916, %v4923
    %v4926 = vunpack.c.l.s4 1966171168
    %v4927 = vunpack.c.0.s8 %v4926
    %v4928 = vlaneseq
    %v4929 = vshrl.u32 %v4928, 7
    %v4930 = vsub.s32 %v4927, %v4929
    %v4931 = vrot.slane %v4917, %v4930
    %v4932 = vcombine.low %v4924, %v4931
    %v4933 = vcombine.low %v4860, %v4861
    %v4934 = vcombine.low %v4862, %v4863
    %v4935 = vcombine.low %v4864, %v4865
    %v4936 = vcombine.low %v4866, %v4867
    %v4938 = vunpack.c.l.s4 1966171168
    %v4939 = vunpack.c.0.s8 %v4938
    %v4940 = vlaneseq
    %v4941 = vshrl.u32 %v4940, 7
    %v4942 = vsub.s32 %v4939, %v4941
    %v4943 = vrot.slane %v4933, %v4942
    %v4945 = vunpack.c.l.s4 1966171168
    %v4946 = vunpack.c.0.s8 %v4945
    %v4947 = vlaneseq
    %v4948 = vshrl.u32 %v4947, 7
    %v4949 = vsub.s32 %v4946, %v4948
    %v4950 = vrot.slane %v4934, %v4949
    %v4952 = vunpack.c.l.s4 1966171168
    %v4953 = vunpack.c.0.s8 %v4952
    %v4954 = vlaneseq
    %v4955 = vshrl.u32 %v4954, 7
    %v4956 = vsub.s32 %v4953, %v4955
    %v4957 = vrot.slane %v4935, %v4956
    %v4959 = vunpack.c.l.s4 1966171168
    %v4960 = vunpack.c.0.s8 %v4959
    %v4961 = vlaneseq
    %v4962 = vshrl.u32 %v4961, 7
    %v4963 = vsub.s32 %v4960, %v4962
    %v4964 = vrot.slane %v4936, %v4963
    %v4965 = vcombine.low %v4943, %v4950
    %v4966 = vcombine.low %v4957, %v4964
    %v4968 = vunpack.c.l.s4 1966171168
    %v4969 = vunpack.c.0.s8 %v4968
    %v4970 = vlaneseq
    %v4971 = vshrl.u32 %v4970, 7
    %v4972 = vsub.s32 %v4969, %v4971
    %v4973 = vrot.slane %v4965, %v4972
    %v4975 = vunpack.c.l.s4 1966171168
    %v4976 = vunpack.c.0.s8 %v4975
    %v4977 = vlaneseq
    %v4978 = vshrl.u32 %v4977, 7
    %v4979 = vsub.s32 %v4976, %v4978
    %v4980 = vrot.slane %v4966, %v4979
    %v4981 = vcombine.low %v4973, %v4980
    %v4984 = vmul.f32 %v4576, %v4932
    %v4985 = vmul.f32 %v4577, %v4981
    %v4988 = vlaneseq
    %v4989 = vshrl.u32 %v4988, 7
    %v4990 = vsub.s32 0, %v4989
    %v4991 = vrot.slane %v4984, %v4990
    %v4992 = vlaneseq
    %v4993 = vshrl.u32 %v4992, 7
    %v4994 = vsub.s32 1, %v4993
    %v4995 = vrot.slane %v4984, %v4994
    %v4996 = vlaneseq
    %v4997 = vshrl.u32 %v4996, 7
    %v4998 = vsub.s32 2, %v4997
    %v4999 = vrot.slane %v4984, %v4998
    %v5000 = vlaneseq
    %v5001 = vshrl.u32 %v5000, 7
    %v5002 = vsub.s32 3, %v5001
    %v5003 = vrot.slane %v4984, %v5002
    %v5004 = vlaneseq
    %v5005 = vshrl.u32 %v5004, 7
    %v5006 = vsub.s32 4, %v5005
    %v5007 = vrot.slane %v4984, %v5006
    %v5008 = vlaneseq
    %v5009 = vshrl.u32 %v5008, 7
    %v5010 = vsub.s32 5, %v5009
    %v5011 = vrot.slane %v4984, %v5010
    %v5012 = vlaneseq
    %v5013 = vshrl.u32 %v5012, 7
    %v5014 = vsub.s32 6, %v5013
    %v5015 = vrot.slane %v4984, %v5014
    %v5016 = vlaneseq
    %v5017 = vshrl.u32 %v5016, 7
    %v5018 = vsub.s32 7, %v5017
    %v5019 = vrot.slane %v4984, %v5018
    %v5020 = vlaneseq
    %v5021 = vshrl.u32 %v5020, 7
    %v5022 = vsub.s32 0, %v5021
    %v5023 = vrot.slane %v4985, %v5022
    %v5024 = vlaneseq
    %v5025 = vshrl.u32 %v5024, 7
    %v5026 = vsub.s32 1, %v5025
    %v5027 = vrot.slane %v4985, %v5026
    %v5028 = vlaneseq
    %v5029 = vshrl.u32 %v5028, 7
    %v5030 = vsub.s32 2, %v5029
    %v5031 = vrot.slane %v4985, %v5030
    %v5032 = vlaneseq
    %v5033 = vshrl.u32 %v5032, 7
    %v5034 = vsub.s32 3, %v5033
    %v5035 = vrot.slane %v4985, %v5034
    %v5036 = vlaneseq
    %v5037 = vshrl.u32 %v5036, 7
    %v5038 = vsub.s32 4, %v5037
    %v5039 = vrot.slane %v4985, %v5038
    %v5040 = vlaneseq
    %v5041 = vshrl.u32 %v5040, 7
    %v5042 = vsub.s32 5, %v5041
    %v5043 = vrot.slane %v4985, %v5042
    %v5044 = vlaneseq
    %v5045 = vshrl.u32 %v5044, 7
    %v5046 = vsub.s32 6, %v5045
    %v5047 = vrot.slane %v4985, %v5046
    %v5048 = vlaneseq
    %v5049 = vshrl.u32 %v5048, 7
    %v5050 = vsub.s32 7, %v5049
    %v5051 = vrot.slane %v4985, %v5050
    %v5068 = vmul.f32 %v4692, %v4991
    %v5069 = vmul.f32 %v4693, %v4995
    %v5070 = vmul.f32 %v4694, %v4999
    %v5071 = vmul.f32 %v4695, %v5003
    %v5072 = vmul.f32 %v4696, %v5007
    %v5073 = vmul.f32 %v4697, %v5011
    %v5074 = vmul.f32 %v4698, %v5015
    %v5075 = vmul.f32 %v4699, %v5019
    %v5076 = vmul.f32 %v4700, %v5023
    %v5077 = vmul.f32 %v4701, %v5027
    %v5078 = vmul.f32 %v4702, %v5031
    %v5079 = vmul.f32 %v4703, %v5035
    %v5080 = vmul.f32 %v4704, %v5039
    %v5081 = vmul.f32 %v4705, %v5043
    %v5082 = vmul.f32 %v4706, %v5047
    %v5083 = vmul.f32 %v4707, %v5051
    %v5086 = vlaneseq
    %v5087 = vshrl.u32 %v5086, 7
    %v5088 = vsub.s32 0, %v5087
    %v5089 = vrot.slane %v4578, %v5088
    %v5090 = vlaneseq
    %v5091 = vshrl.u32 %v5090, 7
    %v5092 = vsub.s32 1, %v5091
    %v5093 = vrot.slane %v4578, %v5092
    %v5094 = vlaneseq
    %v5095 = vshrl.u32 %v5094, 7
    %v5096 = vsub.s32 2, %v5095
    %v5097 = vrot.slane %v4578, %v5096
    %v5098 = vlaneseq
    %v5099 = vshrl.u32 %v5098, 7
    %v5100 = vsub.s32 3, %v5099
    %v5101 = vrot.slane %v4578, %v5100
    %v5102 = vlaneseq
    %v5103 = vshrl.u32 %v5102, 7
    %v5104 = vsub.s32 4, %v5103
    %v5105 = vrot.slane %v4578, %v5104
    %v5106 = vlaneseq
    %v5107 = vshrl.u32 %v5106, 7
    %v5108 = vsub.s32 5, %v5107
    %v5109 = vrot.slane %v4578, %v5108
    %v5110 = vlaneseq
    %v5111 = vshrl.u32 %v5110, 7
    %v5112 = vsub.s32 6, %v5111
    %v5113 = vrot.slane %v4578, %v5112
    %v5114 = vlaneseq
    %v5115 = vshrl.u32 %v5114, 7
    %v5116 = vsub.s32 7, %v5115
    %v5117 = vrot.slane %v4578, %v5116
    %v5118 = vlaneseq
    %v5119 = vshrl.u32 %v5118, 7
    %v5120 = vsub.s32 0, %v5119
    %v5121 = vrot.slane %v4579, %v5120
    %v5122 = vlaneseq
    %v5123 = vshrl.u32 %v5122, 7
    %v5124 = vsub.s32 1, %v5123
    %v5125 = vrot.slane %v4579, %v5124
    %v5126 = vlaneseq
    %v5127 = vshrl.u32 %v5126, 7
    %v5128 = vsub.s32 2, %v5127
    %v5129 = vrot.slane %v4579, %v5128
    %v5130 = vlaneseq
    %v5131 = vshrl.u32 %v5130, 7
    %v5132 = vsub.s32 3, %v5131
    %v5133 = vrot.slane %v4579, %v5132
    %v5134 = vlaneseq
    %v5135 = vshrl.u32 %v5134, 7
    %v5136 = vsub.s32 4, %v5135
    %v5137 = vrot.slane %v4579, %v5136
    %v5138 = vlaneseq
    %v5139 = vshrl.u32 %v5138, 7
    %v5140 = vsub.s32 5, %v5139
    %v5141 = vrot.slane %v4579, %v5140
    %v5142 = vlaneseq
    %v5143 = vshrl.u32 %v5142, 7
    %v5144 = vsub.s32 6, %v5143
    %v5145 = vrot.slane %v4579, %v5144
    %v5146 = vlaneseq
    %v5147 = vshrl.u32 %v5146, 7
    %v5148 = vsub.s32 7, %v5147
    %v5149 = vrot.slane %v4579, %v5148
    %v5166 = vadd.f32 %v5068, %v5089
    %v5167 = vadd.f32 %v5069, %v5093
    %v5168 = vadd.f32 %v5070, %v5097
    %v5169 = vadd.f32 %v5071, %v5101
    %v5170 = vadd.f32 %v5072, %v5105
    %v5171 = vadd.f32 %v5073, %v5109
    %v5172 = vadd.f32 %v5074, %v5113
    %v5173 = vadd.f32 %v5075, %v5117
    %v5174 = vadd.f32 %v5076, %v5121
    %v5175 = vadd.f32 %v5077, %v5125
    %v5176 = vadd.f32 %v5078, %v5129
    %v5177 = vadd.f32 %v5079, %v5133
    %v5178 = vadd.f32 %v5080, %v5137
    %v5179 = vadd.f32 %v5081, %v5141
    %v5180 = vadd.f32 %v5082, %v5145
    %v5181 = vadd.f32 %v5083, %v5149
    %v5182 = vmax.f32 %v5166, 0.0
    %v5183 = vmax.f32 %v5167, 0.0
    %v5184 = vmax.f32 %v5168, 0.0
    %v5185 = vmax.f32 %v5169, 0.0
    %v5186 = vmax.f32 %v5170, 0.0
    %v5187 = vmax.f32 %v5171, 0.0
    %v5188 = vmax.f32 %v5172, 0.0
    %v5189 = vmax.f32 %v5173, 0.0
    %v5190 = vmax.f32 %v5174, 0.0
    %v5191 = vmax.f32 %v5175, 0.0
    %v5192 = vmax.f32 %v5176, 0.0
    %v5193 = vmax.f32 %v5177, 0.0
    %v5194 = vmax.f32 %v5178, 0.0
    %v5195 = vmax.f32 %v5179, 0.0
    %v5196 = vmax.f32 %v5180, 0.0
    %v5197 = vmax.f32 %v5181, 0.0
    %v5198 = vpack.c.bf16 %v5182, %v5182
    %v5199 = vpack.c.bf16 %v5183, %v5183
    %v5200 = vpack.c.bf16 %v5184, %v5184
    %v5201 = vpack.c.bf16 %v5185, %v5185
    %v5202 = vpack.c.bf16 %v5186, %v5186
    %v5203 = vpack.c.bf16 %v5187, %v5187
    %v5204 = vpack.c.bf16 %v5188, %v5188
    %v5205 = vpack.c.bf16 %v5189, %v5189
    %v5206 = vpack.c.bf16 %v5190, %v5190
    %v5207 = vpack.c.bf16 %v5191, %v5191
    %v5208 = vpack.c.bf16 %v5192, %v5192
    %v5209 = vpack.c.bf16 %v5193, %v5193
    %v5210 = vpack.c.bf16 %v5194, %v5194
    %v5211 = vpack.c.bf16 %v5195, %v5195
    %v5212 = vpack.c.bf16 %v5196, %v5196
    %v5213 = vpack.c.bf16 %v5197, %v5197
    %v5214 = vld [vmem:[#allocation21] sm:$0xff]
    %v5215 = vld [vmem:[#allocation21 + $0x8] sm:$0xff]
    %v5216 = vld [vmem:[#allocation21 + $0x10] sm:$0xff]
    %v5217 = vld [vmem:[#allocation21 + $0x18] sm:$0xff]
    %v5218 = vld [vmem:[#allocation22] sm:$0x1]
    %v5220 = vlaneseq
    %v5221 = vshrl.u32 %v5220, 7
    %v5222 = vsub.s32 0, %v5221
    %v5223 = vrot.slane %v5218, %v5222
    %v5229 = vcombine.high %v5214, %v5214
    %v5231 = vunpack.c.l.s4 1983009808
    %v5232 = vunpack.c.0.s8 %v5231
    %v5233 = vlaneseq
    %v5234 = vshrl.u32 %v5233, 7
    %v5235 = vsub.s32 %v5232, %v5234
    %v5236 = vrot.slane %v5214, %v5235
    %v5238 = vunpack.c.l.s4 1983009808
    %v5239 = vunpack.c.0.s8 %v5238
    %v5240 = vlaneseq
    %v5241 = vshrl.u32 %v5240, 7
    %v5242 = vsub.s32 %v5239, %v5241
    %v5243 = vrot.slane %v5229, %v5242
    %v5244 = vcombine.high %v5236, %v5236
    %v5245 = vcombine.high %v5243, %v5243
    %v5246 = vcombine.high %v5215, %v5215
    %v5248 = vunpack.c.l.s4 1983009808
    %v5249 = vunpack.c.0.s8 %v5248
    %v5250 = vlaneseq
    %v5251 = vshrl.u32 %v5250, 7
    %v5252 = vsub.s32 %v5249, %v5251
    %v5253 = vrot.slane %v5215, %v5252
    %v5255 = vunpack.c.l.s4 1983009808
    %v5256 = vunpack.c.0.s8 %v5255
    %v5257 = vlaneseq
    %v5258 = vshrl.u32 %v5257, 7
    %v5259 = vsub.s32 %v5256, %v5258
    %v5260 = vrot.slane %v5246, %v5259
    %v5261 = vcombine.high %v5253, %v5253
    %v5262 = vcombine.high %v5260, %v5260
    %v5263 = vcombine.high %v5216, %v5216
    %v5265 = vunpack.c.l.s4 1983009808
    %v5266 = vunpack.c.0.s8 %v5265
    %v5267 = vlaneseq
    %v5268 = vshrl.u32 %v5267, 7
    %v5269 = vsub.s32 %v5266, %v5268
    %v5270 = vrot.slane %v5216, %v5269
    %v5272 = vunpack.c.l.s4 1983009808
    %v5273 = vunpack.c.0.s8 %v5272
    %v5274 = vlaneseq
    %v5275 = vshrl.u32 %v5274, 7
    %v5276 = vsub.s32 %v5273, %v5275
    %v5277 = vrot.slane %v5263, %v5276
    %v5278 = vcombine.high %v5270, %v5270
    %v5279 = vcombine.high %v5277, %v5277
    %v5280 = vcombine.high %v5217, %v5217
    %v5282 = vunpack.c.l.s4 1983009808
    %v5283 = vunpack.c.0.s8 %v5282
    %v5284 = vlaneseq
    %v5285 = vshrl.u32 %v5284, 7
    %v5286 = vsub.s32 %v5283, %v5285
    %v5287 = vrot.slane %v5217, %v5286
    %v5289 = vunpack.c.l.s4 1983009808
    %v5290 = vunpack.c.0.s8 %v5289
    %v5291 = vlaneseq
    %v5292 = vshrl.u32 %v5291, 7
    %v5293 = vsub.s32 %v5290, %v5292
    %v5294 = vrot.slane %v5280, %v5293
    %v5295 = vcombine.high %v5287, %v5287
    %v5296 = vcombine.high %v5294, %v5294
    %5313 = vmatprep.subr.bf16.mxu0 %v5244
    %5314 = vmatpush1.bf16.xpose.msra.mxu0 %v5236
    %5315 = vmatprep.subr.bf16.mxu0 0
    %5316 = vmatpush1.bf16.xpose.msra.mxu0 0
    %5317 = vmatprep.subr.bf16.mxu0 0
    %5318 = vmatpush1.bf16.xpose.msra.mxu0 0
    %5319 = vmatprep.subr.bf16.mxu0 0
    %5320 = vmatpush1.bf16.xpose.msra.mxu0 0
    %5321 = vmatprep.subr.bf16.mxu0 0
    %5322 = vmatpush1.bf16.xpose.msra.mxu0 0
    %5323 = vmatprep.subr.bf16.mxu0 0
    %5324 = vmatpush1.bf16.xpose.msra.mxu0 0
    %5325 = vmatprep.subr.bf16.mxu0 0
    %5326 = vmatpush1.bf16.xpose.msra.mxu0 0
    %5327 = vmatprep.subr.bf16.mxu0 0
    %5328 = vmatpush1.bf16.xpose.msra.mxu0 0
    %5329 = vmatprep.subr.bf16.mxu0 0
    %5330 = vmatpush1.bf16.xpose.msra.mxu0 0
    %5331 = vmatprep.subr.bf16.mxu0 0
    %5332 = vmatpush1.bf16.xpose.msra.mxu0 0
    %5333 = vmatprep.subr.bf16.mxu0 0
    %5334 = vmatpush1.bf16.xpose.msra.mxu0 0
    %5335 = vmatprep.subr.bf16.mxu0 0
    %5336 = vmatpush1.bf16.xpose.msra.mxu0 0
    %5337 = vmatprep.subr.bf16.mxu0 0
    %5338 = vmatpush1.bf16.xpose.msra.mxu0 0
    %5339 = vmatprep.subr.bf16.mxu0 0
    %5340 = vmatpush1.bf16.xpose.msra.mxu0 0
    %5341 = vmatprep.subr.bf16.mxu0 0
    %5342 = vmatpush1.bf16.xpose.msra.mxu0 0
    %5343 = vmatprep.subr.bf16.mxu0 0
    %5344 = vmatpush1.bf16.xpose.msra.mxu0 0
    %5345 = vmatprep.mubr.bf16.mxu0 %v5199
    %5346 = vmatmul.mubr.bf16.gmra.mrb[0].mxu0 %v5198
    %v5347 = vpop.f32.mrb[0].mxu0
    %v5348 = vadd.f32 %v5223, %v5347
    %v5349 = vpop.f32.mrb[0].mxu0
    %v5350 = vpop.f32.mrb[0].mxu0
    %v5351 = vpop.f32.mrb[0].mxu0
    %5352 = vdwg.mxu0
    %5353 = vmatprep.subr.bf16.mxu0 %v5245
    %5354 = vmatpush1.bf16.xpose.msra.mxu0 %v5243
    %5355 = vmatprep.subr.bf16.mxu0 0
    %5356 = vmatpush1.bf16.xpose.msra.mxu0 0
    %5357 = vmatprep.subr.bf16.mxu0 0
    %5358 = vmatpush1.bf16.xpose.msra.mxu0 0
    %5359 = vmatprep.subr.bf16.mxu0 0
    %5360 = vmatpush1.bf16.xpose.msra.mxu0 0
    %5361 = vmatprep.subr.bf16.mxu0 0
    %5362 = vmatpush1.bf16.xpose.msra.mxu0 0
    %5363 = vmatprep.subr.bf16.mxu0 0
    %5364 = vmatpush1.bf16.xpose.msra.mxu0 0
    %5365 = vmatprep.subr.bf16.mxu0 0
    %5366 = vmatpush1.bf16.xpose.msra.mxu0 0
    %5367 = vmatprep.subr.bf16.mxu0 0
    %5368 = vmatpush1.bf16.xpose.msra.mxu0 0
    %5369 = vmatprep.subr.bf16.mxu0 0
    %5370 = vmatpush1.bf16.xpose.msra.mxu0 0
    %5371 = vmatprep.subr.bf16.mxu0 0
    %5372 = vmatpush1.bf16.xpose.msra.mxu0 0
    %5373 = vmatprep.subr.bf16.mxu0 0
    %5374 = vmatpush1.bf16.xpose.msra.mxu0 0
    %5375 = vmatprep.subr.bf16.mxu0 0
    %5376 = vmatpush1.bf16.xpose.msra.mxu0 0
    %5377 = vmatprep.subr.bf16.mxu0 0
    %5378 = vmatpush1.bf16.xpose.msra.mxu0 0
    %5379 = vmatprep.subr.bf16.mxu0 0
    %5380 = vmatpush1.bf16.xpose.msra.mxu0 0
    %5381 = vmatprep.subr.bf16.mxu0 0
    %5382 = vmatpush1.bf16.xpose.msra.mxu0 0
    %5383 = vmatprep.subr.bf16.mxu0 0
    %5384 = vmatpush1.bf16.xpose.msra.mxu0 0
    %5385 = vmatprep.mubr.bf16.mxu0 %v5201
    %5386 = vmatmul.mubr.bf16.gmra.mrb[0].mxu0 %v5200
    %v5387 = vpop.f32.mrb[0].mxu0
    %v5388 = vadd.f32 %v5348, %v5387
    %v5389 = vpop.f32.mrb[0].mxu0
    %v5390 = vpop.f32.mrb[0].mxu0
    %v5391 = vpop.f32.mrb[0].mxu0
    %5392 = vdwg.mxu0
    %5393 = vmatprep.subr.bf16.mxu0 %v5261
    %5394 = vmatpush1.bf16.xpose.msra.mxu0 %v5253
    %5395 = vmatprep.subr.bf16.mxu0 0
    %5396 = vmatpush1.bf16.xpose.msra.mxu0 0
    %5397 = vmatprep.subr.bf16.mxu0 0
    %5398 = vmatpush1.bf16.xpose.msra.mxu0 0
    %5399 = vmatprep.subr.bf16.mxu0 0
    %5400 = vmatpush1.bf16.xpose.msra.mxu0 0
    %5401 = vmatprep.subr.bf16.mxu0 0
    %5402 = vmatpush1.bf16.xpose.msra.mxu0 0
    %5403 = vmatprep.subr.bf16.mxu0 0
    %5404 = vmatpush1.bf16.xpose.msra.mxu0 0
    %5405 = vmatprep.subr.bf16.mxu0 0
    %5406 = vmatpush1.bf16.xpose.msra.mxu0 0
    %5407 = vmatprep.subr.bf16.mxu0 0
    %5408 = vmatpush1.bf16.xpose.msra.mxu0 0
    %5409 = vmatprep.subr.bf16.mxu0 0
    %5410 = vmatpush1.bf16.xpose.msra.mxu0 0
    %5411 = vmatprep.subr.bf16.mxu0 0
    %5412 = vmatpush1.bf16.xpose.msra.mxu0 0
    %5413 = vmatprep.subr.bf16.mxu0 0
    %5414 = vmatpush1.bf16.xpose.msra.mxu0 0
    %5415 = vmatprep.subr.bf16.mxu0 0
    %5416 = vmatpush1.bf16.xpose.msra.mxu0 0
    %5417 = vmatprep.subr.bf16.mxu0 0
    %5418 = vmatpush1.bf16.xpose.msra.mxu0 0
    %5419 = vmatprep.subr.bf16.mxu0 0
    %5420 = vmatpush1.bf16.xpose.msra.mxu0 0
    %5421 = vmatprep.subr.bf16.mxu0 0
    %5422 = vmatpush1.bf16.xpose.msra.mxu0 0
    %5423 = vmatprep.subr.bf16.mxu0 0
    %5424 = vmatpush1.bf16.xpose.msra.mxu0 0
    %5425 = vmatprep.mubr.bf16.mxu0 %v5203
    %5426 = vmatmul.mubr.bf16.gmra.mrb[0].mxu0 %v5202
    %v5427 = vpop.f32.mrb[0].mxu0
    %v5428 = vadd.f32 %v5388, %v5427
    %v5429 = vpop.f32.mrb[0].mxu0
    %v5430 = vpop.f32.mrb[0].mxu0
    %v5431 = vpop.f32.mrb[0].mxu0
    %5432 = vdwg.mxu0
    %5433 = vmatprep.subr.bf16.mxu0 %v5262
    %5434 = vmatpush1.bf16.xpose.msra.mxu0 %v5260
    %5435 = vmatprep.subr.bf16.mxu0 0
    %5436 = vmatpush1.bf16.xpose.msra.mxu0 0
    %5437 = vmatprep.subr.bf16.mxu0 0
    %5438 = vmatpush1.bf16.xpose.msra.mxu0 0
    %5439 = vmatprep.subr.bf16.mxu0 0
    %5440 = vmatpush1.bf16.xpose.msra.mxu0 0
    %5441 = vmatprep.subr.bf16.mxu0 0
    %5442 = vmatpush1.bf16.xpose.msra.mxu0 0
    %5443 = vmatprep.subr.bf16.mxu0 0
    %5444 = vmatpush1.bf16.xpose.msra.mxu0 0
    %5445 = vmatprep.subr.bf16.mxu0 0
    %5446 = vmatpush1.bf16.xpose.msra.mxu0 0
    %5447 = vmatprep.subr.bf16.mxu0 0
    %5448 = vmatpush1.bf16.xpose.msra.mxu0 0
    %5449 = vmatprep.subr.bf16.mxu0 0
    %5450 = vmatpush1.bf16.xpose.msra.mxu0 0
    %5451 = vmatprep.subr.bf16.mxu0 0
    %5452 = vmatpush1.bf16.xpose.msra.mxu0 0
    %5453 = vmatprep.subr.bf16.mxu0 0
    %5454 = vmatpush1.bf16.xpose.msra.mxu0 0
    %5455 = vmatprep.subr.bf16.mxu0 0
    %5456 = vmatpush1.bf16.xpose.msra.mxu0 0
    %5457 = vmatprep.subr.bf16.mxu0 0
    %5458 = vmatpush1.bf16.xpose.msra.mxu0 0
    %5459 = vmatprep.subr.bf16.mxu0 0
    %5460 = vmatpush1.bf16.xpose.msra.mxu0 0
    %5461 = vmatprep.subr.bf16.mxu0 0
    %5462 = vmatpush1.bf16.xpose.msra.mxu0 0
    %5463 = vmatprep.subr.bf16.mxu0 0
    %5464 = vmatpush1.bf16.xpose.msra.mxu0 0
    %5465 = vmatprep.mubr.bf16.mxu0 %v5205
    %5466 = vmatmul.mubr.bf16.gmra.mrb[0].mxu0 %v5204
    %v5467 = vpop.f32.mrb[0].mxu0
    %v5468 = vadd.f32 %v5428, %v5467
    %v5469 = vpop.f32.mrb[0].mxu0
    %v5470 = vpop.f32.mrb[0].mxu0
    %v5471 = vpop.f32.mrb[0].mxu0
    %5472 = vdwg.mxu0
    %5473 = vmatprep.subr.bf16.mxu0 %v5278
    %5474 = vmatpush1.bf16.xpose.msra.mxu0 %v5270
    %5475 = vmatprep.subr.bf16.mxu0 0
    %5476 = vmatpush1.bf16.xpose.msra.mxu0 0
    %5477 = vmatprep.subr.bf16.mxu0 0
    %5478 = vmatpush1.bf16.xpose.msra.mxu0 0
    %5479 = vmatprep.subr.bf16.mxu0 0
    %5480 = vmatpush1.bf16.xpose.msra.mxu0 0
    %5481 = vmatprep.subr.bf16.mxu0 0
    %5482 = vmatpush1.bf16.xpose.msra.mxu0 0
    %5483 = vmatprep.subr.bf16.mxu0 0
    %5484 = vmatpush1.bf16.xpose.msra.mxu0 0
    %5485 = vmatprep.subr.bf16.mxu0 0
    %5486 = vmatpush1.bf16.xpose.msra.mxu0 0
    %5487 = vmatprep.subr.bf16.mxu0 0
    %5488 = vmatpush1.bf16.xpose.msra.mxu0 0
    %5489 = vmatprep.subr.bf16.mxu0 0
    %5490 = vmatpush1.bf16.xpose.msra.mxu0 0
    %5491 = vmatprep.subr.bf16.mxu0 0
    %5492 = vmatpush1.bf16.xpose.msra.mxu0 0
    %5493 = vmatprep.subr.bf16.mxu0 0
    %5494 = vmatpush1.bf16.xpose.msra.mxu0 0
    %5495 = vmatprep.subr.bf16.mxu0 0
    %5496 = vmatpush1.bf16.xpose.msra.mxu0 0
    %5497 = vmatprep.subr.bf16.mxu0 0
    %5498 = vmatpush1.bf16.xpose.msra.mxu0 0
    %5499 = vmatprep.subr.bf16.mxu0 0
    %5500 = vmatpush1.bf16.xpose.msra.mxu0 0
    %5501 = vmatprep.subr.bf16.mxu0 0
    %5502 = vmatpush1.bf16.xpose.msra.mxu0 0
    %5503 = vmatprep.subr.bf16.mxu0 0
    %5504 = vmatpush1.bf16.xpose.msra.mxu0 0
    %5505 = vmatprep.mubr.bf16.mxu0 %v5207
    %5506 = vmatmul.mubr.bf16.gmra.mrb[0].mxu0 %v5206
    %v5507 = vpop.f32.mrb[0].mxu0
    %v5508 = vadd.f32 %v5468, %v5507
    %v5509 = vpop.f32.mrb[0].mxu0
    %v5510 = vpop.f32.mrb[0].mxu0
    %v5511 = vpop.f32.mrb[0].mxu0
    %5512 = vdwg.mxu0
    %5513 = vmatprep.subr.bf16.mxu0 %v5279
    %5514 = vmatpush1.bf16.xpose.msra.mxu0 %v5277
    %5515 = vmatprep.subr.bf16.mxu0 0
    %5516 = vmatpush1.bf16.xpose.msra.mxu0 0
    %5517 = vmatprep.subr.bf16.mxu0 0
    %5518 = vmatpush1.bf16.xpose.msra.mxu0 0
    %5519 = vmatprep.subr.bf16.mxu0 0
    %5520 = vmatpush1.bf16.xpose.msra.mxu0 0
    %5521 = vmatprep.subr.bf16.mxu0 0
    %5522 = vmatpush1.bf16.xpose.msra.mxu0 0
    %5523 = vmatprep.subr.bf16.mxu0 0
    %5524 = vmatpush1.bf16.xpose.msra.mxu0 0
    %5525 = vmatprep.subr.bf16.mxu0 0
    %5526 = vmatpush1.bf16.xpose.msra.mxu0 0
    %5527 = vmatprep.subr.bf16.mxu0 0
    %5528 = vmatpush1.bf16.xpose.msra.mxu0 0
    %5529 = vmatprep.subr.bf16.mxu0 0
    %5530 = vmatpush1.bf16.xpose.msra.mxu0 0
    %5531 = vmatprep.subr.bf16.mxu0 0
    %5532 = vmatpush1.bf16.xpose.msra.mxu0 0
    %5533 = vmatprep.subr.bf16.mxu0 0
    %5534 = vmatpush1.bf16.xpose.msra.mxu0 0
    %5535 = vmatprep.subr.bf16.mxu0 0
    %5536 = vmatpush1.bf16.xpose.msra.mxu0 0
    %5537 = vmatprep.subr.bf16.mxu0 0
    %5538 = vmatpush1.bf16.xpose.msra.mxu0 0
    %5539 = vmatprep.subr.bf16.mxu0 0
    %5540 = vmatpush1.bf16.xpose.msra.mxu0 0
    %5541 = vmatprep.subr.bf16.mxu0 0
    %5542 = vmatpush1.bf16.xpose.msra.mxu0 0
    %5543 = vmatprep.subr.bf16.mxu0 0
    %5544 = vmatpush1.bf16.xpose.msra.mxu0 0
    %5545 = vmatprep.mubr.bf16.mxu0 %v5209
    %5546 = vmatmul.mubr.bf16.gmra.mrb[0].mxu0 %v5208
    %v5547 = vpop.f32.mrb[0].mxu0
    %v5548 = vadd.f32 %v5508, %v5547
    %v5549 = vpop.f32.mrb[0].mxu0
    %v5550 = vpop.f32.mrb[0].mxu0
    %v5551 = vpop.f32.mrb[0].mxu0
    %5552 = vdwg.mxu0
    %5553 = vmatprep.subr.bf16.mxu0 %v5295
    %5554 = vmatpush1.bf16.xpose.msra.mxu0 %v5287
    %5555 = vmatprep.subr.bf16.mxu0 0
    %5556 = vmatpush1.bf16.xpose.msra.mxu0 0
    %5557 = vmatprep.subr.bf16.mxu0 0
    %5558 = vmatpush1.bf16.xpose.msra.mxu0 0
    %5559 = vmatprep.subr.bf16.mxu0 0
    %5560 = vmatpush1.bf16.xpose.msra.mxu0 0
    %5561 = vmatprep.subr.bf16.mxu0 0
    %5562 = vmatpush1.bf16.xpose.msra.mxu0 0
    %5563 = vmatprep.subr.bf16.mxu0 0
    %5564 = vmatpush1.bf16.xpose.msra.mxu0 0
    %5565 = vmatprep.subr.bf16.mxu0 0
    %5566 = vmatpush1.bf16.xpose.msra.mxu0 0
    %5567 = vmatprep.subr.bf16.mxu0 0
    %5568 = vmatpush1.bf16.xpose.msra.mxu0 0
    %5569 = vmatprep.subr.bf16.mxu0 0
    %5570 = vmatpush1.bf16.xpose.msra.mxu0 0
    %5571 = vmatprep.subr.bf16.mxu0 0
    %5572 = vmatpush1.bf16.xpose.msra.mxu0 0
    %5573 = vmatprep.subr.bf16.mxu0 0
    %5574 = vmatpush1.bf16.xpose.msra.mxu0 0
    %5575 = vmatprep.subr.bf16.mxu0 0
    %5576 = vmatpush1.bf16.xpose.msra.mxu0 0
    %5577 = vmatprep.subr.bf16.mxu0 0
    %5578 = vmatpush1.bf16.xpose.msra.mxu0 0
    %5579 = vmatprep.subr.bf16.mxu0 0
    %5580 = vmatpush1.bf16.xpose.msra.mxu0 0
    %5581 = vmatprep.subr.bf16.mxu0 0
    %5582 = vmatpush1.bf16.xpose.msra.mxu0 0
    %5583 = vmatprep.subr.bf16.mxu0 0
    %5584 = vmatpush1.bf16.xpose.msra.mxu0 0
    %5585 = vmatprep.mubr.bf16.mxu0 %v5211
    %5586 = vmatmul.mubr.bf16.gmra.mrb[0].mxu0 %v5210
    %v5587 = vpop.f32.mrb[0].mxu0
    %v5588 = vadd.f32 %v5548, %v5587
    %v5589 = vpop.f32.mrb[0].mxu0
    %v5590 = vpop.f32.mrb[0].mxu0
    %v5591 = vpop.f32.mrb[0].mxu0
    %5592 = vdwg.mxu0
    %5593 = vmatprep.subr.bf16.mxu0 %v5296
    %5594 = vmatpush1.bf16.xpose.msra.mxu0 %v5294
    %5595 = vmatprep.subr.bf16.mxu0 0
    %5596 = vmatpush1.bf16.xpose.msra.mxu0 0
    %5597 = vmatprep.subr.bf16.mxu0 0
    %5598 = vmatpush1.bf16.xpose.msra.mxu0 0
    %5599 = vmatprep.subr.bf16.mxu0 0
    %5600 = vmatpush1.bf16.xpose.msra.mxu0 0
    %5601 = vmatprep.subr.bf16.mxu0 0
    %5602 = vmatpush1.bf16.xpose.msra.mxu0 0
    %5603 = vmatprep.subr.bf16.mxu0 0
    %5604 = vmatpush1.bf16.xpose.msra.mxu0 0
    %5605 = vmatprep.subr.bf16.mxu0 0
    %5606 = vmatpush1.bf16.xpose.msra.mxu0 0
    %5607 = vmatprep.subr.bf16.mxu0 0
    %5608 = vmatpush1.bf16.xpose.msra.mxu0 0
    %5609 = vmatprep.subr.bf16.mxu0 0
    %5610 = vmatpush1.bf16.xpose.msra.mxu0 0
    %5611 = vmatprep.subr.bf16.mxu0 0
    %5612 = vmatpush1.bf16.xpose.msra.mxu0 0
    %5613 = vmatprep.subr.bf16.mxu0 0
    %5614 = vmatpush1.bf16.xpose.msra.mxu0 0
    %5615 = vmatprep.subr.bf16.mxu0 0
    %5616 = vmatpush1.bf16.xpose.msra.mxu0 0
    %5617 = vmatprep.subr.bf16.mxu0 0
    %5618 = vmatpush1.bf16.xpose.msra.mxu0 0
    %5619 = vmatprep.subr.bf16.mxu0 0
    %5620 = vmatpush1.bf16.xpose.msra.mxu0 0
    %5621 = vmatprep.subr.bf16.mxu0 0
    %5622 = vmatpush1.bf16.xpose.msra.mxu0 0
    %5623 = vmatprep.subr.bf16.mxu0 0
    %5624 = vmatpush1.bf16.xpose.msra.mxu0 0
    %5625 = vmatprep.mubr.bf16.mxu0 %v5213
    %5626 = vmatmul.mubr.bf16.gmra.mrb[0].mxu0 %v5212
    %v5627 = vpop.f32.mrb[0].mxu0
    %v5628 = vadd.f32 %v5588, %v5627
    %v5629 = vpop.f32.mrb[0].mxu0
    %v5630 = vpop.f32.mrb[0].mxu0
    %v5631 = vpop.f32.mrb[0].mxu0
    %5632 = vdwg.mxu0
    %v5633 = vxor.u32 %v5628, 2147483648
    %v5634 = vmul.f32 %v5633, 1.442695
    %v5635 = vpow.pop %v5634
    %v5636 = vadd.f32 %v5635, 1.0
    %v5637 = vrcp.pop %v5636
    %v5638 = vmul.f32 1.0, %v5637
    %vm5639 = vcmask 23552
    %5640 = vst.msk [vmem:[%s14] sm:$0xff] %vm5639, %v5638
    // Predicated region
    $region106: #{tpu_custom_call.1} parent=1 // pred_check
      _
    $region107: #{tpu_custom_call.1} parent=1 // pred_check_branch
      %5642 = sbr.rel (0) target = $region109
    $region108: #{tpu_custom_call.1} parent=1 // pred_region
      _
    $region109: #{tpu_custom_call.1} parent=1 // pred_fallthru
      _
    // Predicated region
    $region110: #{tpu_custom_call.1} parent=1 // pred_check
      _
    $region111: #{tpu_custom_call.1} parent=1 // pred_check_branch
      %5644 = sbr.rel (0) target = $region113
    $region112: #{tpu_custom_call.1} parent=1 // pred_region
      _
    $region113: #{tpu_custom_call.1} parent=1 // pred_fallthru
      _
    %5645 = vsyncpa [#allocation6], 1
    %5646 = vsyncpa [#allocation8], 1
    %5647 = vsyncpa [#allocation11], 1
    %5648 = vsyncpa [#allocation14], 1
    %5649 = vsyncpa [#allocation17], 1
    %5650 = vsyncpa [#allocation20], 1
    %5651 = vsyncpa [#allocation23], 1
  %5652 = vsyncmov [#allocation4]
  %s5653 = vpop.sfrf %5652
  %p5654 = scmp.eq.s32.totalorder %s5653, 0
  %p5655 = pneg %p5654
  %5657 = shalt.err (%p5655)
  %s5658 = scalar_lea.sflag [#allocation4], 1
  %5659 = vsyncmov %s5658
  %s5660 = vpop.sfrf %5659
  %p5661 = scmp.eq.s32.totalorder %s5660, 0
  %p5662 = pneg %p5661
  %5664 = shalt.err (%p5662)

</llo_original>
